<compile_context>
chip_gen: v5e
topology: v5e:2x2
jax: 0.10.0
libtpu: 0.0.40
codegen_flags: <defaults>
</compile_context>

<pallas_src>
import numpy as np
import jax
import jax.numpy as jnp
from jax.experimental import pallas as pl
from jax.experimental.pallas import tpu as pltpu

N_DIM = 24          # self.dims[-1]
KERNEL_SIZE = 3     # self.kernel_size
TCN_CHANNELS = 16   # self.tcn_channels
TCN_WIDTH = 1       # self.tcn_width
REEIG_EPS = 1e-4    # standard SPDNet ReEig threshold

# Whole-array-in-VMEM spec (no grid, no tiling: total live data << 1 MiB).
_VMEM_SPEC = pl.BlockSpec(memory_space=pltpu.MemorySpace.VMEM)


# --------------------------- Pallas kernels ---------------------------

def _bimap_bn_kernel(x_ref, m_ref, mbd_ref, o_ref):
    """BiMap + BatchNormSPD congruence, batch lane-stacked per channel.

    x_ref:   (C, n, B*n)   X[b,c] lane-stacked over b
    m_ref:   (C, n, n)     M_c = A @ W_c^T  (BN congruence folded into BiMap weight)
    mbd_ref: (C, B*n, B*n) kron(I_B, M_c^T): one matmul right-multiplies every batch block
    o_ref:   (C, n, B*n)   Z[b,c] = M_c X[b,c] M_c^T, lane-stacked over b
    """
    C = x_ref.shape[0]
    for c in range(C):
        p = jnp.dot(m_ref[c], x_ref[c], preferred_element_type=jnp.float32)   # (n, B*n)
        o_ref[c] = jnp.dot(p, mbd_ref[c], preferred_element_type=jnp.float32)  # (n, B*n)


def bimap_bn_pallas(xls, m, mbd):
    C, n, bn = xls.shape
    return pl.pallas_call(
        _bimap_bn_kernel,
        out_shape=jax.ShapeDtypeStruct((C, n, bn), xls.dtype),
        in_specs=[_VMEM_SPEC] * 3,
        out_specs=_VMEM_SPEC,
    )(xls, m, mbd)


def _logeig_kernel(u_ref, s_ref, o_ref):
    """Fused ReEig + LogEig rebuild: o[m] = U_m diag(log(max(s_m, eps))) U_m^T."""
    u = u_ref[...]                                       # (M, n, n)
    ls = jnp.log(jnp.maximum(s_ref[...], REEIG_EPS))     # (M, 1, n), clamp before log
    o_ref[...] = jnp.einsum("mij,mkj->mik", u * ls, u,
                            preferred_element_type=jnp.float32)


def logeig_pallas(u, s):
    M, n, _ = u.shape
    return pl.pallas_call(
        _logeig_kernel,
        out_shape=jax.ShapeDtypeStruct((M, n, n), u.dtype),
        in_specs=[_VMEM_SPEC] * 2,
        out_specs=_VMEM_SPEC,
    )(u, s.reshape(M, 1, n))


def _head_kernel(xf_ref, wc_ref, bc_ref, wl_ref, bl_ref, o_ref):
    """Temporal_Block conv (as one MXU matmul) + Linear classifier, single store.

    xf: (B, C*n*n) flattened log-SPD features    wc: (C*n*n, O)    bc: (1, O)
    wl: (O, classes)                             bl: (1, classes)  o:  (B, classes)
    """
    h = jnp.dot(xf_ref[...], wc_ref[...], preferred_element_type=jnp.float32) + bc_ref[...]
    y = jnp.dot(h, wl_ref[...], preferred_element_type=jnp.float32) + bl_ref[...]
    o_ref[...] = y.astype(o_ref.dtype)


def head_pallas(xflat, wc_flat, bc, wl, bl):
    B = xflat.shape[0]
    num_classes = bl.shape[-1]
    return pl.pallas_call(
        _head_kernel,
        out_shape=jax.ShapeDtypeStruct((B, num_classes), xflat.dtype),
        in_specs=[_VMEM_SPEC] * 5,
        out_specs=_VMEM_SPEC,
    )(xflat, wc_flat, bc, wl, bl)


# --------------------------- forward (glue + kernels) ---------------------------

def tensor_cspnet_forward(x, params):
    B, Wn, Bn, n, _ = x.shape
    C = Wn * Bn
    x = x.reshape(B, C, n, n)

    # BatchNormSPD (inference path): A = weight^{1/2} running_mean^{-1/2}, via XLA eigh.
    sm, um = jnp.linalg.eigh(params["bn_running_mean"])
    gneg = (um * (1.0 / jnp.sqrt(sm))) @ um.T
    sw, uw = jnp.linalg.eigh(params["bn_weight"])
    gpos = (uw * jnp.sqrt(sw)) @ uw.T
    a = (gpos @ gneg).astype(x.dtype)

    # Fold BN into BiMap: A (W^T X W) A^T = M X M^T with M_c = A W_c^T (param prep, XLA).
    w = params["bimap_w"]
    m = jnp.einsum("ij,ckj->cik", a, w).astype(x.dtype)                 # (C, n, n)
    mt = jnp.swapaxes(m, 1, 2)
    mbd = jnp.einsum("bd,cij->cbidj", jnp.eye(B, dtype=x.dtype), mt)
    mbd = mbd.reshape(C, B * n, B * n)                                  # kron(I_B, M_c^T)

    # Stage 1: BiMap + BN congruence (Pallas), batch lane-stacked per channel.
    xls = jnp.transpose(x, (1, 2, 0, 3)).reshape(C, n, B * n)
    zls = bimap_bn_pallas(xls, m, mbd)
    xf = zls.reshape(C, n, B, n).transpose(2, 0, 1, 3).reshape(B * C, n, n)

    # Single eigendecomposition (XLA glue -- no Pallas eigh).  ReEig's eigensystem is
    # exactly (max(s, eps), U), so no second eigh is needed.
    s, u = jnp.linalg.eigh(xf)

    # Stage 2: fused ReEig + LogEig rebuild (Pallas).
    xlog = logeig_pallas(u, s)                                          # (B*C, n, n)
    xflat = xlog.reshape(B, C * n * n)                                  # free relayout in XLA

    # Stage 3: Temporal_Block conv + Linear classifier as two MXU matmuls (Pallas).
    # Conv2d(1, 16, (3, tcn_width*n^2), stride=(1, n^2)) collapses to one contraction
    # because window_num == kernel_size and band_num == tcn_width.
    assert Wn - KERNEL_SIZE + 1 == 1 and Bn - TCN_WIDTH + 1 == 1
    wc_flat = params["conv_w"].reshape(TCN_CHANNELS, -1).T.astype(x.dtype)  # (C*n*n, O)
    bc = params["conv_b"].reshape(1, -1).astype(x.dtype)                    # (1, O)
    wl = params["fc_w"].T.astype(x.dtype)                                   # (O, classes)
    bl = params["fc_b"].reshape(1, -1).astype(x.dtype)                      # (1, classes)
    return head_pallas(xflat, wc_flat, bc, wl, bl)


# --------------------------- deterministic params / reference ---------------------------

def init_params(key, channel_num, num_classes, n=N_DIM):
    k1, k2, k3, k4, k5 = jax.random.split(key, 5)
    # BiMap weight: one orthogonal n x n matrix per channel (Stiefel init via QR).
    q, _ = jnp.linalg.qr(jax.random.normal(k1, (channel_num, n, n), dtype=jnp.float32))
    return {
        "bimap_w": q.astype(jnp.float32),
        "bn_running_mean": jnp.eye(n, dtype=jnp.float32),
        "bn_weight": jnp.eye(n, dtype=jnp.float32),
        "conv_w": 0.05 * jax.random.normal(
            k2, (TCN_CHANNELS, 1, KERNEL_SIZE, TCN_WIDTH * n * n), dtype=jnp.float32),
        "conv_b": 0.01 * jax.random.normal(k3, (TCN_CHANNELS,), dtype=jnp.float32),
        "fc_w": 0.1 * jax.random.normal(k4, (num_classes, TCN_CHANNELS), dtype=jnp.float32),
        "fc_b": 0.01 * jax.random.normal(k5, (num_classes,), dtype=jnp.float32),
    }


def reference_forward(x, params):
    """Pure-JAX reference following the PyTorch module step by step (two eighs)."""
    B, Wn, Bn, n, _ = x.shape
    C = Wn * Bn
    x = x.reshape(B, C, n, n)
    w = params["bimap_w"]
    x = jnp.einsum("cji,bcjk,ckl->bcil", w, x, w)              # W^T X W
    sm, um = jnp.linalg.eigh(params["bn_running_mean"])
    gneg = (um * (1.0 / jnp.sqrt(sm))) @ um.T
    sw, uw = jnp.linalg.eigh(params["bn_weight"])
    gpos = (uw * jnp.sqrt(sw)) @ uw.T
    a = gpos @ gneg
    x = jnp.einsum("ij,bcjk,lk->bcil", a, x, a)                # A X A^T
    s, u = jnp.linalg.eigh(x)
    x = jnp.einsum("bcij,bcj,bckj->bcik", u, jnp.maximum(s, REEIG_EPS), u)   # ReEig
    s, u = jnp.linalg.eigh(x)
    x = jnp.einsum("bcij,bcj,bckj->bcik", u, jnp.log(s), u)                  # LogEig
    patch = x.reshape(B, -1)
    h = patch @ params["conv_w"].reshape(TCN_CHANNELS, -1).T + params["conv_b"]
    return h @ params["fc_w"].T + params["fc_b"]


if __name__ == "__main__":
    key = jax.random.PRNGKey(0)
    kx, kp = jax.random.split(key)

    # x: (batch, window_num, band_num, n, n) SPD matrices; Linear(16, classes) forces
    # window_num == 3 (= kernel_size) and band_num == 1 (= tcn_width).
    B, Wn, Bn, n = 2, KERNEL_SIZE, TCN_WIDTH, N_DIM
    num_classes = 4
    channel_num = Wn * Bn

    a0 = jax.random.normal(kx, (B, Wn, Bn, n, 2 * n), dtype=jnp.float32)
    x = a0 @ jnp.swapaxes(a0, -1, -2) / (2 * n) + 1e-2 * jnp.eye(n, dtype=jnp.float32)

    params = init_params(kp, channel_num, num_classes)

    y = jax.jit(tensor_cspnet_forward)(x, params)
    y = jax.block_until_ready(y)

    assert y.shape == (B, num_classes)
    y_ref = reference_forward(x, params)
    np.testing.assert_allclose(np.asarray(y), np.asarray(y_ref), rtol=5e-2, atol=5e-2)

    print("KERNEL_OK")
</pallas_src>

<mosaic_0001>
module attributes {stable_mosaic.version = 11 : i64} {
  func.func @_bimap_bn_kernel(%arg0: memref<3x24x48xf32, #tpu.memory_space<vmem>>, %arg1: memref<3x24x24xf32, #tpu.memory_space<vmem>>, %arg2: memref<3x48x48xf32, #tpu.memory_space<vmem>>, %arg3: memref<3x24x48xf32, #tpu.memory_space<vmem>>) attributes {dimension_semantics = [], scalar_prefetch = 0 : i64, scratch_operands = 0 : i64, tpu.core_type = #tpu.core_type<tc>} {
    %c0 = arith.constant 0 : index
    %c0_0 = arith.constant 0 : index
    %c0_1 = arith.constant 0 : index
    %0 = vector.load %arg1[%c0, %c0_0, %c0_1] : memref<3x24x24xf32, #tpu.memory_space<vmem>>, vector<1x24x24xf32>
    %1 = vector.shape_cast %0 : vector<1x24x24xf32> to vector<24x24xf32>
    %c0_2 = arith.constant 0 : index
    %c0_3 = arith.constant 0 : index
    %c0_4 = arith.constant 0 : index
    %2 = vector.load %arg0[%c0_2, %c0_3, %c0_4] : memref<3x24x48xf32, #tpu.memory_space<vmem>>, vector<1x24x48xf32>
    %3 = vector.shape_cast %2 : vector<1x24x48xf32> to vector<24x48xf32>
    %cst = arith.constant dense<0.000000e+00> : vector<24x48xf32>
    %4 = tpu.matmul %1, %3, %cst {dimension_numbers = #tpu.dot_dimension_numbers<[1], [0], [0], [1], [0, 0, 1, 1], [], []>} : vector<24x24xf32>, vector<24x48xf32>, vector<24x48xf32> -> vector<24x48xf32>
    %c0_5 = arith.constant 0 : index
    %c0_6 = arith.constant 0 : index
    %c0_7 = arith.constant 0 : index
    %5 = vector.load %arg2[%c0_5, %c0_6, %c0_7] : memref<3x48x48xf32, #tpu.memory_space<vmem>>, vector<1x48x48xf32>
    %6 = vector.shape_cast %5 : vector<1x48x48xf32> to vector<48x48xf32>
    %cst_8 = arith.constant dense<0.000000e+00> : vector<24x48xf32>
    %7 = tpu.matmul %4, %6, %cst_8 {dimension_numbers = #tpu.dot_dimension_numbers<[1], [0], [0], [1], [0, 0, 1, 1], [], []>} : vector<24x48xf32>, vector<48x48xf32>, vector<24x48xf32> -> vector<24x48xf32>
    %c0_9 = arith.constant 0 : index
    %c0_10 = arith.constant 0 : index
    %c0_11 = arith.constant 0 : index
    %8 = vector.load %arg3[%c0_9, %c0_10, %c0_11] : memref<3x24x48xf32, #tpu.memory_space<vmem>>, vector<1x24x48xf32>
    %9 = vector.shape_cast %8 : vector<1x24x48xf32> to vector<24x48xf32>
    %10 = vector.shape_cast %7 : vector<24x48xf32> to vector<1x24x48xf32>
    tpu.vector_store %arg3[%c0_9, %c0_10, %c0_11], %10 {strides = array<i32>} : memref<3x24x48xf32, #tpu.memory_space<vmem>>, vector<1x24x48xf32>,
    %c1 = arith.constant 1 : index
    %c0_12 = arith.constant 0 : index
    %c0_13 = arith.constant 0 : index
    %11 = vector.load %arg1[%c1, %c0_12, %c0_13] : memref<3x24x24xf32, #tpu.memory_space<vmem>>, vector<1x24x24xf32>
    %12 = vector.shape_cast %11 : vector<1x24x24xf32> to vector<24x24xf32>
    %c1_14 = arith.constant 1 : index
    %c0_15 = arith.constant 0 : index
    %c0_16 = arith.constant 0 : index
    %13 = vector.load %arg0[%c1_14, %c0_15, %c0_16] : memref<3x24x48xf32, #tpu.memory_space<vmem>>, vector<1x24x48xf32>
    %14 = vector.shape_cast %13 : vector<1x24x48xf32> to vector<24x48xf32>
    %cst_17 = arith.constant dense<0.000000e+00> : vector<24x48xf32>
    %15 = tpu.matmul %12, %14, %cst_17 {dimension_numbers = #tpu.dot_dimension_numbers<[1], [0], [0], [1], [0, 0, 1, 1], [], []>} : vector<24x24xf32>, vector<24x48xf32>, vector<24x48xf32> -> vector<24x48xf32>
    %c1_18 = arith.constant 1 : index
    %c0_19 = arith.constant 0 : index
    %c0_20 = arith.constant 0 : index
    %16 = vector.load %arg2[%c1_18, %c0_19, %c0_20] : memref<3x48x48xf32, #tpu.memory_space<vmem>>, vector<1x48x48xf32>
    %17 = vector.shape_cast %16 : vector<1x48x48xf32> to vector<48x48xf32>
    %cst_21 = arith.constant dense<0.000000e+00> : vector<24x48xf32>
    %18 = tpu.matmul %15, %17, %cst_21 {dimension_numbers = #tpu.dot_dimension_numbers<[1], [0], [0], [1], [0, 0, 1, 1], [], []>} : vector<24x48xf32>, vector<48x48xf32>, vector<24x48xf32> -> vector<24x48xf32>
    %c1_22 = arith.constant 1 : index
    %c0_23 = arith.constant 0 : index
    %c0_24 = arith.constant 0 : index
    %19 = vector.load %arg3[%c1_22, %c0_23, %c0_24] : memref<3x24x48xf32, #tpu.memory_space<vmem>>, vector<1x24x48xf32>
    %20 = vector.shape_cast %19 : vector<1x24x48xf32> to vector<24x48xf32>
    %21 = vector.shape_cast %18 : vector<24x48xf32> to vector<1x24x48xf32>
    tpu.vector_store %arg3[%c1_22, %c0_23, %c0_24], %21 {strides = array<i32>} : memref<3x24x48xf32, #tpu.memory_space<vmem>>, vector<1x24x48xf32>,
    %c2 = arith.constant 2 : index
    %c0_25 = arith.constant 0 : index
    %c0_26 = arith.constant 0 : index
    %22 = vector.load %arg1[%c2, %c0_25, %c0_26] : memref<3x24x24xf32, #tpu.memory_space<vmem>>, vector<1x24x24xf32>
    %23 = vector.shape_cast %22 : vector<1x24x24xf32> to vector<24x24xf32>
    %c2_27 = arith.constant 2 : index
    %c0_28 = arith.constant 0 : index
    %c0_29 = arith.constant 0 : index
    %24 = vector.load %arg0[%c2_27, %c0_28, %c0_29] : memref<3x24x48xf32, #tpu.memory_space<vmem>>, vector<1x24x48xf32>
    %25 = vector.shape_cast %24 : vector<1x24x48xf32> to vector<24x48xf32>
    %cst_30 = arith.constant dense<0.000000e+00> : vector<24x48xf32>
    %26 = tpu.matmul %23, %25, %cst_30 {dimension_numbers = #tpu.dot_dimension_numbers<[1], [0], [0], [1], [0, 0, 1, 1], [], []>} : vector<24x24xf32>, vector<24x48xf32>, vector<24x48xf32> -> vector<24x48xf32>
    %c2_31 = arith.constant 2 : index
    %c0_32 = arith.constant 0 : index
    %c0_33 = arith.constant 0 : index
    %27 = vector.load %arg2[%c2_31, %c0_32, %c0_33] : memref<3x48x48xf32, #tpu.memory_space<vmem>>, vector<1x48x48xf32>
    %28 = vector.shape_cast %27 : vector<1x48x48xf32> to vector<48x48xf32>
    %cst_34 = arith.constant dense<0.000000e+00> : vector<24x48xf32>
    %29 = tpu.matmul %26, %28, %cst_34 {dimension_numbers = #tpu.dot_dimension_numbers<[1], [0], [0], [1], [0, 0, 1, 1], [], []>} : vector<24x48xf32>, vector<48x48xf32>, vector<24x48xf32> -> vector<24x48xf32>
    %c2_35 = arith.constant 2 : index
    %c0_36 = arith.constant 0 : index
    %c0_37 = arith.constant 0 : index
    %30 = vector.load %arg3[%c2_35, %c0_36, %c0_37] : memref<3x24x48xf32, #tpu.memory_space<vmem>>, vector<1x24x48xf32>
    %31 = vector.shape_cast %30 : vector<1x24x48xf32> to vector<24x48xf32>
    %32 = vector.shape_cast %29 : vector<24x48xf32> to vector<1x24x48xf32>
    tpu.vector_store %arg3[%c2_35, %c0_36, %c0_37], %32 {strides = array<i32>} : memref<3x24x48xf32, #tpu.memory_space<vmem>>, vector<1x24x48xf32>,
    return
  }
}

module attributes {stable_mosaic.version = 11 : i64} {
  func.func @_logeig_kernel(%arg0: memref<6x24x24xf32, #tpu.memory_space<vmem>>, %arg1: memref<6x1x24xf32, #tpu.memory_space<vmem>>, %arg2: memref<6x24x24xf32, #tpu.memory_space<vmem>>) attributes {dimension_semantics = [], scalar_prefetch = 0 : i64, scratch_operands = 0 : i64, tpu.core_type = #tpu.core_type<tc>} {
    %c0 = arith.constant 0 : index
    %c0_0 = arith.constant 0 : index
    %c0_1 = arith.constant 0 : index
    %0 = vector.load %arg0[%c0, %c0_0, %c0_1] : memref<6x24x24xf32, #tpu.memory_space<vmem>>, vector<6x24x24xf32>
    %c0_2 = arith.constant 0 : index
    %c0_3 = arith.constant 0 : index
    %c0_4 = arith.constant 0 : index
    %1 = vector.load %arg1[%c0_2, %c0_3, %c0_4] : memref<6x1x24xf32, #tpu.memory_space<vmem>>, vector<6x1x24xf32>
    %cst = arith.constant 9.99999974E-5 : f32
    %2 = vector.broadcast %cst : f32 to vector<6x1x24xf32>
    %3 = arith.maximumf %1, %2 : vector<6x1x24xf32>
    %4 = math.log %3 : vector<6x1x24xf32>
    %5 = vector.broadcast %4 : vector<6x1x24xf32> to vector<6x24x24xf32>
    %6 = arith.mulf %0, %5 : vector<6x24x24xf32>
    "tpu.trace_start"() <{level = 10 : i32, message = "mij,mkj->mik"}> : () -> ()
    %cst_5 = arith.constant dense<0.000000e+00> : vector<6x24x24xf32>
    %7 = tpu.matmul %6, %0, %cst_5 {dimension_numbers = #tpu.dot_dimension_numbers<[2], [2], [1], [1], [0, 0, 0, 1, 1, 1], [0], [0]>} : vector<6x24x24xf32>, vector<6x24x24xf32>, vector<6x24x24xf32> -> vector<6x24x24xf32>
    "tpu.trace_stop"() : () -> ()
    %c0_6 = arith.constant 0 : index
    %c0_7 = arith.constant 0 : index
    %c0_8 = arith.constant 0 : index
    %8 = vector.load %arg2[%c0_6, %c0_7, %c0_8] : memref<6x24x24xf32, #tpu.memory_space<vmem>>, vector<6x24x24xf32>
    tpu.vector_store %arg2[%c0_6, %c0_7, %c0_8], %7 {strides = array<i32>} : memref<6x24x24xf32, #tpu.memory_space<vmem>>, vector<6x24x24xf32>,
    return
  }
}

module attributes {stable_mosaic.version = 11 : i64} {
  func.func @_head_kernel(%arg0: memref<2x1728xf32, #tpu.memory_space<vmem>>, %arg1: memref<1728x16xf32, #tpu.memory_space<vmem>>, %arg2: memref<1x16xf32, #tpu.memory_space<vmem>>, %arg3: memref<16x4xf32, #tpu.memory_space<vmem>>, %arg4: memref<1x4xf32, #tpu.memory_space<vmem>>, %arg5: memref<2x4xf32, #tpu.memory_space<vmem>>) attributes {dimension_semantics = [], scalar_prefetch = 0 : i64, scratch_operands = 0 : i64, tpu.core_type = #tpu.core_type<tc>} {
    %c0 = arith.constant 0 : index
    %c0_0 = arith.constant 0 : index
    %0 = vector.load %arg0[%c0, %c0_0] : memref<2x1728xf32, #tpu.memory_space<vmem>>, vector<2x1728xf32>
    %c0_1 = arith.constant 0 : index
    %c0_2 = arith.constant 0 : index
    %1 = vector.load %arg1[%c0_1, %c0_2] : memref<1728x16xf32, #tpu.memory_space<vmem>>, vector<1728x16xf32>
    %cst = arith.constant dense<0.000000e+00> : vector<2x16xf32>
    %2 = tpu.matmul %0, %1, %cst {dimension_numbers = #tpu.dot_dimension_numbers<[1], [0], [0], [1], [0, 0, 1, 1], [], []>} : vector<2x1728xf32>, vector<1728x16xf32>, vector<2x16xf32> -> vector<2x16xf32>
    %c0_3 = arith.constant 0 : index
    %c0_4 = arith.constant 0 : index
    %3 = vector.load %arg2[%c0_3, %c0_4] : memref<1x16xf32, #tpu.memory_space<vmem>>, vector<1x16xf32>
    %4 = vector.broadcast %3 : vector<1x16xf32> to vector<2x16xf32>
    %5 = arith.addf %2, %4 : vector<2x16xf32>
    %c0_5 = arith.constant 0 : index
    %c0_6 = arith.constant 0 : index
    %6 = vector.load %arg3[%c0_5, %c0_6] : memref<16x4xf32, #tpu.memory_space<vmem>>, vector<16x4xf32>
    %cst_7 = arith.constant dense<0.000000e+00> : vector<2x4xf32>
    %7 = tpu.matmul %5, %6, %cst_7 {dimension_numbers = #tpu.dot_dimension_numbers<[1], [0], [0], [1], [0, 0, 1, 1], [], []>} : vector<2x16xf32>, vector<16x4xf32>, vector<2x4xf32> -> vector<2x4xf32>
    %c0_8 = arith.constant 0 : index
    %c0_9 = arith.constant 0 : index
    %8 = vector.load %arg4[%c0_8, %c0_9] : memref<1x4xf32, #tpu.memory_space<vmem>>, vector<1x4xf32>
    %9 = vector.broadcast %8 : vector<1x4xf32> to vector<2x4xf32>
    %10 = arith.addf %7, %9 : vector<2x4xf32>
    %c0_10 = arith.constant 0 : index
    %c0_11 = arith.constant 0 : index
    %11 = vector.load %arg5[%c0_10, %c0_11] : memref<2x4xf32, #tpu.memory_space<vmem>>, vector<2x4xf32>
    tpu.vector_store %arg5[%c0_10, %c0_11], %10 {strides = array<i32>} : memref<2x4xf32, #tpu.memory_space<vmem>>, vector<2x4xf32>,
    return
  }
}

</mosaic_0001>

<llo_original>
// kernel: custom-call.6
$region0: #{custom-call.6}
  %s0 = inlined_call_operand.vmem [shape: f32[12,12], index: 0, kind: input, shape index: {}]
  %s1 = inlined_call_operand.vmem [shape: f32[12,12], index: 1, kind: input, shape index: {}]
  %s2 = inlined_call_operand.vmem [shape: f32[12,12], index: 2, kind: input, shape index: {}]
  %s3 = inlined_call_operand.vmem [shape: f32[12,12], index: 3, kind: input, shape index: {}]
  %s4 = inlined_call_operand.vmem [shape: f32[12], index: 4, kind: output, shape index: {0}]
  %s5 = inlined_call_operand.vmem [shape: f32[12], index: 5, kind: output, shape index: {1}]
  %s6 = inlined_call_operand.vmem [shape: f32[12,12], index: 6, kind: output, shape index: {2}]
  %s7 = inlined_call_operand.vmem [shape: f32[12,12], index: 7, kind: output, shape index: {3}]
  %s8 = inlined_call_operand.vmem [shape: f32[12,12], index: 8, kind: output, shape index: {4}]
  %s9 = inlined_call_operand.vmem [shape: f32[12,12], index: 9, kind: output, shape index: {5}]
  %10 = xla_tuple %s4, %s5, %s6, %s7, %s8, %s9
  $region1: #{custom-call.6} parent=0
    #allocation0 [shape = 'u8[8192]{0}', space=vmem, size = 0x2000, scoped, tag = 'operand span for operand 0']
    #allocation1 [shape = 'u8[8192]{0}', space=vmem, size = 0x2000, scoped, tag = 'operand span for operand 1']
    #allocation2 [shape = 'u8[8192]{0}', space=vmem, size = 0x2000, scoped, tag = 'operand span for operand 2']
    #allocation3 [shape = 'u8[8192]{0}', space=vmem, size = 0x2000, scoped, tag = 'operand span for operand 3']
    #allocation4 [shape = 'u8[4096]{0}', space=vmem, size = 0x1000, scoped, tag = 'operand span for operand 4']
    #allocation5 [shape = 'u8[512]{0}', space=vmem, size = 0x400, scoped, tag = 'packed  for operand 4']
    #allocation6 [shape = 'u8[4096]{0}', space=vmem, size = 0x1000, scoped, tag = 'operand span for operand 5']
    #allocation7 [shape = 'u8[512]{0}', space=vmem, size = 0x400, scoped, tag = 'packed  for operand 5']
    #allocation8 [shape = 'u8[8192]{0}', space=vmem, size = 0x2000, scoped, tag = 'operand span for operand 6']
    #allocation9 [shape = 'u8[8192]{0}', space=vmem, size = 0x2000, scoped, tag = 'operand span for operand 7']
    #allocation10 [shape = 'u8[8192]{0}', space=vmem, size = 0x2000, scoped, tag = 'operand span for operand 8']
    #allocation11 [shape = 'u8[8192]{0}', space=vmem, size = 0x2000, scoped, tag = 'operand span for operand 9']
    #allocation12 [shape = 'f32[12,12]{1,0}', space=vmem, size = 0x2000, scoped, tag = 'a top-left matrix']
    #allocation13 [shape = 'f32[12,12]{1,0}', space=vmem, size = 0x2000, scoped, tag = 'a top-right matrix']
    #allocation14 [shape = 'f32[12,12]{1,0}', space=vmem, size = 0x2000, scoped, tag = 'a bottom-left matrix']
    #allocation15 [shape = 'f32[12,12]{1,0}', space=vmem, size = 0x2000, scoped, tag = 'a bottom-right matrix']
    // Predicated region
    $region2: #{custom-call.6} parent=1 // pred_check
      _
    $region3: #{custom-call.6} parent=1 // pred_check_branch
      %12 = sbr.rel (0) target = $region5
    $region4: #{custom-call.6} parent=1 // pred_region
      %p14 = scmp.gt.s32.totalorder 2, 0
      // Predicated region
      $region6: #{custom-call.6} parent=4 // pred_check
        %p15 = pneg %p14
      $region7: #{custom-call.6} parent=4 // pred_check_branch
        %17 = sbr.rel (%p15) target = $region9
      $region8: #{custom-call.6} parent=4 // pred_region
        %s18 = ssub.s32 2, 1
        %s19 = smul.u32 %s18, 8
        %s20 = scalar_lea.vmem %s0, %s19
        %v21 = vld [vmem:[%s0] sm:$0xff]
        // While loop
        $region10: #{custom-call.6} parent=8 // loop_pre_header
          _
        $region11: #{custom-call.6} parent=8 // loop_header
          %s22 = sphi %s0, %s44
          %s23 = sphi [#allocation0], %s45
          %v24 = vphi %v21, %v46
          %s25 = ssub.s32 %s20, 64
          %p26 = scmp.gt.s32.totalorder %s22, %s25
        $region12: #{custom-call.6} parent=8 // loop_header_branch
          %28 = sbr.rel (%p26) target = $region16
        $region13: #{custom-call.6} parent=8 // loop_body
          %29 = vst [vmem:[%s23] sm:$0xff] %v24
          %v30 = vld [vmem:[%s22 + $0x8] sm:$0xff]
          %31 = vst [vmem:[%s23 + $0x8] sm:$0xff] %v30
          %v32 = vld [vmem:[%s22 + $0x10] sm:$0xff]
          %33 = vst [vmem:[%s23 + $0x10] sm:$0xff] %v32
          %v34 = vld [vmem:[%s22 + $0x18] sm:$0xff]
          %35 = vst [vmem:[%s23 + $0x18] sm:$0xff] %v34
          %v36 = vld [vmem:[%s22 + $0x20] sm:$0xff]
          %37 = vst [vmem:[%s23 + $0x20] sm:$0xff] %v36
          %v38 = vld [vmem:[%s22 + $0x28] sm:$0xff]
          %39 = vst [vmem:[%s23 + $0x28] sm:$0xff] %v38
          %v40 = vld [vmem:[%s22 + $0x30] sm:$0xff]
          %41 = vst [vmem:[%s23 + $0x30] sm:$0xff] %v40
          %v42 = vld [vmem:[%s22 + $0x38] sm:$0xff]
          %43 = vst [vmem:[%s23 + $0x38] sm:$0xff] %v42
        $region14: #{custom-call.6} parent=8 // loop_footer
          %s44 = scalar_lea.vmem %s22, 64
          %s45 = scalar_lea.vmem %s23, 64
          %v46 = vld [vmem:[%s22 + $0x40] sm:$0xff]
        $region15: #{custom-call.6} parent=8 // loop_footer_branch
          %47 = sbr.rel target = $region11
        $region16: #{custom-call.6} parent=8 // loop_exit
          _
        // While loop
        $region17: #{custom-call.6} parent=8 // loop_pre_header
          _
        $region18: #{custom-call.6} parent=8 // loop_header
          %s48 = sphi %s22, %s56
          %s49 = sphi %s23, %s57
          %v50 = vphi %v24, %v50
          %p51 = scmp.gt.s32.totalorder %s48, %s20
        $region19: #{custom-call.6} parent=8 // loop_header_branch
          %53 = sbr.rel (%p51) target = $region23
        $region20: #{custom-call.6} parent=8 // loop_body
          %v54 = vld [vmem:[%s48] sm:$0xff]
          %55 = vst [vmem:[%s49] sm:$0xff] %v54
        $region21: #{custom-call.6} parent=8 // loop_footer
          %s56 = scalar_lea.vmem %s48, 8
          %s57 = scalar_lea.vmem %s49, 8
        $region22: #{custom-call.6} parent=8 // loop_footer_branch
          %58 = sbr.rel target = $region18
        $region23: #{custom-call.6} parent=8 // loop_exit
          _
      $region9: #{custom-call.6} parent=4 // pred_fallthru
        _
      %s60 = ssub.s32 1, 1
      %s61 = smul.u32 2, 8
      %s62 = scalar_lea.vmem [#allocation0], %s61
      %s63 = smul.u32 2, 8
      %s64 = scalar_lea.vmem %s0, %s63
      %v65 = vld [vmem:[%s64] sm:%s60]
      %66 = vst [vmem:[%s62] sm:%s60] %v65
    $region5: #{custom-call.6} parent=1 // pred_fallthru
      _
    // Predicated region
    $region24: #{custom-call.6} parent=1 // pred_check
      _
    $region25: #{custom-call.6} parent=1 // pred_check_branch
      %68 = sbr.rel (0) target = $region27
    $region26: #{custom-call.6} parent=1 // pred_region
      %p70 = scmp.gt.s32.totalorder 2, 0
      // Predicated region
      $region28: #{custom-call.6} parent=26 // pred_check
        %p71 = pneg %p70
      $region29: #{custom-call.6} parent=26 // pred_check_branch
        %73 = sbr.rel (%p71) target = $region31
      $region30: #{custom-call.6} parent=26 // pred_region
        %s74 = ssub.s32 2, 1
        %s75 = smul.u32 %s74, 8
        %s76 = scalar_lea.vmem %s1, %s75
        %v77 = vld [vmem:[%s1] sm:$0xff]
        // While loop
        $region32: #{custom-call.6} parent=30 // loop_pre_header
          _
        $region33: #{custom-call.6} parent=30 // loop_header
          %s78 = sphi %s1, %s100
          %s79 = sphi [#allocation1], %s101
          %v80 = vphi %v77, %v102
          %s81 = ssub.s32 %s76, 64
          %p82 = scmp.gt.s32.totalorder %s78, %s81
        $region34: #{custom-call.6} parent=30 // loop_header_branch
          %84 = sbr.rel (%p82) target = $region38
        $region35: #{custom-call.6} parent=30 // loop_body
          %85 = vst [vmem:[%s79] sm:$0xff] %v80
          %v86 = vld [vmem:[%s78 + $0x8] sm:$0xff]
          %87 = vst [vmem:[%s79 + $0x8] sm:$0xff] %v86
          %v88 = vld [vmem:[%s78 + $0x10] sm:$0xff]
          %89 = vst [vmem:[%s79 + $0x10] sm:$0xff] %v88
          %v90 = vld [vmem:[%s78 + $0x18] sm:$0xff]
          %91 = vst [vmem:[%s79 + $0x18] sm:$0xff] %v90
          %v92 = vld [vmem:[%s78 + $0x20] sm:$0xff]
          %93 = vst [vmem:[%s79 + $0x20] sm:$0xff] %v92
          %v94 = vld [vmem:[%s78 + $0x28] sm:$0xff]
          %95 = vst [vmem:[%s79 + $0x28] sm:$0xff] %v94
          %v96 = vld [vmem:[%s78 + $0x30] sm:$0xff]
          %97 = vst [vmem:[%s79 + $0x30] sm:$0xff] %v96
          %v98 = vld [vmem:[%s78 + $0x38] sm:$0xff]
          %99 = vst [vmem:[%s79 + $0x38] sm:$0xff] %v98
        $region36: #{custom-call.6} parent=30 // loop_footer
          %s100 = scalar_lea.vmem %s78, 64
          %s101 = scalar_lea.vmem %s79, 64
          %v102 = vld [vmem:[%s78 + $0x40] sm:$0xff]
        $region37: #{custom-call.6} parent=30 // loop_footer_branch
          %103 = sbr.rel target = $region33
        $region38: #{custom-call.6} parent=30 // loop_exit
          _
        // While loop
        $region39: #{custom-call.6} parent=30 // loop_pre_header
          _
        $region40: #{custom-call.6} parent=30 // loop_header
          %s104 = sphi %s78, %s112
          %s105 = sphi %s79, %s113
          %v106 = vphi %v80, %v106
          %p107 = scmp.gt.s32.totalorder %s104, %s76
        $region41: #{custom-call.6} parent=30 // loop_header_branch
          %109 = sbr.rel (%p107) target = $region45
        $region42: #{custom-call.6} parent=30 // loop_body
          %v110 = vld [vmem:[%s104] sm:$0xff]
          %111 = vst [vmem:[%s105] sm:$0xff] %v110
        $region43: #{custom-call.6} parent=30 // loop_footer
          %s112 = scalar_lea.vmem %s104, 8
          %s113 = scalar_lea.vmem %s105, 8
        $region44: #{custom-call.6} parent=30 // loop_footer_branch
          %114 = sbr.rel target = $region40
        $region45: #{custom-call.6} parent=30 // loop_exit
          _
      $region31: #{custom-call.6} parent=26 // pred_fallthru
        _
      %s116 = ssub.s32 1, 1
      %s117 = smul.u32 2, 8
      %s118 = scalar_lea.vmem [#allocation1], %s117
      %s119 = smul.u32 2, 8
      %s120 = scalar_lea.vmem %s1, %s119
      %v121 = vld [vmem:[%s120] sm:%s116]
      %122 = vst [vmem:[%s118] sm:%s116] %v121
    $region27: #{custom-call.6} parent=1 // pred_fallthru
      _
    // Predicated region
    $region46: #{custom-call.6} parent=1 // pred_check
      _
    $region47: #{custom-call.6} parent=1 // pred_check_branch
      %124 = sbr.rel (0) target = $region49
    $region48: #{custom-call.6} parent=1 // pred_region
      %p126 = scmp.gt.s32.totalorder 2, 0
      // Predicated region
      $region50: #{custom-call.6} parent=48 // pred_check
        %p127 = pneg %p126
      $region51: #{custom-call.6} parent=48 // pred_check_branch
        %129 = sbr.rel (%p127) target = $region53
      $region52: #{custom-call.6} parent=48 // pred_region
        %s130 = ssub.s32 2, 1
        %s131 = smul.u32 %s130, 8
        %s132 = scalar_lea.vmem %s2, %s131
        %v133 = vld [vmem:[%s2] sm:$0xff]
        // While loop
        $region54: #{custom-call.6} parent=52 // loop_pre_header
          _
        $region55: #{custom-call.6} parent=52 // loop_header
          %s134 = sphi %s2, %s156
          %s135 = sphi [#allocation2], %s157
          %v136 = vphi %v133, %v158
          %s137 = ssub.s32 %s132, 64
          %p138 = scmp.gt.s32.totalorder %s134, %s137
        $region56: #{custom-call.6} parent=52 // loop_header_branch
          %140 = sbr.rel (%p138) target = $region60
        $region57: #{custom-call.6} parent=52 // loop_body
          %141 = vst [vmem:[%s135] sm:$0xff] %v136
          %v142 = vld [vmem:[%s134 + $0x8] sm:$0xff]
          %143 = vst [vmem:[%s135 + $0x8] sm:$0xff] %v142
          %v144 = vld [vmem:[%s134 + $0x10] sm:$0xff]
          %145 = vst [vmem:[%s135 + $0x10] sm:$0xff] %v144
          %v146 = vld [vmem:[%s134 + $0x18] sm:$0xff]
          %147 = vst [vmem:[%s135 + $0x18] sm:$0xff] %v146
          %v148 = vld [vmem:[%s134 + $0x20] sm:$0xff]
          %149 = vst [vmem:[%s135 + $0x20] sm:$0xff] %v148
          %v150 = vld [vmem:[%s134 + $0x28] sm:$0xff]
          %151 = vst [vmem:[%s135 + $0x28] sm:$0xff] %v150
          %v152 = vld [vmem:[%s134 + $0x30] sm:$0xff]
          %153 = vst [vmem:[%s135 + $0x30] sm:$0xff] %v152
          %v154 = vld [vmem:[%s134 + $0x38] sm:$0xff]
          %155 = vst [vmem:[%s135 + $0x38] sm:$0xff] %v154
        $region58: #{custom-call.6} parent=52 // loop_footer
          %s156 = scalar_lea.vmem %s134, 64
          %s157 = scalar_lea.vmem %s135, 64
          %v158 = vld [vmem:[%s134 + $0x40] sm:$0xff]
        $region59: #{custom-call.6} parent=52 // loop_footer_branch
          %159 = sbr.rel target = $region55
        $region60: #{custom-call.6} parent=52 // loop_exit
          _
        // While loop
        $region61: #{custom-call.6} parent=52 // loop_pre_header
          _
        $region62: #{custom-call.6} parent=52 // loop_header
          %s160 = sphi %s134, %s168
          %s161 = sphi %s135, %s169
          %v162 = vphi %v136, %v162
          %p163 = scmp.gt.s32.totalorder %s160, %s132
        $region63: #{custom-call.6} parent=52 // loop_header_branch
          %165 = sbr.rel (%p163) target = $region67
        $region64: #{custom-call.6} parent=52 // loop_body
          %v166 = vld [vmem:[%s160] sm:$0xff]
          %167 = vst [vmem:[%s161] sm:$0xff] %v166
        $region65: #{custom-call.6} parent=52 // loop_footer
          %s168 = scalar_lea.vmem %s160, 8
          %s169 = scalar_lea.vmem %s161, 8
        $region66: #{custom-call.6} parent=52 // loop_footer_branch
          %170 = sbr.rel target = $region62
        $region67: #{custom-call.6} parent=52 // loop_exit
          _
      $region53: #{custom-call.6} parent=48 // pred_fallthru
        _
      %s172 = ssub.s32 1, 1
      %s173 = smul.u32 2, 8
      %s174 = scalar_lea.vmem [#allocation2], %s173
      %s175 = smul.u32 2, 8
      %s176 = scalar_lea.vmem %s2, %s175
      %v177 = vld [vmem:[%s176] sm:%s172]
      %178 = vst [vmem:[%s174] sm:%s172] %v177
    $region49: #{custom-call.6} parent=1 // pred_fallthru
      _
    // Predicated region
    $region68: #{custom-call.6} parent=1 // pred_check
      _
    $region69: #{custom-call.6} parent=1 // pred_check_branch
      %180 = sbr.rel (0) target = $region71
    $region70: #{custom-call.6} parent=1 // pred_region
      %p182 = scmp.gt.s32.totalorder 2, 0
      // Predicated region
      $region72: #{custom-call.6} parent=70 // pred_check
        %p183 = pneg %p182
      $region73: #{custom-call.6} parent=70 // pred_check_branch
        %185 = sbr.rel (%p183) target = $region75
      $region74: #{custom-call.6} parent=70 // pred_region
        %s186 = ssub.s32 2, 1
        %s187 = smul.u32 %s186, 8
        %s188 = scalar_lea.vmem %s3, %s187
        %v189 = vld [vmem:[%s3] sm:$0xff]
        // While loop
        $region76: #{custom-call.6} parent=74 // loop_pre_header
          _
        $region77: #{custom-call.6} parent=74 // loop_header
          %s190 = sphi %s3, %s212
          %s191 = sphi [#allocation3], %s213
          %v192 = vphi %v189, %v214
          %s193 = ssub.s32 %s188, 64
          %p194 = scmp.gt.s32.totalorder %s190, %s193
        $region78: #{custom-call.6} parent=74 // loop_header_branch
          %196 = sbr.rel (%p194) target = $region82
        $region79: #{custom-call.6} parent=74 // loop_body
          %197 = vst [vmem:[%s191] sm:$0xff] %v192
          %v198 = vld [vmem:[%s190 + $0x8] sm:$0xff]
          %199 = vst [vmem:[%s191 + $0x8] sm:$0xff] %v198
          %v200 = vld [vmem:[%s190 + $0x10] sm:$0xff]
          %201 = vst [vmem:[%s191 + $0x10] sm:$0xff] %v200
          %v202 = vld [vmem:[%s190 + $0x18] sm:$0xff]
          %203 = vst [vmem:[%s191 + $0x18] sm:$0xff] %v202
          %v204 = vld [vmem:[%s190 + $0x20] sm:$0xff]
          %205 = vst [vmem:[%s191 + $0x20] sm:$0xff] %v204
          %v206 = vld [vmem:[%s190 + $0x28] sm:$0xff]
          %207 = vst [vmem:[%s191 + $0x28] sm:$0xff] %v206
          %v208 = vld [vmem:[%s190 + $0x30] sm:$0xff]
          %209 = vst [vmem:[%s191 + $0x30] sm:$0xff] %v208
          %v210 = vld [vmem:[%s190 + $0x38] sm:$0xff]
          %211 = vst [vmem:[%s191 + $0x38] sm:$0xff] %v210
        $region80: #{custom-call.6} parent=74 // loop_footer
          %s212 = scalar_lea.vmem %s190, 64
          %s213 = scalar_lea.vmem %s191, 64
          %v214 = vld [vmem:[%s190 + $0x40] sm:$0xff]
        $region81: #{custom-call.6} parent=74 // loop_footer_branch
          %215 = sbr.rel target = $region77
        $region82: #{custom-call.6} parent=74 // loop_exit
          _
        // While loop
        $region83: #{custom-call.6} parent=74 // loop_pre_header
          _
        $region84: #{custom-call.6} parent=74 // loop_header
          %s216 = sphi %s190, %s224
          %s217 = sphi %s191, %s225
          %v218 = vphi %v192, %v218
          %p219 = scmp.gt.s32.totalorder %s216, %s188
        $region85: #{custom-call.6} parent=74 // loop_header_branch
          %221 = sbr.rel (%p219) target = $region89
        $region86: #{custom-call.6} parent=74 // loop_body
          %v222 = vld [vmem:[%s216] sm:$0xff]
          %223 = vst [vmem:[%s217] sm:$0xff] %v222
        $region87: #{custom-call.6} parent=74 // loop_footer
          %s224 = scalar_lea.vmem %s216, 8
          %s225 = scalar_lea.vmem %s217, 8
        $region88: #{custom-call.6} parent=74 // loop_footer_branch
          %226 = sbr.rel target = $region84
        $region89: #{custom-call.6} parent=74 // loop_exit
          _
      $region75: #{custom-call.6} parent=70 // pred_fallthru
        _
      %s228 = ssub.s32 1, 1
      %s229 = smul.u32 2, 8
      %s230 = scalar_lea.vmem [#allocation3], %s229
      %s231 = smul.u32 2, 8
      %s232 = scalar_lea.vmem %s3, %s231
      %v233 = vld [vmem:[%s232] sm:%s228]
      %234 = vst [vmem:[%s230] sm:%s228] %v233
    $region71: #{custom-call.6} parent=1 // pred_fallthru
      _
    %s235 = smov [#allocation12]
    %v236 = vld [vmem:[#allocation0] sm:$0xff]
    %237 = vst [vmem:[%s235] sm:$0xff] %v236
    %s238 = scalar_lea.vmem %s235, 8
    %s239 = scalar_lea.vmem [#allocation0], 8
    %v240 = vld [vmem:[%s239] sm:$0xff]
    %241 = vst [vmem:[%s238] sm:$0xff] %v240
    %s242 = smov [#allocation13]
    %v243 = vld [vmem:[#allocation1] sm:$0xff]
    %244 = vst [vmem:[%s242] sm:$0xff] %v243
    %s245 = scalar_lea.vmem %s242, 8
    %s246 = scalar_lea.vmem [#allocation1], 8
    %v247 = vld [vmem:[%s246] sm:$0xff]
    %248 = vst [vmem:[%s245] sm:$0xff] %v247
    %s249 = smov [#allocation14]
    %v250 = vld [vmem:[#allocation2] sm:$0xff]
    %251 = vst [vmem:[%s249] sm:$0xff] %v250
    %s252 = scalar_lea.vmem %s249, 8
    %s253 = scalar_lea.vmem [#allocation2], 8
    %v254 = vld [vmem:[%s253] sm:$0xff]
    %255 = vst [vmem:[%s252] sm:$0xff] %v254
    %s256 = smov [#allocation15]
    %v257 = vld [vmem:[#allocation3] sm:$0xff]
    %258 = vst [vmem:[%s256] sm:$0xff] %v257
    %s259 = scalar_lea.vmem %s256, 8
    %s260 = scalar_lea.vmem [#allocation3], 8
    %v261 = vld [vmem:[%s260] sm:$0xff]
    %262 = vst [vmem:[%s259] sm:$0xff] %v261
    %263 = vst [vmem:[#allocation8] sm:$0xff] 0.0
    %s264 = scalar_lea.vmem [#allocation8], 8
    %265 = vst [vmem:[%s264] sm:$0xff] 0.0
    %266 = vst [vmem:[#allocation9] sm:$0xff] 0.0
    %s267 = scalar_lea.vmem [#allocation9], 8
    %268 = vst [vmem:[%s267] sm:$0xff] 0.0
    %269 = vst [vmem:[#allocation10] sm:$0xff] 0.0
    %s270 = scalar_lea.vmem [#allocation10], 8
    %271 = vst [vmem:[%s270] sm:$0xff] 0.0
    %272 = vst [vmem:[#allocation11] sm:$0xff] 0.0
    %s273 = scalar_lea.vmem [#allocation11], 8
    %274 = vst [vmem:[%s273] sm:$0xff] 0.0
    %s275 = smov [#allocation8]
    %v276 = vlaneseq
    %v277 = vand.u32 %v276, 127
    %v278 = vmov %v277
    %v279 = vlaneseq
    %v280 = vshrl.u32 %v279, 7
    %v281 = vmov %v280
    %v282 = vld [vmem:[%s275] sm:$0xff]
    %vm285 = vcmp.eq.s32.totalorder %v281, %v278
    %v286 = vsel %vm285, 1.0, %v282
    %287 = vst [vmem:[%s275] sm:$0xff] %v286
    %s288 = scalar_lea.vmem %s275, 8
    %v289 = vld [vmem:[%s288] sm:$0xf]
    %v291 = vadd.s32 %v281, 8
    %vm292 = vcmp.eq.s32.totalorder %v291, %v278
    %v293 = vsel %vm292, 1.0, %v289
    %294 = vst [vmem:[%s288] sm:$0xf] %v293
    %s295 = smov [#allocation11]
    %v296 = vlaneseq
    %v297 = vand.u32 %v296, 127
    %v298 = vmov %v297
    %v299 = vlaneseq
    %v300 = vshrl.u32 %v299, 7
    %v301 = vmov %v300
    %v302 = vld [vmem:[%s295] sm:$0xff]
    %vm305 = vcmp.eq.s32.totalorder %v301, %v298
    %v306 = vsel %vm305, 1.0, %v302
    %307 = vst [vmem:[%s295] sm:$0xff] %v306
    %s308 = scalar_lea.vmem %s295, 8
    %v309 = vld [vmem:[%s308] sm:$0xf]
    %v311 = vadd.s32 %v301, 8
    %vm312 = vcmp.eq.s32.totalorder %v311, %v298
    %v313 = vsel %vm312, 1.0, %v309
    %314 = vst [vmem:[%s308] sm:$0xf] %v313
    // While loop
    $region90: #{custom-call.6} parent=1 // loop_pre_header
      _
    $region91: #{custom-call.6} parent=1 // loop_header
      %s316 = sphi 0, %s1254
      %v317 = vlaneseq
      %v318 = vand.u32 %v317, 127
      %v319 = vmov %v318
      %v320 = vlaneseq
      %v321 = vshrl.u32 %v320, 7
      %v322 = vmov %v321
      %s323 = smov [#allocation12]
      %v324 = vlaneseq
      %v325 = vand.u32 %v324, 127
      %vm326 = vcmp.ge.s32.totalorder %v325, 0
      %vm327 = vcmp.lt.s32.totalorder %v325, 12
      %vm328 = vmand %vm326, %vm327
      %v329 = vld [vmem:[%s323] sm:$0xff]
      %v330 = vsel %vm328, %v329, 0.0
      %v331 = vmul.f32 %v330, %v330
      %vm334 = vcmp.eq.s32.totalorder %v322, %v319
      %v335 = vsel %vm334, 0.0, %v331
      %s336 = scalar_lea.vmem %s323, 8
      %v337 = vld [vmem:[%s336] sm:$0xf]
      %v338 = vsel %vm328, %v337, 0.0
      %v339 = vmul.f32 %v338, %v338
      %v341 = vadd.s32 %v322, 8
      %vm342 = vcmp.eq.s32.totalorder %v341, %v319
      %v343 = vsel %vm342, 0.0, %v339
      %v344 = vadd.f32 %v335, %v343
      %v345 = vadd.f32 %v331, %v339
      %v346 = vlaneseq
      %v347 = vand.u32 %v346, 127
      %v348 = vmov %v347
      %v349 = vlaneseq
      %v350 = vshrl.u32 %v349, 7
      %v351 = vmov %v350
      %s352 = smov [#allocation13]
      %v353 = vlaneseq
      %v354 = vand.u32 %v353, 127
      %vm355 = vcmp.ge.s32.totalorder %v354, 0
      %vm356 = vcmp.lt.s32.totalorder %v354, 12
      %vm357 = vmand %vm355, %vm356
      %v358 = vld [vmem:[%s352] sm:$0xff]
      %v359 = vsel %vm357, %v358, 0.0
      %v360 = vmul.f32 %v359, %v359
      %v361 = vadd.f32 %v344, %v360
      %v362 = vadd.f32 %v345, %v360
      %s363 = scalar_lea.vmem %s352, 8
      %v364 = vld [vmem:[%s363] sm:$0xf]
      %v365 = vsel %vm357, %v364, 0.0
      %v366 = vmul.f32 %v365, %v365
      %v367 = vadd.f32 %v361, %v366
      %v368 = vadd.f32 %v362, %v366
      %v369 = vlaneseq
      %v370 = vand.u32 %v369, 127
      %v371 = vmov %v370
      %v372 = vlaneseq
      %v373 = vshrl.u32 %v372, 7
      %v374 = vmov %v373
      %s375 = smov [#allocation14]
      %v376 = vlaneseq
      %v377 = vand.u32 %v376, 127
      %vm378 = vcmp.ge.s32.totalorder %v377, 0
      %vm379 = vcmp.lt.s32.totalorder %v377, 12
      %vm380 = vmand %vm378, %vm379
      %v381 = vld [vmem:[%s375] sm:$0xff]
      %v382 = vsel %vm380, %v381, 0.0
      %v383 = vmul.f32 %v382, %v382
      %v384 = vadd.f32 %v367, %v383
      %v385 = vadd.f32 %v368, %v383
      %s386 = scalar_lea.vmem %s375, 8
      %v387 = vld [vmem:[%s386] sm:$0xf]
      %v388 = vsel %vm380, %v387, 0.0
      %v389 = vmul.f32 %v388, %v388
      %v390 = vadd.f32 %v384, %v389
      %v391 = vadd.f32 %v385, %v389
      %v392 = vlaneseq
      %v393 = vand.u32 %v392, 127
      %v394 = vmov %v393
      %v395 = vlaneseq
      %v396 = vshrl.u32 %v395, 7
      %v397 = vmov %v396
      %s398 = smov [#allocation15]
      %v399 = vlaneseq
      %v400 = vand.u32 %v399, 127
      %vm401 = vcmp.ge.s32.totalorder %v400, 0
      %vm402 = vcmp.lt.s32.totalorder %v400, 12
      %vm403 = vmand %vm401, %vm402
      %v404 = vld [vmem:[%s398] sm:$0xff]
      %v405 = vsel %vm403, %v404, 0.0
      %v406 = vmul.f32 %v405, %v405
      %vm409 = vcmp.eq.s32.totalorder %v397, %v394
      %v410 = vsel %vm409, 0.0, %v406
      %v411 = vadd.f32 %v390, %v410
      %v412 = vadd.f32 %v391, %v406
      %s413 = scalar_lea.vmem %s398, 8
      %v414 = vld [vmem:[%s413] sm:$0xf]
      %v415 = vsel %vm403, %v414, 0.0
      %v416 = vmul.f32 %v415, %v415
      %v418 = vadd.s32 %v397, 8
      %vm419 = vcmp.eq.s32.totalorder %v418, %v394
      %v420 = vsel %vm419, 0.0, %v416
      %v421 = vadd.f32 %v411, %v420
      %v422 = vadd.f32 %v412, %v416
      %423 = vadd.xlane.f32.xlu0 %v422
      %v424 = vpop.xlane.xlu0 %423
      %v425 = vrot.slane %v424, 4
      %v426 = vadd.f32 %v424, %v425
      %v427 = vrot.slane %v426, 2
      %v428 = vadd.f32 %v426, %v427
      %v429 = vrot.slane %v428, 1
      %v430 = vadd.f32 %v428, %v429
      %431 = vadd.xlane.f32.xlu0 %v421
      %v432 = vpop.xlane.xlu0 %431
      %v433 = vrot.slane %v432, 4
      %v434 = vadd.f32 %v432, %v433
      %v435 = vrot.slane %v434, 2
      %v436 = vadd.f32 %v434, %v435
      %v437 = vrot.slane %v436, 1
      %v438 = vadd.f32 %v436, %v437
      %s439 = vtos %v438
      %s440 = vtos %v430
      %s441 = smul.f32 1e-10, %s440
      %p442 = scmp.le.f32.partialorder %s439, %s441
      %p443 = scmp.ge.s32.totalorder %s316, 15
      %p444 = por %p442, %p443
    $region92: #{custom-call.6} parent=1 // loop_header_branch
      %1256 = sbr.rel (%p444) target = $region96
    $region93: #{custom-call.6} parent=1 // loop_body
      loop: start=0, step=1, limit=23
      $region97: #{custom-call.6} parent=93 // loop_pre_header
        _
      $region98: #{custom-call.6} parent=93 // loop_header
        %s446 = sphi 0, %s450
        %p447 = scmp.ge.s32.totalorder %s446, 23
      $region99: #{custom-call.6} parent=93 // loop_header_branch
        %449 = sbr.rel (%p447) target = $region103
      $region100: #{custom-call.6} parent=93 // loop_body
        #allocation16 [shape = 'f32[1024]{0}', space=vmem, size = 0x1000, scoped, tag = 'a_tl_diag vmem']
        #allocation17 [shape = 'f32[1024]{0}', space=vmem, size = 0x1000, scoped, tag = 'a_tr_diag vmem']
        #allocation18 [shape = 'f32[1024]{0}', space=vmem, size = 0x1000, scoped, tag = 'a_br_diag vmem']
        #allocation19 [shape = 'f32[1024]{0}', space=vmem, size = 0x1000, scoped, tag = 'rt1 vmem']
        #allocation20 [shape = 'f32[1024]{0}', space=vmem, size = 0x1000, scoped, tag = 'rt2 vmem']
        #allocation21 [shape = 'f32[1024]{0}', space=vmem, size = 0x1000, scoped, tag = 'c vmem']
        #allocation22 [shape = 'f32[1024]{0}', space=vmem, size = 0x1000, scoped, tag = 's vmem']
        #allocation23 [shape = 'f32[8192]{0}', space=vmem, size = 0x8000, scoped, tag = 'c broadcast']
        #allocation24 [shape = 'f32[8192]{0}', space=vmem, size = 0x8000, scoped, tag = 's broadcast']
        %s451 = smov [#allocation12]
        %s452 = smov [#allocation16]
        %v453 = vlaneseq
        %v454 = vand.u32 %v453, 127
        %v455 = vmov %v454
        %v456 = vlaneseq
        %v457 = vshrl.u32 %v456, 7
        %v458 = vmov %v457
        %v459 = vld [vmem:[%s451] sm:$0xff]
        %vm462 = vcmp.eq.s32.totalorder %v458, %v455
        %v463 = vsel %vm462, %v459, 0.0
        %s464 = scalar_lea.vmem %s451, 8
        %v465 = vld [vmem:[%s464] sm:$0xf]
        %v467 = vadd.s32 %v458, 8
        %vm468 = vcmp.eq.s32.totalorder %v467, %v455
        %v469 = vsel %vm468, %v465, %v463
        %v470 = vrot.slane %v469, 4
        %v471 = vadd.f32 %v469, %v470
        %v472 = vrot.slane %v471, 2
        %v473 = vadd.f32 %v471, %v472
        %v474 = vrot.slane %v473, 1
        %v475 = vadd.f32 %v473, %v474
        %476 = vst [vmem:[%s452] sm:$0x1] %v475
        %s477 = smov [#allocation13]
        %s478 = smov [#allocation17]
        %v479 = vlaneseq
        %v480 = vand.u32 %v479, 127
        %v481 = vmov %v480
        %v482 = vlaneseq
        %v483 = vshrl.u32 %v482, 7
        %v484 = vmov %v483
        %v485 = vld [vmem:[%s477] sm:$0xff]
        %vm488 = vcmp.eq.s32.totalorder %v484, %v481
        %v489 = vsel %vm488, %v485, 0.0
        %s490 = scalar_lea.vmem %s477, 8
        %v491 = vld [vmem:[%s490] sm:$0xf]
        %v493 = vadd.s32 %v484, 8
        %vm494 = vcmp.eq.s32.totalorder %v493, %v481
        %v495 = vsel %vm494, %v491, %v489
        %v496 = vrot.slane %v495, 4
        %v497 = vadd.f32 %v495, %v496
        %v498 = vrot.slane %v497, 2
        %v499 = vadd.f32 %v497, %v498
        %v500 = vrot.slane %v499, 1
        %v501 = vadd.f32 %v499, %v500
        %502 = vst [vmem:[%s478] sm:$0x1] %v501
        %s503 = smov [#allocation15]
        %s504 = smov [#allocation18]
        %v505 = vlaneseq
        %v506 = vand.u32 %v505, 127
        %v507 = vmov %v506
        %v508 = vlaneseq
        %v509 = vshrl.u32 %v508, 7
        %v510 = vmov %v509
        %v511 = vld [vmem:[%s503] sm:$0xff]
        %vm514 = vcmp.eq.s32.totalorder %v510, %v507
        %v515 = vsel %vm514, %v511, 0.0
        %s516 = scalar_lea.vmem %s503, 8
        %v517 = vld [vmem:[%s516] sm:$0xf]
        %v519 = vadd.s32 %v510, 8
        %vm520 = vcmp.eq.s32.totalorder %v519, %v507
        %v521 = vsel %vm520, %v517, %v515
        %v522 = vrot.slane %v521, 4
        %v523 = vadd.f32 %v521, %v522
        %v524 = vrot.slane %v523, 2
        %v525 = vadd.f32 %v523, %v524
        %v526 = vrot.slane %v525, 1
        %v527 = vadd.f32 %v525, %v526
        %528 = vst [vmem:[%s504] sm:$0x1] %v527
        %s529 = smov [#allocation21]
        %s530 = smov [#allocation22]
        %s531 = smov [#allocation16]
        %v532 = vld [vmem:[%s531] sm:$0xff]
        %s533 = smov [#allocation17]
        %v534 = vld [vmem:[%s533] sm:$0xff]
        %s535 = smov [#allocation18]
        %v536 = vld [vmem:[%s535] sm:$0xff]
        %v537 = vsub.f32 %v536, %v532
        %v538 = vmul.f32 2.0, %v534
        %v539 = vrcp.pop %v538
        %v540 = vmul.f32 %v538, %v539
        %v541 = vsub.f32 1.0, %v540
        %v542 = vmul.f32 %v539, %v541
        %v543 = vadd.f32 %v539, %v542
        %vm544 = vweird.f32 %v538
        %vm545 = vweird.f32 %v539
        %vm546 = vmor %vm544, %vm545
        %v547 = vsel %vm546, %v539, %v543
        %v548 = vand.u32 2147483647, %v538
        %vm549 = vcmp.eq.f32.partialorder %v548, 8.507059e+37
        %v550 = vand.u32 %v538, 2147483648
        %v551 = vor.u32 1.1754944e-38, %v550
        %v552 = vsel %vm549, %v551, %v547
        %v553 = vmul.f32 %v537, %v552
        %vm554 = vcmp.ge.f32.partialorder %v553, 0.0
        %v555 = vmul.f32 %v553, %v553
        %v556 = vadd.f32 1.0, %v555
        %v557 = vrsqrt.pop %v556
        %v558 = vmul.f32 %v557, %v556
        %v559 = vmul.f32 %v558, %v557
        %v560 = vmul.f32 0.5, %v559
        %v561 = vsub.f32 1.5, %v560
        %v562 = vmul.f32 %v557, %v561
        %v563 = vmul.f32 %v556, %v562
        %vm564 = vcmp.eq.f32.partialorder %v556, inf
        %v565 = vsel %vm564, %v556, %v563
        %vm566 = vcmp.eq.f32.partialorder %v556, 0.0
        %v567 = vand.u32 %v556, 2147483648
        %v568 = vsel %vm566, %v567, %v565
        %v569 = vxor.u32 %v568, 2147483648
        %v570 = vsel %vm554, %v568, %v569
        %v571 = vadd.f32 %v553, %v570
        %v572 = vrcp.pop %v571
        %v573 = vmul.f32 %v571, %v572
        %v574 = vsub.f32 1.0, %v573
        %v575 = vmul.f32 %v572, %v574
        %v576 = vadd.f32 %v572, %v575
        %vm577 = vweird.f32 %v571
        %vm578 = vweird.f32 %v572
        %vm579 = vmor %vm577, %vm578
        %v580 = vsel %vm579, %v572, %v576
        %v581 = vand.u32 2147483647, %v571
        %vm582 = vcmp.eq.f32.partialorder %v581, 8.507059e+37
        %v583 = vand.u32 %v571, 2147483648
        %v584 = vor.u32 1.1754944e-38, %v583
        %v585 = vsel %vm582, %v584, %v580
        %v586 = vand.u32 2147483647, %v532
        %v587 = vand.u32 2147483647, %v534
        %v588 = vand.u32 2147483647, %v536
        %v589 = vmin.f32 %v586, %v588
        %v590 = vmul.f32 1.1920929e-08, %v589
        %vm591 = vcmp.le.f32.partialorder %v587, %v590
        %v592 = vsel %vm591, 0.0, %v585
        %v593 = vmul.f32 %v592, %v592
        %v594 = vadd.f32 1.0, %v593
        %v595 = vrsqrt.pop %v594
        %v596 = vmul.f32 %v595, %v594
        %v597 = vmul.f32 %v596, %v595
        %v598 = vmul.f32 0.5, %v597
        %v599 = vsub.f32 1.5, %v598
        %v600 = vmul.f32 %v595, %v599
        %vm601 = vweird.f32 %v594
        %vm602 = vweird.f32 %v595
        %vm603 = vmor %vm601, %vm602
        %v604 = vsel %vm603, %v595, %v600
        %v605 = vmul.f32 %v592, %v604
        %v606 = vmul.f32 %v592, %v534
        %v607 = vsub.f32 %v532, %v606
        %v608 = vmul.f32 %v592, %v534
        %v609 = vadd.f32 %v536, %v608
        %s610 = smov [#allocation19]
        %611 = vst [vmem:[%s610] sm:$0xff] %v607
        %s612 = smov [#allocation20]
        %613 = vst [vmem:[%s612] sm:$0xff] %v609
        %s614 = smov %s529
        %615 = vst [vmem:[%s614] sm:$0xff] %v604
        %s616 = smov %s530
        %617 = vst [vmem:[%s616] sm:$0xff] %v605
        %s618 = smov [#allocation21]
        %v619 = vld [vmem:[%s618] ss:$0 sm:$0xff]
        %v620 = vlaneseq
        %v621 = vand.u32 %v620, 127
        %v622 = vmov %v621
        %v623 = vlaneseq
        %v624 = vshrl.u32 %v623, 7
        %v625 = vmov %v624
        %vm627 = vcmp.eq.s32.totalorder %v625, %v622
        %v628 = vsel %vm627, %v619, 0.0
        %629 = vadd.xlane.f32.xlu0 %v628
        %v630 = vpop.xlane.xlu0 %629
        %s631 = smov [#allocation23]
        %632 = vst [vmem:[%s631] sm:$0xff] %v630
        %s633 = smov [#allocation21]
        %v634 = vld [vmem:[%s633] ss:$0 sm:$0xff]
        %v635 = vlaneseq
        %v636 = vand.u32 %v635, 127
        %v637 = vmov %v636
        %v638 = vlaneseq
        %v639 = vshrl.u32 %v638, 7
        %v640 = vmov %v639
        %v641 = vadd.s32 %v640, 8
        %vm642 = vcmp.eq.s32.totalorder %v641, %v637
        %v643 = vsel %vm642, %v634, 0.0
        %644 = vadd.xlane.f32.xlu0 %v643
        %v645 = vpop.xlane.xlu0 %644
        %s646 = smov [#allocation23]
        %s647 = scalar_lea.vmem %s646, 8
        %648 = vst [vmem:[%s647] sm:$0xff] %v645
        %s649 = smov [#allocation22]
        %v650 = vld [vmem:[%s649] ss:$0 sm:$0xff]
        %v651 = vlaneseq
        %v652 = vand.u32 %v651, 127
        %v653 = vmov %v652
        %v654 = vlaneseq
        %v655 = vshrl.u32 %v654, 7
        %v656 = vmov %v655
        %vm658 = vcmp.eq.s32.totalorder %v656, %v653
        %v659 = vsel %vm658, %v650, 0.0
        %660 = vadd.xlane.f32.xlu0 %v659
        %v661 = vpop.xlane.xlu0 %660
        %s662 = smov [#allocation24]
        %663 = vst [vmem:[%s662] sm:$0xff] %v661
        %s664 = smov [#allocation22]
        %v665 = vld [vmem:[%s664] ss:$0 sm:$0xff]
        %v666 = vlaneseq
        %v667 = vand.u32 %v666, 127
        %v668 = vmov %v667
        %v669 = vlaneseq
        %v670 = vshrl.u32 %v669, 7
        %v671 = vmov %v670
        %v672 = vadd.s32 %v671, 8
        %vm673 = vcmp.eq.s32.totalorder %v672, %v668
        %v674 = vsel %vm673, %v665, 0.0
        %675 = vadd.xlane.f32.xlu0 %v674
        %v676 = vpop.xlane.xlu0 %675
        %s677 = smov [#allocation24]
        %s678 = scalar_lea.vmem %s677, 8
        %679 = vst [vmem:[%s678] sm:$0xff] %v676
        %s680 = smov [#allocation23]
        %v681 = vld [vmem:[%s680] sm:$0xff]
        %s682 = smov [#allocation24]
        %v683 = vld [vmem:[%s682] sm:$0xff]
        %s684 = smov [#allocation12]
        %s685 = smov [#allocation13]
        %s686 = smov [#allocation14]
        %s687 = smov [#allocation15]
        %v688 = vld [vmem:[%s684] sm:$0xff]
        %v689 = vld [vmem:[%s685] sm:$0xff]
        %v690 = vld [vmem:[%s686] sm:$0xff]
        %v691 = vld [vmem:[%s687] sm:$0xff]
        %v692 = vmul.f32 %v681, %v688
        %v693 = vmul.f32 %v683, %v690
        %v694 = vsub.f32 %v692, %v693
        %v695 = vmul.f32 %v681, %v689
        %v696 = vmul.f32 %v683, %v691
        %v697 = vsub.f32 %v695, %v696
        %v698 = vmul.f32 %v683, %v688
        %v699 = vmul.f32 %v681, %v690
        %v700 = vadd.f32 %v698, %v699
        %v701 = vmul.f32 %v683, %v689
        %v702 = vmul.f32 %v681, %v691
        %v703 = vadd.f32 %v701, %v702
        %704 = vst [vmem:[%s684] sm:$0xff] %v694
        %705 = vst [vmem:[%s685] sm:$0xff] %v697
        %706 = vst [vmem:[%s686] sm:$0xff] %v700
        %707 = vst [vmem:[%s687] sm:$0xff] %v703
        %s708 = smov [#allocation23]
        %s709 = scalar_lea.vmem %s708, 8
        %v710 = vld [vmem:[%s709] sm:$0xff]
        %s711 = smov [#allocation24]
        %s712 = scalar_lea.vmem %s711, 8
        %v713 = vld [vmem:[%s712] sm:$0xff]
        %s714 = smov [#allocation12]
        %s715 = scalar_lea.vmem %s714, 8
        %s716 = smov [#allocation13]
        %s717 = scalar_lea.vmem %s716, 8
        %s718 = smov [#allocation14]
        %s719 = scalar_lea.vmem %s718, 8
        %s720 = smov [#allocation15]
        %s721 = scalar_lea.vmem %s720, 8
        %v722 = vld [vmem:[%s715] sm:$0xf]
        %v723 = vld [vmem:[%s717] sm:$0xf]
        %v724 = vld [vmem:[%s719] sm:$0xf]
        %v725 = vld [vmem:[%s721] sm:$0xf]
        %v726 = vmul.f32 %v710, %v722
        %v727 = vmul.f32 %v713, %v724
        %v728 = vsub.f32 %v726, %v727
        %v729 = vmul.f32 %v710, %v723
        %v730 = vmul.f32 %v713, %v725
        %v731 = vsub.f32 %v729, %v730
        %v732 = vmul.f32 %v713, %v722
        %v733 = vmul.f32 %v710, %v724
        %v734 = vadd.f32 %v732, %v733
        %v735 = vmul.f32 %v713, %v723
        %v736 = vmul.f32 %v710, %v725
        %v737 = vadd.f32 %v735, %v736
        %738 = vst [vmem:[%s715] sm:$0xf] %v728
        %739 = vst [vmem:[%s717] sm:$0xf] %v731
        %740 = vst [vmem:[%s719] sm:$0xf] %v734
        %741 = vst [vmem:[%s721] sm:$0xf] %v737
        %s742 = smov [#allocation21]
        %v743 = vld [vmem:[%s742] ss:$0 sm:$0xff]
        %s744 = smov [#allocation22]
        %v745 = vld [vmem:[%s744] ss:$0 sm:$0xff]
        %s746 = smov [#allocation12]
        %s747 = smov [#allocation13]
        %s748 = smov [#allocation14]
        %s749 = smov [#allocation15]
        %v750 = vld [vmem:[%s746] sm:$0xff]
        %v751 = vld [vmem:[%s747] sm:$0xff]
        %v752 = vld [vmem:[%s748] sm:$0xff]
        %v753 = vld [vmem:[%s749] sm:$0xff]
        %v754 = vmul.f32 %v743, %v750
        %v755 = vmul.f32 %v745, %v751
        %v756 = vsub.f32 %v754, %v755
        %v757 = vmul.f32 %v745, %v750
        %v758 = vmul.f32 %v743, %v751
        %v759 = vadd.f32 %v757, %v758
        %v760 = vmul.f32 %v743, %v752
        %v761 = vmul.f32 %v745, %v753
        %v762 = vsub.f32 %v760, %v761
        %v763 = vmul.f32 %v745, %v752
        %v764 = vmul.f32 %v743, %v753
        %v765 = vadd.f32 %v763, %v764
        %766 = vst [vmem:[%s746] sm:$0xff] %v756
        %767 = vst [vmem:[%s747] sm:$0xff] %v759
        %768 = vst [vmem:[%s748] sm:$0xff] %v762
        %769 = vst [vmem:[%s749] sm:$0xff] %v765
        %s770 = smov [#allocation12]
        %s771 = scalar_lea.vmem %s770, 8
        %s772 = smov [#allocation13]
        %s773 = scalar_lea.vmem %s772, 8
        %s774 = smov [#allocation14]
        %s775 = scalar_lea.vmem %s774, 8
        %s776 = smov [#allocation15]
        %s777 = scalar_lea.vmem %s776, 8
        %v778 = vld [vmem:[%s771] sm:$0xf]
        %v779 = vld [vmem:[%s773] sm:$0xf]
        %v780 = vld [vmem:[%s775] sm:$0xf]
        %v781 = vld [vmem:[%s777] sm:$0xf]
        %v782 = vmul.f32 %v743, %v778
        %v783 = vmul.f32 %v745, %v779
        %v784 = vsub.f32 %v782, %v783
        %v785 = vmul.f32 %v745, %v778
        %v786 = vmul.f32 %v743, %v779
        %v787 = vadd.f32 %v785, %v786
        %v788 = vmul.f32 %v743, %v780
        %v789 = vmul.f32 %v745, %v781
        %v790 = vsub.f32 %v788, %v789
        %v791 = vmul.f32 %v745, %v780
        %v792 = vmul.f32 %v743, %v781
        %v793 = vadd.f32 %v791, %v792
        %794 = vst [vmem:[%s771] sm:$0xf] %v784
        %795 = vst [vmem:[%s773] sm:$0xf] %v787
        %796 = vst [vmem:[%s775] sm:$0xf] %v790
        %797 = vst [vmem:[%s777] sm:$0xf] %v793
        %s798 = smov [#allocation12]
        %s799 = smov [#allocation19]
        %v800 = vlaneseq
        %v801 = vand.u32 %v800, 127
        %v802 = vmov %v801
        %v803 = vlaneseq
        %v804 = vshrl.u32 %v803, 7
        %v805 = vmov %v804
        %v806 = vld [vmem:[%s799] ss:$0 sm:$0xff]
        %v807 = vld [vmem:[%s798] sm:$0xff]
        %vm810 = vcmp.eq.s32.totalorder %v805, %v802
        %v811 = vsel %vm810, %v806, %v807
        %812 = vst [vmem:[%s798] sm:$0xff] %v811
        %v813 = vld [vmem:[%s799] ss:$0 sm:$0xff]
        %s814 = scalar_lea.vmem %s798, 8
        %v815 = vld [vmem:[%s814] sm:$0xf]
        %v817 = vadd.s32 %v805, 8
        %vm818 = vcmp.eq.s32.totalorder %v817, %v802
        %v819 = vsel %vm818, %v813, %v815
        %820 = vst [vmem:[%s814] sm:$0xf] %v819
        %s821 = smov [#allocation13]
        %v822 = vlaneseq
        %v823 = vand.u32 %v822, 127
        %v824 = vmov %v823
        %v825 = vlaneseq
        %v826 = vshrl.u32 %v825, 7
        %v827 = vmov %v826
        %v828 = vld [vmem:[%s821] sm:$0xff]
        %vm831 = vcmp.eq.s32.totalorder %v827, %v824
        %v832 = vsel %vm831, 0.0, %v828
        %833 = vst [vmem:[%s821] sm:$0xff] %v832
        %s834 = scalar_lea.vmem %s821, 8
        %v835 = vld [vmem:[%s834] sm:$0xf]
        %v837 = vadd.s32 %v827, 8
        %vm838 = vcmp.eq.s32.totalorder %v837, %v824
        %v839 = vsel %vm838, 0.0, %v835
        %840 = vst [vmem:[%s834] sm:$0xf] %v839
        %s841 = smov [#allocation14]
        %v842 = vlaneseq
        %v843 = vand.u32 %v842, 127
        %v844 = vmov %v843
        %v845 = vlaneseq
        %v846 = vshrl.u32 %v845, 7
        %v847 = vmov %v846
        %v848 = vld [vmem:[%s841] sm:$0xff]
        %vm851 = vcmp.eq.s32.totalorder %v847, %v844
        %v852 = vsel %vm851, 0.0, %v848
        %853 = vst [vmem:[%s841] sm:$0xff] %v852
        %s854 = scalar_lea.vmem %s841, 8
        %v855 = vld [vmem:[%s854] sm:$0xf]
        %v857 = vadd.s32 %v847, 8
        %vm858 = vcmp.eq.s32.totalorder %v857, %v844
        %v859 = vsel %vm858, 0.0, %v855
        %860 = vst [vmem:[%s854] sm:$0xf] %v859
        %s861 = smov [#allocation15]
        %s862 = smov [#allocation20]
        %v863 = vlaneseq
        %v864 = vand.u32 %v863, 127
        %v865 = vmov %v864
        %v866 = vlaneseq
        %v867 = vshrl.u32 %v866, 7
        %v868 = vmov %v867
        %v869 = vld [vmem:[%s862] ss:$0 sm:$0xff]
        %v870 = vld [vmem:[%s861] sm:$0xff]
        %vm873 = vcmp.eq.s32.totalorder %v868, %v865
        %v874 = vsel %vm873, %v869, %v870
        %875 = vst [vmem:[%s861] sm:$0xff] %v874
        %v876 = vld [vmem:[%s862] ss:$0 sm:$0xff]
        %s877 = scalar_lea.vmem %s861, 8
        %v878 = vld [vmem:[%s877] sm:$0xf]
        %v880 = vadd.s32 %v868, 8
        %vm881 = vcmp.eq.s32.totalorder %v880, %v865
        %v882 = vsel %vm881, %v876, %v878
        %883 = vst [vmem:[%s877] sm:$0xf] %v882
        %s884 = smov [#allocation12]
        %s885 = smov [#allocation13]
        %v886 = vld [vmem:[%s885] sm:$0xff]
        %887 = vrot.lane.b32.xlu0 %v886, 1
        %v888 = vpop.permute.xlu0 %887
        %v889 = vld [vmem:[%s884] sm:$0xff]
        %v890 = vld [vmem:[%s884] sm:$0xff]
        %891 = vrot.lane.b32.xlu0 %v890, 1
        %v892 = vpop.permute.xlu0 %891
        %v893 = vlaneseq
        %v894 = vand.u32 %v893, 127
        %vm895 = vcmp.eq.s32.totalorder %v894, 0
        %v896 = vsel %vm895, %v890, %v892
        %v897 = vlaneseq
        %v898 = vand.u32 %v897, 127
        %vm899 = vcmp.eq.s32.totalorder %v898, 1
        %v900 = vsel %vm899, %v888, %v896
        %v901 = vlaneseq
        %v902 = vand.u32 %v901, 127
        %vm903 = vcmp.ge.s32.totalorder %v902, 0
        %vm904 = vcmp.lt.s32.totalorder %v902, 12
        %vm905 = vmand %vm903, %vm904
        %v906 = vsel %vm905, %v900, 0.0
        %v907 = vld [vmem:[%s885] sm:$0xff]
        %908 = vrot.lane.b32.xlu0 %v907, 127
        %v909 = vpop.permute.xlu0 %908
        %v910 = vlaneseq
        %v911 = vand.u32 %v910, 127
        %vm912 = vcmp.eq.s32.totalorder %v911, 11
        %v913 = vsel %vm912, %v889, %v909
        %s914 = smov [#allocation12]
        %s915 = scalar_lea.vmem %s914, 8
        %s916 = smov [#allocation13]
        %s917 = scalar_lea.vmem %s916, 8
        %v918 = vld [vmem:[%s917] sm:$0xf]
        %919 = vrot.lane.b32.xlu0 %v918, 1
        %v920 = vpop.permute.xlu0 %919
        %v921 = vld [vmem:[%s915] sm:$0xf]
        %v922 = vld [vmem:[%s915] sm:$0xf]
        %923 = vrot.lane.b32.xlu0 %v922, 1
        %v924 = vpop.permute.xlu0 %923
        %v925 = vlaneseq
        %v926 = vand.u32 %v925, 127
        %vm927 = vcmp.eq.s32.totalorder %v926, 0
        %v928 = vsel %vm927, %v922, %v924
        %v929 = vlaneseq
        %v930 = vand.u32 %v929, 127
        %vm931 = vcmp.eq.s32.totalorder %v930, 1
        %v932 = vsel %vm931, %v920, %v928
        %v933 = vlaneseq
        %v934 = vand.u32 %v933, 127
        %vm935 = vcmp.ge.s32.totalorder %v934, 0
        %vm936 = vcmp.lt.s32.totalorder %v934, 12
        %vm937 = vmand %vm935, %vm936
        %v938 = vsel %vm937, %v932, 0.0
        %v939 = vld [vmem:[%s917] sm:$0xf]
        %940 = vrot.lane.b32.xlu0 %v939, 127
        %v941 = vpop.permute.xlu0 %940
        %v942 = vlaneseq
        %v943 = vand.u32 %v942, 127
        %vm944 = vcmp.eq.s32.totalorder %v943, 11
        %v945 = vsel %vm944, %v921, %v941
        %946 = vst [vmem:[%s884] sm:$0xff] %v906
        %947 = vst [vmem:[%s885] sm:$0xff] %v913
        %948 = vst [vmem:[%s915] sm:$0xf] %v938
        %949 = vst [vmem:[%s917] sm:$0xf] %v945
        %s950 = smov [#allocation14]
        %s951 = smov [#allocation15]
        %v952 = vld [vmem:[%s951] sm:$0xff]
        %953 = vrot.lane.b32.xlu0 %v952, 1
        %v954 = vpop.permute.xlu0 %953
        %v955 = vld [vmem:[%s950] sm:$0xff]
        %v956 = vld [vmem:[%s950] sm:$0xff]
        %957 = vrot.lane.b32.xlu0 %v956, 1
        %v958 = vpop.permute.xlu0 %957
        %v959 = vlaneseq
        %v960 = vand.u32 %v959, 127
        %vm961 = vcmp.eq.s32.totalorder %v960, 0
        %v962 = vsel %vm961, %v956, %v958
        %v963 = vlaneseq
        %v964 = vand.u32 %v963, 127
        %vm965 = vcmp.eq.s32.totalorder %v964, 1
        %v966 = vsel %vm965, %v954, %v962
        %v967 = vlaneseq
        %v968 = vand.u32 %v967, 127
        %vm969 = vcmp.ge.s32.totalorder %v968, 0
        %vm970 = vcmp.lt.s32.totalorder %v968, 12
        %vm971 = vmand %vm969, %vm970
        %v972 = vsel %vm971, %v966, 0.0
        %v973 = vld [vmem:[%s951] sm:$0xff]
        %974 = vrot.lane.b32.xlu0 %v973, 127
        %v975 = vpop.permute.xlu0 %974
        %v976 = vlaneseq
        %v977 = vand.u32 %v976, 127
        %vm978 = vcmp.eq.s32.totalorder %v977, 11
        %v979 = vsel %vm978, %v955, %v975
        %s980 = smov [#allocation14]
        %s981 = scalar_lea.vmem %s980, 8
        %s982 = smov [#allocation15]
        %s983 = scalar_lea.vmem %s982, 8
        %v984 = vld [vmem:[%s983] sm:$0xf]
        %985 = vrot.lane.b32.xlu0 %v984, 1
        %v986 = vpop.permute.xlu0 %985
        %v987 = vld [vmem:[%s981] sm:$0xf]
        %v988 = vld [vmem:[%s981] sm:$0xf]
        %989 = vrot.lane.b32.xlu0 %v988, 1
        %v990 = vpop.permute.xlu0 %989
        %v991 = vlaneseq
        %v992 = vand.u32 %v991, 127
        %vm993 = vcmp.eq.s32.totalorder %v992, 0
        %v994 = vsel %vm993, %v988, %v990
        %v995 = vlaneseq
        %v996 = vand.u32 %v995, 127
        %vm997 = vcmp.eq.s32.totalorder %v996, 1
        %v998 = vsel %vm997, %v986, %v994
        %v999 = vlaneseq
        %v1000 = vand.u32 %v999, 127
        %vm1001 = vcmp.ge.s32.totalorder %v1000, 0
        %vm1002 = vcmp.lt.s32.totalorder %v1000, 12
        %vm1003 = vmand %vm1001, %vm1002
        %v1004 = vsel %vm1003, %v998, 0.0
        %v1005 = vld [vmem:[%s983] sm:$0xf]
        %1006 = vrot.lane.b32.xlu0 %v1005, 127
        %v1007 = vpop.permute.xlu0 %1006
        %v1008 = vlaneseq
        %v1009 = vand.u32 %v1008, 127
        %vm1010 = vcmp.eq.s32.totalorder %v1009, 11
        %v1011 = vsel %vm1010, %v987, %v1007
        %1012 = vst [vmem:[%s950] sm:$0xff] %v972
        %1013 = vst [vmem:[%s951] sm:$0xff] %v979
        %1014 = vst [vmem:[%s981] sm:$0xf] %v1004
        %1015 = vst [vmem:[%s983] sm:$0xf] %v1011
        %s1016 = smov [#allocation12]
        %s1017 = smov [#allocation14]
        %v1018 = vld [vmem:[%s1016] ss:$0 sm:$0xff]
        %s1020 = scalar_lea.vmem %s1016, 4294967295
        %v1021 = vld [vmem:[%s1020] sm:$0xfe]
        %v1022 = vlaneseq
        %v1023 = vshrl.u32 %v1022, 7
        %vm1024 = vcmp.eq.s32.totalorder %v1023, 0
        %v1025 = vsel %vm1024, %v1018, %v1021
        %s1026 = scalar_lea.vmem %s1016, 7
        %v1027 = vld [vmem:[%s1026] ss:$0 sm:$0xff]
        %1028 = vst [vmem:[%s1016] sm:$0xff] %v1025
        %s1029 = scalar_lea.vmem %s1016, 8
        %s1031 = scalar_lea.vmem %s1029, 4294967295
        %v1032 = vld [vmem:[%s1031] sm:$0xe]
        %v1033 = vlaneseq
        %v1034 = vshrl.u32 %v1033, 7
        %vm1035 = vcmp.eq.s32.totalorder %v1034, 0
        %v1036 = vsel %vm1035, %v1027, %v1032
        %s1037 = scalar_lea.vmem %s1029, 3
        %v1038 = vld [vmem:[%s1037] ss:$0 sm:$0xff]
        %1039 = vst [vmem:[%s1029] sm:$0xf] %v1036
        %v1040 = vld [vmem:[%s1017] ss:$0 sm:$0xff]
        %s1041 = scalar_lea.vmem %s1016, 1
        %1042 = vst [vmem:[%s1041] sm:$0x1] %v1040
        %s1043 = scalar_lea.vmem %s1017, 8
        %s1044 = scalar_lea.vmem %s1043, 1
        %v1045 = vld [vmem:[%s1044] sm:$0x7]
        %v1046 = vlaneseq
        %v1047 = vshrl.u32 %v1046, 7
        %vm1048 = vcmp.eq.s32.totalorder %v1047, 3
        %v1049 = vsel %vm1048, %v1038, %v1045
        %v1050 = vld [vmem:[%s1043] ss:$0 sm:$0xff]
        %1051 = vst [vmem:[%s1043] sm:$0xf] %v1049
        %s1052 = scalar_lea.vmem %s1017, 1
        %v1053 = vld [vmem:[%s1052] sm:$0x7f]
        %v1054 = vlaneseq
        %v1055 = vshrl.u32 %v1054, 7
        %vm1056 = vcmp.eq.s32.totalorder %v1055, 7
        %v1057 = vsel %vm1056, %v1050, %v1053
        %v1058 = vld [vmem:[%s1017] ss:$0 sm:$0xff]
        %1059 = vst [vmem:[%s1017] sm:$0xff] %v1057
        %s1060 = smov [#allocation13]
        %s1061 = smov [#allocation15]
        %v1062 = vld [vmem:[%s1060] ss:$0 sm:$0xff]
        %s1064 = scalar_lea.vmem %s1060, 4294967295
        %v1065 = vld [vmem:[%s1064] sm:$0xfe]
        %v1066 = vlaneseq
        %v1067 = vshrl.u32 %v1066, 7
        %vm1068 = vcmp.eq.s32.totalorder %v1067, 0
        %v1069 = vsel %vm1068, %v1062, %v1065
        %s1070 = scalar_lea.vmem %s1060, 7
        %v1071 = vld [vmem:[%s1070] ss:$0 sm:$0xff]
        %1072 = vst [vmem:[%s1060] sm:$0xff] %v1069
        %s1073 = scalar_lea.vmem %s1060, 8
        %s1075 = scalar_lea.vmem %s1073, 4294967295
        %v1076 = vld [vmem:[%s1075] sm:$0xe]
        %v1077 = vlaneseq
        %v1078 = vshrl.u32 %v1077, 7
        %vm1079 = vcmp.eq.s32.totalorder %v1078, 0
        %v1080 = vsel %vm1079, %v1071, %v1076
        %s1081 = scalar_lea.vmem %s1073, 3
        %v1082 = vld [vmem:[%s1081] ss:$0 sm:$0xff]
        %1083 = vst [vmem:[%s1073] sm:$0xf] %v1080
        %v1084 = vld [vmem:[%s1061] ss:$0 sm:$0xff]
        %s1085 = scalar_lea.vmem %s1060, 1
        %1086 = vst [vmem:[%s1085] sm:$0x1] %v1084
        %s1087 = scalar_lea.vmem %s1061, 8
        %s1088 = scalar_lea.vmem %s1087, 1
        %v1089 = vld [vmem:[%s1088] sm:$0x7]
        %v1090 = vlaneseq
        %v1091 = vshrl.u32 %v1090, 7
        %vm1092 = vcmp.eq.s32.totalorder %v1091, 3
        %v1093 = vsel %vm1092, %v1082, %v1089
        %v1094 = vld [vmem:[%s1087] ss:$0 sm:$0xff]
        %1095 = vst [vmem:[%s1087] sm:$0xf] %v1093
        %s1096 = scalar_lea.vmem %s1061, 1
        %v1097 = vld [vmem:[%s1096] sm:$0x7f]
        %v1098 = vlaneseq
        %v1099 = vshrl.u32 %v1098, 7
        %vm1100 = vcmp.eq.s32.totalorder %v1099, 7
        %v1101 = vsel %vm1100, %v1094, %v1097
        %v1102 = vld [vmem:[%s1061] ss:$0 sm:$0xff]
        %1103 = vst [vmem:[%s1061] sm:$0xff] %v1101
        %s1104 = smov [#allocation23]
        %v1105 = vld [vmem:[%s1104] sm:$0xff]
        %s1106 = smov [#allocation24]
        %v1107 = vld [vmem:[%s1106] sm:$0xff]
        %s1108 = smov [#allocation8]
        %s1109 = smov [#allocation9]
        %s1110 = smov [#allocation10]
        %s1111 = smov [#allocation11]
        %v1112 = vld [vmem:[%s1108] sm:$0xff]
        %v1113 = vld [vmem:[%s1109] sm:$0xff]
        %v1114 = vld [vmem:[%s1110] sm:$0xff]
        %v1115 = vld [vmem:[%s1111] sm:$0xff]
        %v1116 = vmul.f32 %v1105, %v1112
        %v1117 = vmul.f32 %v1107, %v1114
        %v1118 = vsub.f32 %v1116, %v1117
        %v1119 = vmul.f32 %v1105, %v1113
        %v1120 = vmul.f32 %v1107, %v1115
        %v1121 = vsub.f32 %v1119, %v1120
        %v1122 = vmul.f32 %v1107, %v1112
        %v1123 = vmul.f32 %v1105, %v1114
        %v1124 = vadd.f32 %v1122, %v1123
        %v1125 = vmul.f32 %v1107, %v1113
        %v1126 = vmul.f32 %v1105, %v1115
        %v1127 = vadd.f32 %v1125, %v1126
        %1128 = vst [vmem:[%s1108] sm:$0xff] %v1118
        %1129 = vst [vmem:[%s1109] sm:$0xff] %v1121
        %1130 = vst [vmem:[%s1110] sm:$0xff] %v1124
        %1131 = vst [vmem:[%s1111] sm:$0xff] %v1127
        %s1132 = smov [#allocation23]
        %s1133 = scalar_lea.vmem %s1132, 8
        %v1134 = vld [vmem:[%s1133] sm:$0xff]
        %s1135 = smov [#allocation24]
        %s1136 = scalar_lea.vmem %s1135, 8
        %v1137 = vld [vmem:[%s1136] sm:$0xff]
        %s1138 = smov [#allocation8]
        %s1139 = scalar_lea.vmem %s1138, 8
        %s1140 = smov [#allocation9]
        %s1141 = scalar_lea.vmem %s1140, 8
        %s1142 = smov [#allocation10]
        %s1143 = scalar_lea.vmem %s1142, 8
        %s1144 = smov [#allocation11]
        %s1145 = scalar_lea.vmem %s1144, 8
        %v1146 = vld [vmem:[%s1139] sm:$0xf]
        %v1147 = vld [vmem:[%s1141] sm:$0xf]
        %v1148 = vld [vmem:[%s1143] sm:$0xf]
        %v1149 = vld [vmem:[%s1145] sm:$0xf]
        %v1150 = vmul.f32 %v1134, %v1146
        %v1151 = vmul.f32 %v1137, %v1148
        %v1152 = vsub.f32 %v1150, %v1151
        %v1153 = vmul.f32 %v1134, %v1147
        %v1154 = vmul.f32 %v1137, %v1149
        %v1155 = vsub.f32 %v1153, %v1154
        %v1156 = vmul.f32 %v1137, %v1146
        %v1157 = vmul.f32 %v1134, %v1148
        %v1158 = vadd.f32 %v1156, %v1157
        %v1159 = vmul.f32 %v1137, %v1147
        %v1160 = vmul.f32 %v1134, %v1149
        %v1161 = vadd.f32 %v1159, %v1160
        %1162 = vst [vmem:[%s1139] sm:$0xf] %v1152
        %1163 = vst [vmem:[%s1141] sm:$0xf] %v1155
        %1164 = vst [vmem:[%s1143] sm:$0xf] %v1158
        %1165 = vst [vmem:[%s1145] sm:$0xf] %v1161
        %s1166 = smov [#allocation8]
        %s1167 = smov [#allocation10]
        %v1168 = vld [vmem:[%s1166] ss:$0 sm:$0xff]
        %s1170 = scalar_lea.vmem %s1166, 4294967295
        %v1171 = vld [vmem:[%s1170] sm:$0xfe]
        %v1172 = vlaneseq
        %v1173 = vshrl.u32 %v1172, 7
        %vm1174 = vcmp.eq.s32.totalorder %v1173, 0
        %v1175 = vsel %vm1174, %v1168, %v1171
        %s1176 = scalar_lea.vmem %s1166, 7
        %v1177 = vld [vmem:[%s1176] ss:$0 sm:$0xff]
        %1178 = vst [vmem:[%s1166] sm:$0xff] %v1175
        %s1179 = scalar_lea.vmem %s1166, 8
        %s1181 = scalar_lea.vmem %s1179, 4294967295
        %v1182 = vld [vmem:[%s1181] sm:$0xe]
        %v1183 = vlaneseq
        %v1184 = vshrl.u32 %v1183, 7
        %vm1185 = vcmp.eq.s32.totalorder %v1184, 0
        %v1186 = vsel %vm1185, %v1177, %v1182
        %s1187 = scalar_lea.vmem %s1179, 3
        %v1188 = vld [vmem:[%s1187] ss:$0 sm:$0xff]
        %1189 = vst [vmem:[%s1179] sm:$0xf] %v1186
        %v1190 = vld [vmem:[%s1167] ss:$0 sm:$0xff]
        %s1191 = scalar_lea.vmem %s1166, 1
        %1192 = vst [vmem:[%s1191] sm:$0x1] %v1190
        %s1193 = scalar_lea.vmem %s1167, 8
        %s1194 = scalar_lea.vmem %s1193, 1
        %v1195 = vld [vmem:[%s1194] sm:$0x7]
        %v1196 = vlaneseq
        %v1197 = vshrl.u32 %v1196, 7
        %vm1198 = vcmp.eq.s32.totalorder %v1197, 3
        %v1199 = vsel %vm1198, %v1188, %v1195
        %v1200 = vld [vmem:[%s1193] ss:$0 sm:$0xff]
        %1201 = vst [vmem:[%s1193] sm:$0xf] %v1199
        %s1202 = scalar_lea.vmem %s1167, 1
        %v1203 = vld [vmem:[%s1202] sm:$0x7f]
        %v1204 = vlaneseq
        %v1205 = vshrl.u32 %v1204, 7
        %vm1206 = vcmp.eq.s32.totalorder %v1205, 7
        %v1207 = vsel %vm1206, %v1200, %v1203
        %v1208 = vld [vmem:[%s1167] ss:$0 sm:$0xff]
        %1209 = vst [vmem:[%s1167] sm:$0xff] %v1207
        %s1210 = smov [#allocation9]
        %s1211 = smov [#allocation11]
        %v1212 = vld [vmem:[%s1210] ss:$0 sm:$0xff]
        %s1214 = scalar_lea.vmem %s1210, 4294967295
        %v1215 = vld [vmem:[%s1214] sm:$0xfe]
        %v1216 = vlaneseq
        %v1217 = vshrl.u32 %v1216, 7
        %vm1218 = vcmp.eq.s32.totalorder %v1217, 0
        %v1219 = vsel %vm1218, %v1212, %v1215
        %s1220 = scalar_lea.vmem %s1210, 7
        %v1221 = vld [vmem:[%s1220] ss:$0 sm:$0xff]
        %1222 = vst [vmem:[%s1210] sm:$0xff] %v1219
        %s1223 = scalar_lea.vmem %s1210, 8
        %s1225 = scalar_lea.vmem %s1223, 4294967295
        %v1226 = vld [vmem:[%s1225] sm:$0xe]
        %v1227 = vlaneseq
        %v1228 = vshrl.u32 %v1227, 7
        %vm1229 = vcmp.eq.s32.totalorder %v1228, 0
        %v1230 = vsel %vm1229, %v1221, %v1226
        %s1231 = scalar_lea.vmem %s1223, 3
        %v1232 = vld [vmem:[%s1231] ss:$0 sm:$0xff]
        %1233 = vst [vmem:[%s1223] sm:$0xf] %v1230
        %v1234 = vld [vmem:[%s1211] ss:$0 sm:$0xff]
        %s1235 = scalar_lea.vmem %s1210, 1
        %1236 = vst [vmem:[%s1235] sm:$0x1] %v1234
        %s1237 = scalar_lea.vmem %s1211, 8
        %s1238 = scalar_lea.vmem %s1237, 1
        %v1239 = vld [vmem:[%s1238] sm:$0x7]
        %v1240 = vlaneseq
        %v1241 = vshrl.u32 %v1240, 7
        %vm1242 = vcmp.eq.s32.totalorder %v1241, 3
        %v1243 = vsel %vm1242, %v1232, %v1239
        %v1244 = vld [vmem:[%s1237] ss:$0 sm:$0xff]
        %1245 = vst [vmem:[%s1237] sm:$0xf] %v1243
        %s1246 = scalar_lea.vmem %s1211, 1
        %v1247 = vld [vmem:[%s1246] sm:$0x7f]
        %v1248 = vlaneseq
        %v1249 = vshrl.u32 %v1248, 7
        %vm1250 = vcmp.eq.s32.totalorder %v1249, 7
        %v1251 = vsel %vm1250, %v1244, %v1247
        %v1252 = vld [vmem:[%s1211] ss:$0 sm:$0xff]
        %1253 = vst [vmem:[%s1211] sm:$0xff] %v1251
      $region101: #{custom-call.6} parent=93 // loop_footer
        %s450 = sadd.s32 1, %s446
      $region102: #{custom-call.6} parent=93 // loop_footer_branch
        %445 = sbr.rel target = $region98
      $region103: #{custom-call.6} parent=93 // loop_exit
        _
      %s1254 = sadd.s32 %s316, 1
    $region94: #{custom-call.6} parent=1 // loop_footer
      _
    $region95: #{custom-call.6} parent=1 // loop_footer_branch
      %315 = sbr.rel target = $region91
    $region96: #{custom-call.6} parent=1 // loop_exit
      _
    %s1257 = smov [#allocation12]
    %s1258 = smov [#allocation4]
    %v1259 = vlaneseq
    %v1260 = vand.u32 %v1259, 127
    %v1261 = vmov %v1260
    %v1262 = vlaneseq
    %v1263 = vshrl.u32 %v1262, 7
    %v1264 = vmov %v1263
    %v1265 = vld [vmem:[%s1257] sm:$0xff]
    %vm1268 = vcmp.eq.s32.totalorder %v1264, %v1261
    %v1269 = vsel %vm1268, %v1265, 0.0
    %s1270 = scalar_lea.vmem %s1257, 8
    %v1271 = vld [vmem:[%s1270] sm:$0xf]
    %v1273 = vadd.s32 %v1264, 8
    %vm1274 = vcmp.eq.s32.totalorder %v1273, %v1261
    %v1275 = vsel %vm1274, %v1271, %v1269
    %v1276 = vrot.slane %v1275, 4
    %v1277 = vadd.f32 %v1275, %v1276
    %v1278 = vrot.slane %v1277, 2
    %v1279 = vadd.f32 %v1277, %v1278
    %v1280 = vrot.slane %v1279, 1
    %v1281 = vadd.f32 %v1279, %v1280
    %1282 = vst [vmem:[%s1258] sm:$0x1] %v1281
    %s1283 = smov [#allocation15]
    %s1284 = smov [#allocation6]
    %v1285 = vlaneseq
    %v1286 = vand.u32 %v1285, 127
    %v1287 = vmov %v1286
    %v1288 = vlaneseq
    %v1289 = vshrl.u32 %v1288, 7
    %v1290 = vmov %v1289
    %v1291 = vld [vmem:[%s1283] sm:$0xff]
    %vm1294 = vcmp.eq.s32.totalorder %v1290, %v1287
    %v1295 = vsel %vm1294, %v1291, 0.0
    %s1296 = scalar_lea.vmem %s1283, 8
    %v1297 = vld [vmem:[%s1296] sm:$0xf]
    %v1299 = vadd.s32 %v1290, 8
    %vm1300 = vcmp.eq.s32.totalorder %v1299, %v1287
    %v1301 = vsel %vm1300, %v1297, %v1295
    %v1302 = vrot.slane %v1301, 4
    %v1303 = vadd.f32 %v1301, %v1302
    %v1304 = vrot.slane %v1303, 2
    %v1305 = vadd.f32 %v1303, %v1304
    %v1306 = vrot.slane %v1305, 1
    %v1307 = vadd.f32 %v1305, %v1306
    %1308 = vst [vmem:[%s1284] sm:$0x1] %v1307
    %s1310 = ssub.s32 2, 1
    %v1311 = vld [vmem:[#allocation4] sm:%s1310]
    %s1313 = ssub.s32 2, 1
    %1314 = vst [vmem:[#allocation5] sm:%s1313] %v1311
    %s1316 = ssub.s32 2, 1
    %v1317 = vld [vmem:[#allocation6] sm:%s1316]
    %s1319 = ssub.s32 2, 1
    %1320 = vst [vmem:[#allocation7] sm:%s1319] %v1317
    // Predicated region
    $region104: #{custom-call.6} parent=1 // pred_check
      _
    $region105: #{custom-call.6} parent=1 // pred_check_branch
      %1322 = sbr.rel (0) target = $region107
    $region106: #{custom-call.6} parent=1 // pred_region
      // Predicated region
      $region108: #{custom-call.6} parent=106 // pred_check
        _
      $region109: #{custom-call.6} parent=106 // pred_check_branch
        %1324 = sbr.rel (0) target = $region111
      $region110: #{custom-call.6} parent=106 // pred_region
        %p1326 = scmp.gt.s32.totalorder 0, 0
        // Predicated region
        $region112: #{custom-call.6} parent=110 // pred_check
          %p1327 = pneg %p1326
        $region113: #{custom-call.6} parent=110 // pred_check_branch
          %1329 = sbr.rel (%p1327) target = $region115
        $region114: #{custom-call.6} parent=110 // pred_region
          %s1330 = ssub.s32 0, 1
          %s1331 = smul.u32 %s1330, 8
          %s1332 = scalar_lea.vmem [#allocation5], %s1331
          %v1333 = vld [vmem:[#allocation5] sm:$0xff]
          // While loop
          $region116: #{custom-call.6} parent=114 // loop_pre_header
            _
          $region117: #{custom-call.6} parent=114 // loop_header
            %s1334 = sphi [#allocation5], %s1356
            %s1335 = sphi %s4, %s1357
            %v1336 = vphi %v1333, %v1358
            %s1337 = ssub.s32 %s1332, 64
            %p1338 = scmp.gt.s32.totalorder %s1334, %s1337
          $region118: #{custom-call.6} parent=114 // loop_header_branch
            %1340 = sbr.rel (%p1338) target = $region122
          $region119: #{custom-call.6} parent=114 // loop_body
            %1341 = vst [vmem:[%s1335] sm:$0xff] %v1336
            %v1342 = vld [vmem:[%s1334 + $0x8] sm:$0xff]
            %1343 = vst [vmem:[%s1335 + $0x8] sm:$0xff] %v1342
            %v1344 = vld [vmem:[%s1334 + $0x10] sm:$0xff]
            %1345 = vst [vmem:[%s1335 + $0x10] sm:$0xff] %v1344
            %v1346 = vld [vmem:[%s1334 + $0x18] sm:$0xff]
            %1347 = vst [vmem:[%s1335 + $0x18] sm:$0xff] %v1346
            %v1348 = vld [vmem:[%s1334 + $0x20] sm:$0xff]
            %1349 = vst [vmem:[%s1335 + $0x20] sm:$0xff] %v1348
            %v1350 = vld [vmem:[%s1334 + $0x28] sm:$0xff]
            %1351 = vst [vmem:[%s1335 + $0x28] sm:$0xff] %v1350
            %v1352 = vld [vmem:[%s1334 + $0x30] sm:$0xff]
            %1353 = vst [vmem:[%s1335 + $0x30] sm:$0xff] %v1352
            %v1354 = vld [vmem:[%s1334 + $0x38] sm:$0xff]
            %1355 = vst [vmem:[%s1335 + $0x38] sm:$0xff] %v1354
          $region120: #{custom-call.6} parent=114 // loop_footer
            %s1356 = scalar_lea.vmem %s1334, 64
            %s1357 = scalar_lea.vmem %s1335, 64
            %v1358 = vld [vmem:[%s1334 + $0x40] sm:$0xff]
          $region121: #{custom-call.6} parent=114 // loop_footer_branch
            %1359 = sbr.rel target = $region117
          $region122: #{custom-call.6} parent=114 // loop_exit
            _
          // While loop
          $region123: #{custom-call.6} parent=114 // loop_pre_header
            _
          $region124: #{custom-call.6} parent=114 // loop_header
            %s1360 = sphi %s1334, %s1368
            %s1361 = sphi %s1335, %s1369
            %v1362 = vphi %v1336, %v1362
            %p1363 = scmp.gt.s32.totalorder %s1360, %s1332
          $region125: #{custom-call.6} parent=114 // loop_header_branch
            %1365 = sbr.rel (%p1363) target = $region129
          $region126: #{custom-call.6} parent=114 // loop_body
            %v1366 = vld [vmem:[%s1360] sm:$0xff]
            %1367 = vst [vmem:[%s1361] sm:$0xff] %v1366
          $region127: #{custom-call.6} parent=114 // loop_footer
            %s1368 = scalar_lea.vmem %s1360, 8
            %s1369 = scalar_lea.vmem %s1361, 8
          $region128: #{custom-call.6} parent=114 // loop_footer_branch
            %1370 = sbr.rel target = $region124
          $region129: #{custom-call.6} parent=114 // loop_exit
            _
        $region115: #{custom-call.6} parent=110 // pred_fallthru
          _
        %s1372 = ssub.s32 2, 1
        %s1373 = smul.u32 0, 8
        %s1374 = scalar_lea.vmem %s4, %s1373
        %s1375 = smul.u32 0, 8
        %s1376 = scalar_lea.vmem [#allocation5], %s1375
        %v1377 = vld [vmem:[%s1376] sm:%s1372]
        %1378 = vst [vmem:[%s1374] sm:%s1372] %v1377
      $region111: #{custom-call.6} parent=106 // pred_fallthru
        _
    $region107: #{custom-call.6} parent=1 // pred_fallthru
      _
    // Predicated region
    $region130: #{custom-call.6} parent=1 // pred_check
      _
    $region131: #{custom-call.6} parent=1 // pred_check_branch
      %1380 = sbr.rel (0) target = $region133
    $region132: #{custom-call.6} parent=1 // pred_region
      // Predicated region
      $region134: #{custom-call.6} parent=132 // pred_check
        _
      $region135: #{custom-call.6} parent=132 // pred_check_branch
        %1382 = sbr.rel (0) target = $region137
      $region136: #{custom-call.6} parent=132 // pred_region
        %p1384 = scmp.gt.s32.totalorder 0, 0
        // Predicated region
        $region138: #{custom-call.6} parent=136 // pred_check
          %p1385 = pneg %p1384
        $region139: #{custom-call.6} parent=136 // pred_check_branch
          %1387 = sbr.rel (%p1385) target = $region141
        $region140: #{custom-call.6} parent=136 // pred_region
          %s1388 = ssub.s32 0, 1
          %s1389 = smul.u32 %s1388, 8
          %s1390 = scalar_lea.vmem [#allocation7], %s1389
          %v1391 = vld [vmem:[#allocation7] sm:$0xff]
          // While loop
          $region142: #{custom-call.6} parent=140 // loop_pre_header
            _
          $region143: #{custom-call.6} parent=140 // loop_header
            %s1392 = sphi [#allocation7], %s1414
            %s1393 = sphi %s5, %s1415
            %v1394 = vphi %v1391, %v1416
            %s1395 = ssub.s32 %s1390, 64
            %p1396 = scmp.gt.s32.totalorder %s1392, %s1395
          $region144: #{custom-call.6} parent=140 // loop_header_branch
            %1398 = sbr.rel (%p1396) target = $region148
          $region145: #{custom-call.6} parent=140 // loop_body
            %1399 = vst [vmem:[%s1393] sm:$0xff] %v1394
            %v1400 = vld [vmem:[%s1392 + $0x8] sm:$0xff]
            %1401 = vst [vmem:[%s1393 + $0x8] sm:$0xff] %v1400
            %v1402 = vld [vmem:[%s1392 + $0x10] sm:$0xff]
            %1403 = vst [vmem:[%s1393 + $0x10] sm:$0xff] %v1402
            %v1404 = vld [vmem:[%s1392 + $0x18] sm:$0xff]
            %1405 = vst [vmem:[%s1393 + $0x18] sm:$0xff] %v1404
            %v1406 = vld [vmem:[%s1392 + $0x20] sm:$0xff]
            %1407 = vst [vmem:[%s1393 + $0x20] sm:$0xff] %v1406
            %v1408 = vld [vmem:[%s1392 + $0x28] sm:$0xff]
            %1409 = vst [vmem:[%s1393 + $0x28] sm:$0xff] %v1408
            %v1410 = vld [vmem:[%s1392 + $0x30] sm:$0xff]
            %1411 = vst [vmem:[%s1393 + $0x30] sm:$0xff] %v1410
            %v1412 = vld [vmem:[%s1392 + $0x38] sm:$0xff]
            %1413 = vst [vmem:[%s1393 + $0x38] sm:$0xff] %v1412
          $region146: #{custom-call.6} parent=140 // loop_footer
            %s1414 = scalar_lea.vmem %s1392, 64
            %s1415 = scalar_lea.vmem %s1393, 64
            %v1416 = vld [vmem:[%s1392 + $0x40] sm:$0xff]
          $region147: #{custom-call.6} parent=140 // loop_footer_branch
            %1417 = sbr.rel target = $region143
          $region148: #{custom-call.6} parent=140 // loop_exit
            _
          // While loop
          $region149: #{custom-call.6} parent=140 // loop_pre_header
            _
          $region150: #{custom-call.6} parent=140 // loop_header
            %s1418 = sphi %s1392, %s1426
            %s1419 = sphi %s1393, %s1427
            %v1420 = vphi %v1394, %v1420
            %p1421 = scmp.gt.s32.totalorder %s1418, %s1390
          $region151: #{custom-call.6} parent=140 // loop_header_branch
            %1423 = sbr.rel (%p1421) target = $region155
          $region152: #{custom-call.6} parent=140 // loop_body
            %v1424 = vld [vmem:[%s1418] sm:$0xff]
            %1425 = vst [vmem:[%s1419] sm:$0xff] %v1424
          $region153: #{custom-call.6} parent=140 // loop_footer
            %s1426 = scalar_lea.vmem %s1418, 8
            %s1427 = scalar_lea.vmem %s1419, 8
          $region154: #{custom-call.6} parent=140 // loop_footer_branch
            %1428 = sbr.rel target = $region150
          $region155: #{custom-call.6} parent=140 // loop_exit
            _
        $region141: #{custom-call.6} parent=136 // pred_fallthru
          _
        %s1430 = ssub.s32 2, 1
        %s1431 = smul.u32 0, 8
        %s1432 = scalar_lea.vmem %s5, %s1431
        %s1433 = smul.u32 0, 8
        %s1434 = scalar_lea.vmem [#allocation7], %s1433
        %v1435 = vld [vmem:[%s1434] sm:%s1430]
        %1436 = vst [vmem:[%s1432] sm:%s1430] %v1435
      $region137: #{custom-call.6} parent=132 // pred_fallthru
        _
    $region133: #{custom-call.6} parent=1 // pred_fallthru
      _
    // Predicated region
    $region156: #{custom-call.6} parent=1 // pred_check
      _
    $region157: #{custom-call.6} parent=1 // pred_check_branch
      %1438 = sbr.rel (0) target = $region159
    $region158: #{custom-call.6} parent=1 // pred_region
      %p1440 = scmp.gt.s32.totalorder 2, 0
      // Predicated region
      $region160: #{custom-call.6} parent=158 // pred_check
        %p1441 = pneg %p1440
      $region161: #{custom-call.6} parent=158 // pred_check_branch
        %1443 = sbr.rel (%p1441) target = $region163
      $region162: #{custom-call.6} parent=158 // pred_region
        %s1444 = ssub.s32 2, 1
        %s1445 = smul.u32 %s1444, 8
        %s1446 = scalar_lea.vmem [#allocation8], %s1445
        %v1447 = vld [vmem:[#allocation8] sm:$0xff]
        // While loop
        $region164: #{custom-call.6} parent=162 // loop_pre_header
          _
        $region165: #{custom-call.6} parent=162 // loop_header
          %s1448 = sphi [#allocation8], %s1470
          %s1449 = sphi %s6, %s1471
          %v1450 = vphi %v1447, %v1472
          %s1451 = ssub.s32 %s1446, 64
          %p1452 = scmp.gt.s32.totalorder %s1448, %s1451
        $region166: #{custom-call.6} parent=162 // loop_header_branch
          %1454 = sbr.rel (%p1452) target = $region170
        $region167: #{custom-call.6} parent=162 // loop_body
          %1455 = vst [vmem:[%s1449] sm:$0xff] %v1450
          %v1456 = vld [vmem:[%s1448 + $0x8] sm:$0xff]
          %1457 = vst [vmem:[%s1449 + $0x8] sm:$0xff] %v1456
          %v1458 = vld [vmem:[%s1448 + $0x10] sm:$0xff]
          %1459 = vst [vmem:[%s1449 + $0x10] sm:$0xff] %v1458
          %v1460 = vld [vmem:[%s1448 + $0x18] sm:$0xff]
          %1461 = vst [vmem:[%s1449 + $0x18] sm:$0xff] %v1460
          %v1462 = vld [vmem:[%s1448 + $0x20] sm:$0xff]
          %1463 = vst [vmem:[%s1449 + $0x20] sm:$0xff] %v1462
          %v1464 = vld [vmem:[%s1448 + $0x28] sm:$0xff]
          %1465 = vst [vmem:[%s1449 + $0x28] sm:$0xff] %v1464
          %v1466 = vld [vmem:[%s1448 + $0x30] sm:$0xff]
          %1467 = vst [vmem:[%s1449 + $0x30] sm:$0xff] %v1466
          %v1468 = vld [vmem:[%s1448 + $0x38] sm:$0xff]
          %1469 = vst [vmem:[%s1449 + $0x38] sm:$0xff] %v1468
        $region168: #{custom-call.6} parent=162 // loop_footer
          %s1470 = scalar_lea.vmem %s1448, 64
          %s1471 = scalar_lea.vmem %s1449, 64
          %v1472 = vld [vmem:[%s1448 + $0x40] sm:$0xff]
        $region169: #{custom-call.6} parent=162 // loop_footer_branch
          %1473 = sbr.rel target = $region165
        $region170: #{custom-call.6} parent=162 // loop_exit
          _
        // While loop
        $region171: #{custom-call.6} parent=162 // loop_pre_header
          _
        $region172: #{custom-call.6} parent=162 // loop_header
          %s1474 = sphi %s1448, %s1482
          %s1475 = sphi %s1449, %s1483
          %v1476 = vphi %v1450, %v1476
          %p1477 = scmp.gt.s32.totalorder %s1474, %s1446
        $region173: #{custom-call.6} parent=162 // loop_header_branch
          %1479 = sbr.rel (%p1477) target = $region177
        $region174: #{custom-call.6} parent=162 // loop_body
          %v1480 = vld [vmem:[%s1474] sm:$0xff]
          %1481 = vst [vmem:[%s1475] sm:$0xff] %v1480
        $region175: #{custom-call.6} parent=162 // loop_footer
          %s1482 = scalar_lea.vmem %s1474, 8
          %s1483 = scalar_lea.vmem %s1475, 8
        $region176: #{custom-call.6} parent=162 // loop_footer_branch
          %1484 = sbr.rel target = $region172
        $region177: #{custom-call.6} parent=162 // loop_exit
          _
      $region163: #{custom-call.6} parent=158 // pred_fallthru
        _
      %s1486 = ssub.s32 1, 1
      %s1487 = smul.u32 2, 8
      %s1488 = scalar_lea.vmem %s6, %s1487
      %s1489 = smul.u32 2, 8
      %s1490 = scalar_lea.vmem [#allocation8], %s1489
      %v1491 = vld [vmem:[%s1490] sm:%s1486]
      %1492 = vst [vmem:[%s1488] sm:%s1486] %v1491
    $region159: #{custom-call.6} parent=1 // pred_fallthru
      _
    // Predicated region
    $region178: #{custom-call.6} parent=1 // pred_check
      _
    $region179: #{custom-call.6} parent=1 // pred_check_branch
      %1494 = sbr.rel (0) target = $region181
    $region180: #{custom-call.6} parent=1 // pred_region
      %p1496 = scmp.gt.s32.totalorder 2, 0
      // Predicated region
      $region182: #{custom-call.6} parent=180 // pred_check
        %p1497 = pneg %p1496
      $region183: #{custom-call.6} parent=180 // pred_check_branch
        %1499 = sbr.rel (%p1497) target = $region185
      $region184: #{custom-call.6} parent=180 // pred_region
        %s1500 = ssub.s32 2, 1
        %s1501 = smul.u32 %s1500, 8
        %s1502 = scalar_lea.vmem [#allocation9], %s1501
        %v1503 = vld [vmem:[#allocation9] sm:$0xff]
        // While loop
        $region186: #{custom-call.6} parent=184 // loop_pre_header
          _
        $region187: #{custom-call.6} parent=184 // loop_header
          %s1504 = sphi [#allocation9], %s1526
          %s1505 = sphi %s7, %s1527
          %v1506 = vphi %v1503, %v1528
          %s1507 = ssub.s32 %s1502, 64
          %p1508 = scmp.gt.s32.totalorder %s1504, %s1507
        $region188: #{custom-call.6} parent=184 // loop_header_branch
          %1510 = sbr.rel (%p1508) target = $region192
        $region189: #{custom-call.6} parent=184 // loop_body
          %1511 = vst [vmem:[%s1505] sm:$0xff] %v1506
          %v1512 = vld [vmem:[%s1504 + $0x8] sm:$0xff]
          %1513 = vst [vmem:[%s1505 + $0x8] sm:$0xff] %v1512
          %v1514 = vld [vmem:[%s1504 + $0x10] sm:$0xff]
          %1515 = vst [vmem:[%s1505 + $0x10] sm:$0xff] %v1514
          %v1516 = vld [vmem:[%s1504 + $0x18] sm:$0xff]
          %1517 = vst [vmem:[%s1505 + $0x18] sm:$0xff] %v1516
          %v1518 = vld [vmem:[%s1504 + $0x20] sm:$0xff]
          %1519 = vst [vmem:[%s1505 + $0x20] sm:$0xff] %v1518
          %v1520 = vld [vmem:[%s1504 + $0x28] sm:$0xff]
          %1521 = vst [vmem:[%s1505 + $0x28] sm:$0xff] %v1520
          %v1522 = vld [vmem:[%s1504 + $0x30] sm:$0xff]
          %1523 = vst [vmem:[%s1505 + $0x30] sm:$0xff] %v1522
          %v1524 = vld [vmem:[%s1504 + $0x38] sm:$0xff]
          %1525 = vst [vmem:[%s1505 + $0x38] sm:$0xff] %v1524
        $region190: #{custom-call.6} parent=184 // loop_footer
          %s1526 = scalar_lea.vmem %s1504, 64
          %s1527 = scalar_lea.vmem %s1505, 64
          %v1528 = vld [vmem:[%s1504 + $0x40] sm:$0xff]
        $region191: #{custom-call.6} parent=184 // loop_footer_branch
          %1529 = sbr.rel target = $region187
        $region192: #{custom-call.6} parent=184 // loop_exit
          _
        // While loop
        $region193: #{custom-call.6} parent=184 // loop_pre_header
          _
        $region194: #{custom-call.6} parent=184 // loop_header
          %s1530 = sphi %s1504, %s1538
          %s1531 = sphi %s1505, %s1539
          %v1532 = vphi %v1506, %v1532
          %p1533 = scmp.gt.s32.totalorder %s1530, %s1502
        $region195: #{custom-call.6} parent=184 // loop_header_branch
          %1535 = sbr.rel (%p1533) target = $region199
        $region196: #{custom-call.6} parent=184 // loop_body
          %v1536 = vld [vmem:[%s1530] sm:$0xff]
          %1537 = vst [vmem:[%s1531] sm:$0xff] %v1536
        $region197: #{custom-call.6} parent=184 // loop_footer
          %s1538 = scalar_lea.vmem %s1530, 8
          %s1539 = scalar_lea.vmem %s1531, 8
        $region198: #{custom-call.6} parent=184 // loop_footer_branch
          %1540 = sbr.rel target = $region194
        $region199: #{custom-call.6} parent=184 // loop_exit
          _
      $region185: #{custom-call.6} parent=180 // pred_fallthru
        _
      %s1542 = ssub.s32 1, 1
      %s1543 = smul.u32 2, 8
      %s1544 = scalar_lea.vmem %s7, %s1543
      %s1545 = smul.u32 2, 8
      %s1546 = scalar_lea.vmem [#allocation9], %s1545
      %v1547 = vld [vmem:[%s1546] sm:%s1542]
      %1548 = vst [vmem:[%s1544] sm:%s1542] %v1547
    $region181: #{custom-call.6} parent=1 // pred_fallthru
      _
    // Predicated region
    $region200: #{custom-call.6} parent=1 // pred_check
      _
    $region201: #{custom-call.6} parent=1 // pred_check_branch
      %1550 = sbr.rel (0) target = $region203
    $region202: #{custom-call.6} parent=1 // pred_region
      %p1552 = scmp.gt.s32.totalorder 2, 0
      // Predicated region
      $region204: #{custom-call.6} parent=202 // pred_check
        %p1553 = pneg %p1552
      $region205: #{custom-call.6} parent=202 // pred_check_branch
        %1555 = sbr.rel (%p1553) target = $region207
      $region206: #{custom-call.6} parent=202 // pred_region
        %s1556 = ssub.s32 2, 1
        %s1557 = smul.u32 %s1556, 8
        %s1558 = scalar_lea.vmem [#allocation10], %s1557
        %v1559 = vld [vmem:[#allocation10] sm:$0xff]
        // While loop
        $region208: #{custom-call.6} parent=206 // loop_pre_header
          _
        $region209: #{custom-call.6} parent=206 // loop_header
          %s1560 = sphi [#allocation10], %s1582
          %s1561 = sphi %s8, %s1583
          %v1562 = vphi %v1559, %v1584
          %s1563 = ssub.s32 %s1558, 64
          %p1564 = scmp.gt.s32.totalorder %s1560, %s1563
        $region210: #{custom-call.6} parent=206 // loop_header_branch
          %1566 = sbr.rel (%p1564) target = $region214
        $region211: #{custom-call.6} parent=206 // loop_body
          %1567 = vst [vmem:[%s1561] sm:$0xff] %v1562
          %v1568 = vld [vmem:[%s1560 + $0x8] sm:$0xff]
          %1569 = vst [vmem:[%s1561 + $0x8] sm:$0xff] %v1568
          %v1570 = vld [vmem:[%s1560 + $0x10] sm:$0xff]
          %1571 = vst [vmem:[%s1561 + $0x10] sm:$0xff] %v1570
          %v1572 = vld [vmem:[%s1560 + $0x18] sm:$0xff]
          %1573 = vst [vmem:[%s1561 + $0x18] sm:$0xff] %v1572
          %v1574 = vld [vmem:[%s1560 + $0x20] sm:$0xff]
          %1575 = vst [vmem:[%s1561 + $0x20] sm:$0xff] %v1574
          %v1576 = vld [vmem:[%s1560 + $0x28] sm:$0xff]
          %1577 = vst [vmem:[%s1561 + $0x28] sm:$0xff] %v1576
          %v1578 = vld [vmem:[%s1560 + $0x30] sm:$0xff]
          %1579 = vst [vmem:[%s1561 + $0x30] sm:$0xff] %v1578
          %v1580 = vld [vmem:[%s1560 + $0x38] sm:$0xff]
          %1581 = vst [vmem:[%s1561 + $0x38] sm:$0xff] %v1580
        $region212: #{custom-call.6} parent=206 // loop_footer
          %s1582 = scalar_lea.vmem %s1560, 64
          %s1583 = scalar_lea.vmem %s1561, 64
          %v1584 = vld [vmem:[%s1560 + $0x40] sm:$0xff]
        $region213: #{custom-call.6} parent=206 // loop_footer_branch
          %1585 = sbr.rel target = $region209
        $region214: #{custom-call.6} parent=206 // loop_exit
          _
        // While loop
        $region215: #{custom-call.6} parent=206 // loop_pre_header
          _
        $region216: #{custom-call.6} parent=206 // loop_header
          %s1586 = sphi %s1560, %s1594
          %s1587 = sphi %s1561, %s1595
          %v1588 = vphi %v1562, %v1588
          %p1589 = scmp.gt.s32.totalorder %s1586, %s1558
        $region217: #{custom-call.6} parent=206 // loop_header_branch
          %1591 = sbr.rel (%p1589) target = $region221
        $region218: #{custom-call.6} parent=206 // loop_body
          %v1592 = vld [vmem:[%s1586] sm:$0xff]
          %1593 = vst [vmem:[%s1587] sm:$0xff] %v1592
        $region219: #{custom-call.6} parent=206 // loop_footer
          %s1594 = scalar_lea.vmem %s1586, 8
          %s1595 = scalar_lea.vmem %s1587, 8
        $region220: #{custom-call.6} parent=206 // loop_footer_branch
          %1596 = sbr.rel target = $region216
        $region221: #{custom-call.6} parent=206 // loop_exit
          _
      $region207: #{custom-call.6} parent=202 // pred_fallthru
        _
      %s1598 = ssub.s32 1, 1
      %s1599 = smul.u32 2, 8
      %s1600 = scalar_lea.vmem %s8, %s1599
      %s1601 = smul.u32 2, 8
      %s1602 = scalar_lea.vmem [#allocation10], %s1601
      %v1603 = vld [vmem:[%s1602] sm:%s1598]
      %1604 = vst [vmem:[%s1600] sm:%s1598] %v1603
    $region203: #{custom-call.6} parent=1 // pred_fallthru
      _
    // Predicated region
    $region222: #{custom-call.6} parent=1 // pred_check
      _
    $region223: #{custom-call.6} parent=1 // pred_check_branch
      %1606 = sbr.rel (0) target = $region225
    $region224: #{custom-call.6} parent=1 // pred_region
      %p1608 = scmp.gt.s32.totalorder 2, 0
      // Predicated region
      $region226: #{custom-call.6} parent=224 // pred_check
        %p1609 = pneg %p1608
      $region227: #{custom-call.6} parent=224 // pred_check_branch
        %1611 = sbr.rel (%p1609) target = $region229
      $region228: #{custom-call.6} parent=224 // pred_region
        %s1612 = ssub.s32 2, 1
        %s1613 = smul.u32 %s1612, 8
        %s1614 = scalar_lea.vmem [#allocation11], %s1613
        %v1615 = vld [vmem:[#allocation11] sm:$0xff]
        // While loop
        $region230: #{custom-call.6} parent=228 // loop_pre_header
          _
        $region231: #{custom-call.6} parent=228 // loop_header
          %s1616 = sphi [#allocation11], %s1638
          %s1617 = sphi %s9, %s1639
          %v1618 = vphi %v1615, %v1640
          %s1619 = ssub.s32 %s1614, 64
          %p1620 = scmp.gt.s32.totalorder %s1616, %s1619
        $region232: #{custom-call.6} parent=228 // loop_header_branch
          %1622 = sbr.rel (%p1620) target = $region236
        $region233: #{custom-call.6} parent=228 // loop_body
          %1623 = vst [vmem:[%s1617] sm:$0xff] %v1618
          %v1624 = vld [vmem:[%s1616 + $0x8] sm:$0xff]
          %1625 = vst [vmem:[%s1617 + $0x8] sm:$0xff] %v1624
          %v1626 = vld [vmem:[%s1616 + $0x10] sm:$0xff]
          %1627 = vst [vmem:[%s1617 + $0x10] sm:$0xff] %v1626
          %v1628 = vld [vmem:[%s1616 + $0x18] sm:$0xff]
          %1629 = vst [vmem:[%s1617 + $0x18] sm:$0xff] %v1628
          %v1630 = vld [vmem:[%s1616 + $0x20] sm:$0xff]
          %1631 = vst [vmem:[%s1617 + $0x20] sm:$0xff] %v1630
          %v1632 = vld [vmem:[%s1616 + $0x28] sm:$0xff]
          %1633 = vst [vmem:[%s1617 + $0x28] sm:$0xff] %v1632
          %v1634 = vld [vmem:[%s1616 + $0x30] sm:$0xff]
          %1635 = vst [vmem:[%s1617 + $0x30] sm:$0xff] %v1634
          %v1636 = vld [vmem:[%s1616 + $0x38] sm:$0xff]
          %1637 = vst [vmem:[%s1617 + $0x38] sm:$0xff] %v1636
        $region234: #{custom-call.6} parent=228 // loop_footer
          %s1638 = scalar_lea.vmem %s1616, 64
          %s1639 = scalar_lea.vmem %s1617, 64
          %v1640 = vld [vmem:[%s1616 + $0x40] sm:$0xff]
        $region235: #{custom-call.6} parent=228 // loop_footer_branch
          %1641 = sbr.rel target = $region231
        $region236: #{custom-call.6} parent=228 // loop_exit
          _
        // While loop
        $region237: #{custom-call.6} parent=228 // loop_pre_header
          _
        $region238: #{custom-call.6} parent=228 // loop_header
          %s1642 = sphi %s1616, %s1650
          %s1643 = sphi %s1617, %s1651
          %v1644 = vphi %v1618, %v1644
          %p1645 = scmp.gt.s32.totalorder %s1642, %s1614
        $region239: #{custom-call.6} parent=228 // loop_header_branch
          %1647 = sbr.rel (%p1645) target = $region243
        $region240: #{custom-call.6} parent=228 // loop_body
          %v1648 = vld [vmem:[%s1642] sm:$0xff]
          %1649 = vst [vmem:[%s1643] sm:$0xff] %v1648
        $region241: #{custom-call.6} parent=228 // loop_footer
          %s1650 = scalar_lea.vmem %s1642, 8
          %s1651 = scalar_lea.vmem %s1643, 8
        $region242: #{custom-call.6} parent=228 // loop_footer_branch
          %1652 = sbr.rel target = $region238
        $region243: #{custom-call.6} parent=228 // loop_exit
          _
      $region229: #{custom-call.6} parent=224 // pred_fallthru
        _
      %s1654 = ssub.s32 1, 1
      %s1655 = smul.u32 2, 8
      %s1656 = scalar_lea.vmem %s9, %s1655
      %s1657 = smul.u32 2, 8
      %s1658 = scalar_lea.vmem [#allocation11], %s1657
      %v1659 = vld [vmem:[%s1658] sm:%s1654]
      %1660 = vst [vmem:[%s1656] sm:%s1654] %v1659
    $region225: #{custom-call.6} parent=1 // pred_fallthru
      _
    // Predicated region
    $region244: #{custom-call.6} parent=1 // pred_check
      _
    $region245: #{custom-call.6} parent=1 // pred_check_branch
      %1662 = sbr.rel (0) target = $region247
    $region246: #{custom-call.6} parent=1 // pred_region
      _
    $region247: #{custom-call.6} parent=1 // pred_fallthru
      _
    // Predicated region
    $region248: #{custom-call.6} parent=1 // pred_check
      _
    $region249: #{custom-call.6} parent=1 // pred_check_branch
      %1664 = sbr.rel (0) target = $region251
    $region250: #{custom-call.6} parent=1 // pred_region
      _
    $region251: #{custom-call.6} parent=1 // pred_fallthru
      _

// kernel: custom-call.4
$region0: #{custom-call.4}
  %s0 = inlined_call_operand.vmem [shape: f32[6,12,12], index: 0, kind: input, shape index: {}]
  %s1 = inlined_call_operand.vmem [shape: f32[6,12,12], index: 1, kind: input, shape index: {}]
  %s2 = inlined_call_operand.vmem [shape: f32[6,12,12], index: 2, kind: input, shape index: {}]
  %s3 = inlined_call_operand.vmem [shape: f32[6,12,12], index: 3, kind: input, shape index: {}]
  %s4 = inlined_call_operand.vmem [shape: f32[6,12], index: 4, kind: output, shape index: {0}]
  %s5 = inlined_call_operand.vmem [shape: f32[6,12], index: 5, kind: output, shape index: {1}]
  %s6 = inlined_call_operand.vmem [shape: f32[6,12,12], index: 6, kind: output, shape index: {2}]
  %s7 = inlined_call_operand.vmem [shape: f32[6,12,12], index: 7, kind: output, shape index: {3}]
  %s8 = inlined_call_operand.vmem [shape: f32[6,12,12], index: 8, kind: output, shape index: {4}]
  %s9 = inlined_call_operand.vmem [shape: f32[6,12,12], index: 9, kind: output, shape index: {5}]
  %10 = xla_tuple %s4, %s5, %s6, %s7, %s8, %s9
  $region1: #{custom-call.4} parent=0
    #allocation0 [shape = 'u8[16384]{0}', space=vmem, size = 0x4000, scoped, tag = 'operand span for operand 0']
    #allocation1 [shape = 'u8[16384]{0}', space=vmem, size = 0x4000, scoped, tag = 'operand span for operand 1']
    #allocation2 [shape = 'u8[16384]{0}', space=vmem, size = 0x4000, scoped, tag = 'operand span for operand 2']
    #allocation3 [shape = 'u8[16384]{0}', space=vmem, size = 0x4000, scoped, tag = 'operand span for operand 3']
    #allocation4 [shape = 'u8[8192]{0}', space=vmem, size = 0x2000, scoped, tag = 'operand span for operand 4']
    #allocation5 [shape = 'u8[8192]{0}', space=vmem, size = 0x2000, scoped, tag = 'operand span for operand 5']
    #allocation6 [shape = 'u8[16384]{0}', space=vmem, size = 0x4000, scoped, tag = 'operand span for operand 6']
    #allocation7 [shape = 'u8[16384]{0}', space=vmem, size = 0x4000, scoped, tag = 'operand span for operand 7']
    #allocation8 [shape = 'u8[16384]{0}', space=vmem, size = 0x4000, scoped, tag = 'operand span for operand 8']
    #allocation9 [shape = 'u8[16384]{0}', space=vmem, size = 0x4000, scoped, tag = 'operand span for operand 9']
    loop: start=0, step=1, limit=8
    $region2: #{custom-call.4} parent=1 // loop_pre_header
      _
    $region3: #{custom-call.4} parent=1 // loop_header
      %s12 = sphi 0, %s16
      %p13 = scmp.ge.s32.totalorder %s12, 8
      %s24 = sphi 0, %s26
      %s27 = sphi 0, %s24
      %s28 = sphi 0, %s27
      %s44 = sphi 0, %s28
      %s52 = sphi 0, %s54
      %s55 = sphi 0, %s52
      %s56 = sphi 0, %s55
      %s72 = sphi 0, %s56
    $region4: #{custom-call.4} parent=1 // loop_header_branch
      %15 = sbr.rel (%p13) target = $region8
    $region5: #{custom-call.4} parent=1 // loop_body
      %s17 = ssub.s32 %s12, 1
      %s18 = ssub.s32 %s12, 2
      %s19 = sadd.s32 %s12, 1
      %s20 = sshrl.u32 %s12, 3
      %s21 = sshrl.u32 %s19, 3
      %s22 = ssub.s32 %s20, %s21
      %p23 = scmp.eq.s32.totalorder %s22, 0
      %s25 = sadd.s32 %s24, 1
      %s26 = scalar_select %p23, %s24, %s25
      %p29 = pneg %p23
      %p30 = scmp.eq.s32.totalorder %s12, 5
      %p31 = por %p29, %p30
      %p32 = scmp.ne.s32.totalorder %s24, %s27
      %p33 = scmp.eq.s32.totalorder %s12, 0
      %p34 = por %p32, %p33
      %p35 = scmp.ne.s32.totalorder %s24, %s27
      %p36 = scmp.eq.s32.totalorder %s17, 5
      %p37 = por %p35, %p36
      %p38 = scmp.ne.s32.totalorder %s27, %s28
      %p39 = scmp.eq.s32.totalorder %s17, 0
      %p40 = por %p38, %p39
      %p41 = scmp.ne.s32.totalorder %s27, %s28
      %p42 = scmp.eq.s32.totalorder %s18, 5
      %p43 = por %p41, %p42
      %p45 = scmp.ne.s32.totalorder %s28, %s44
      %p46 = scmp.eq.s32.totalorder %s18, 0
      %p47 = por %p45, %p46
      %s48 = sshrl.u32 %s12, 3
      %s49 = sshrl.u32 %s19, 3
      %s50 = ssub.s32 %s48, %s49
      %p51 = scmp.eq.s32.totalorder %s50, 0
      %s53 = sadd.s32 %s52, 1
      %s54 = scalar_select %p51, %s52, %s53
      %p57 = pneg %p51
      %p58 = scmp.eq.s32.totalorder %s12, 5
      %p59 = por %p57, %p58
      %p60 = scmp.ne.s32.totalorder %s52, %s55
      %p61 = scmp.eq.s32.totalorder %s12, 0
      %p62 = por %p60, %p61
      %p63 = scmp.ne.s32.totalorder %s52, %s55
      %p64 = scmp.eq.s32.totalorder %s17, 5
      %p65 = por %p63, %p64
      %p66 = scmp.ne.s32.totalorder %s55, %s56
      %p67 = scmp.eq.s32.totalorder %s17, 0
      %p68 = por %p66, %p67
      %p69 = scmp.ne.s32.totalorder %s55, %s56
      %p70 = scmp.eq.s32.totalorder %s18, 5
      %p71 = por %p69, %p70
      %p73 = scmp.ne.s32.totalorder %s56, %s72
      %p74 = scmp.eq.s32.totalorder %s18, 0
      %p75 = por %p73, %p74
      %p76 = scmp.le.s32.totalorder 1, %s12
      %p77 = scmp.lt.s32.totalorder %s12, 7
      %p78 = pnand %p76, %p77
      %p79 = pneg %p78
      // Predicated region
      $region9: #{custom-call.4} parent=5 // pred_check
        _
      $region10: #{custom-call.4} parent=5 // pred_check_branch
        %81 = sbr.rel (%p78) target = $region12
      $region11: #{custom-call.4} parent=5 // pred_region
        %s82 = ssub.s32 %s12, 1
      $region12: #{custom-call.4} parent=5 // pred_fallthru
        _
      %p83 = scmp.lt.s32.totalorder %s12, 6
      // Predicated region
      $region13: #{custom-call.4} parent=5 // pred_check
        %p84 = pneg %p83
      $region14: #{custom-call.4} parent=5 // pred_check_branch
        %86 = sbr.rel (%p84) target = $region16
      $region15: #{custom-call.4} parent=5 // pred_region
        %s87 = sand.u32 %s12, 1
        %s88 = sand.u32 %s12, 1
        %s89 = smul.addr %s88, 16
        %s90 = scalar_lea.vmem [#allocation0], %s89
        %s91 = smul.addr %s12, 16
        %s92 = scalar_lea.vmem %s0, %s91
        // Predicated region
        $region17: #{custom-call.4} parent=15 // pred_check
          _
        $region18: #{custom-call.4} parent=15 // pred_check_branch
          %94 = sbr.rel (0) target = $region20
        $region19: #{custom-call.4} parent=15 // pred_region
          // Predicated region
          $region21: #{custom-call.4} parent=19 // pred_check
            _
          $region22: #{custom-call.4} parent=19 // pred_check_branch
            %96 = sbr.rel (0) target = $region24
          $region23: #{custom-call.4} parent=19 // pred_region
            loop: start=0, step=1, limit=1
            $region25: #{custom-call.4} parent=23 // loop_pre_header
              _
            $region26: #{custom-call.4} parent=23 // loop_header
              %s98 = sphi 0, %s102
              %p99 = scmp.ge.s32.totalorder %s98, 1
              %s103 = sphi %s92, %s92
              %s104 = sphi %s90, %s90
            $region27: #{custom-call.4} parent=23 // loop_header_branch
              %101 = sbr.rel (%p99) target = $region31
            $region28: #{custom-call.4} parent=23 // loop_body
              %v105 = vld [vmem:[%s103] sm:$0xff]
              %106 = vst [vmem:[%s104] sm:$0xff] %v105
              %v107 = vld [vmem:[%s103 + $0x8] sm:$0xff]
              %108 = vst [vmem:[%s104 + $0x8] sm:$0xff] %v107
            $region29: #{custom-call.4} parent=23 // loop_footer
              %s102 = sadd.s32 1, %s98
            $region30: #{custom-call.4} parent=23 // loop_footer_branch
              %97 = sbr.rel target = $region26
            $region31: #{custom-call.4} parent=23 // loop_exit
              _
          $region24: #{custom-call.4} parent=19 // pred_fallthru
            _
          // Predicated region
          $region32: #{custom-call.4} parent=19 // pred_check
            _
          $region33: #{custom-call.4} parent=19 // pred_check_branch
            %110 = sbr.rel target = $region35
          $region34: #{custom-call.4} parent=19 // pred_region
            _
          $region35: #{custom-call.4} parent=19 // pred_fallthru
            _
        $region20: #{custom-call.4} parent=15 // pred_fallthru
          _
        %111 = vnop
        %s112 = sand.u32 %s12, 1
        %s113 = sand.u32 %s12, 1
        %s114 = smul.addr %s113, 16
        %s115 = scalar_lea.vmem [#allocation1], %s114
        %s116 = smul.addr %s12, 16
        %s117 = scalar_lea.vmem %s1, %s116
        // Predicated region
        $region36: #{custom-call.4} parent=15 // pred_check
          _
        $region37: #{custom-call.4} parent=15 // pred_check_branch
          %119 = sbr.rel (0) target = $region39
        $region38: #{custom-call.4} parent=15 // pred_region
          // Predicated region
          $region40: #{custom-call.4} parent=38 // pred_check
            _
          $region41: #{custom-call.4} parent=38 // pred_check_branch
            %121 = sbr.rel (0) target = $region43
          $region42: #{custom-call.4} parent=38 // pred_region
            loop: start=0, step=1, limit=1
            $region44: #{custom-call.4} parent=42 // loop_pre_header
              _
            $region45: #{custom-call.4} parent=42 // loop_header
              %s123 = sphi 0, %s127
              %p124 = scmp.ge.s32.totalorder %s123, 1
              %s128 = sphi %s117, %s117
              %s129 = sphi %s115, %s115
            $region46: #{custom-call.4} parent=42 // loop_header_branch
              %126 = sbr.rel (%p124) target = $region50
            $region47: #{custom-call.4} parent=42 // loop_body
              %v130 = vld [vmem:[%s128] sm:$0xff]
              %131 = vst [vmem:[%s129] sm:$0xff] %v130
              %v132 = vld [vmem:[%s128 + $0x8] sm:$0xff]
              %133 = vst [vmem:[%s129 + $0x8] sm:$0xff] %v132
            $region48: #{custom-call.4} parent=42 // loop_footer
              %s127 = sadd.s32 1, %s123
            $region49: #{custom-call.4} parent=42 // loop_footer_branch
              %122 = sbr.rel target = $region45
            $region50: #{custom-call.4} parent=42 // loop_exit
              _
          $region43: #{custom-call.4} parent=38 // pred_fallthru
            _
          // Predicated region
          $region51: #{custom-call.4} parent=38 // pred_check
            _
          $region52: #{custom-call.4} parent=38 // pred_check_branch
            %135 = sbr.rel target = $region54
          $region53: #{custom-call.4} parent=38 // pred_region
            _
          $region54: #{custom-call.4} parent=38 // pred_fallthru
            _
        $region39: #{custom-call.4} parent=15 // pred_fallthru
          _
        %136 = vnop
        %s137 = sand.u32 %s12, 1
        %s138 = sand.u32 %s12, 1
        %s139 = smul.addr %s138, 16
        %s140 = scalar_lea.vmem [#allocation2], %s139
        %s141 = smul.addr %s12, 16
        %s142 = scalar_lea.vmem %s2, %s141
        // Predicated region
        $region55: #{custom-call.4} parent=15 // pred_check
          _
        $region56: #{custom-call.4} parent=15 // pred_check_branch
          %144 = sbr.rel (0) target = $region58
        $region57: #{custom-call.4} parent=15 // pred_region
          // Predicated region
          $region59: #{custom-call.4} parent=57 // pred_check
            _
          $region60: #{custom-call.4} parent=57 // pred_check_branch
            %146 = sbr.rel (0) target = $region62
          $region61: #{custom-call.4} parent=57 // pred_region
            loop: start=0, step=1, limit=1
            $region63: #{custom-call.4} parent=61 // loop_pre_header
              _
            $region64: #{custom-call.4} parent=61 // loop_header
              %s148 = sphi 0, %s152
              %p149 = scmp.ge.s32.totalorder %s148, 1
              %s153 = sphi %s142, %s142
              %s154 = sphi %s140, %s140
            $region65: #{custom-call.4} parent=61 // loop_header_branch
              %151 = sbr.rel (%p149) target = $region69
            $region66: #{custom-call.4} parent=61 // loop_body
              %v155 = vld [vmem:[%s153] sm:$0xff]
              %156 = vst [vmem:[%s154] sm:$0xff] %v155
              %v157 = vld [vmem:[%s153 + $0x8] sm:$0xff]
              %158 = vst [vmem:[%s154 + $0x8] sm:$0xff] %v157
            $region67: #{custom-call.4} parent=61 // loop_footer
              %s152 = sadd.s32 1, %s148
            $region68: #{custom-call.4} parent=61 // loop_footer_branch
              %147 = sbr.rel target = $region64
            $region69: #{custom-call.4} parent=61 // loop_exit
              _
          $region62: #{custom-call.4} parent=57 // pred_fallthru
            _
          // Predicated region
          $region70: #{custom-call.4} parent=57 // pred_check
            _
          $region71: #{custom-call.4} parent=57 // pred_check_branch
            %160 = sbr.rel target = $region73
          $region72: #{custom-call.4} parent=57 // pred_region
            _
          $region73: #{custom-call.4} parent=57 // pred_fallthru
            _
        $region58: #{custom-call.4} parent=15 // pred_fallthru
          _
        %161 = vnop
        %s162 = sand.u32 %s12, 1
        %s163 = sand.u32 %s12, 1
        %s164 = smul.addr %s163, 16
        %s165 = scalar_lea.vmem [#allocation3], %s164
        %s166 = smul.addr %s12, 16
        %s167 = scalar_lea.vmem %s3, %s166
        // Predicated region
        $region74: #{custom-call.4} parent=15 // pred_check
          _
        $region75: #{custom-call.4} parent=15 // pred_check_branch
          %169 = sbr.rel (0) target = $region77
        $region76: #{custom-call.4} parent=15 // pred_region
          // Predicated region
          $region78: #{custom-call.4} parent=76 // pred_check
            _
          $region79: #{custom-call.4} parent=76 // pred_check_branch
            %171 = sbr.rel (0) target = $region81
          $region80: #{custom-call.4} parent=76 // pred_region
            loop: start=0, step=1, limit=1
            $region82: #{custom-call.4} parent=80 // loop_pre_header
              _
            $region83: #{custom-call.4} parent=80 // loop_header
              %s173 = sphi 0, %s177
              %p174 = scmp.ge.s32.totalorder %s173, 1
              %s178 = sphi %s167, %s167
              %s179 = sphi %s165, %s165
            $region84: #{custom-call.4} parent=80 // loop_header_branch
              %176 = sbr.rel (%p174) target = $region88
            $region85: #{custom-call.4} parent=80 // loop_body
              %v180 = vld [vmem:[%s178] sm:$0xff]
              %181 = vst [vmem:[%s179] sm:$0xff] %v180
              %v182 = vld [vmem:[%s178 + $0x8] sm:$0xff]
              %183 = vst [vmem:[%s179 + $0x8] sm:$0xff] %v182
            $region86: #{custom-call.4} parent=80 // loop_footer
              %s177 = sadd.s32 1, %s173
            $region87: #{custom-call.4} parent=80 // loop_footer_branch
              %172 = sbr.rel target = $region83
            $region88: #{custom-call.4} parent=80 // loop_exit
              _
          $region81: #{custom-call.4} parent=76 // pred_fallthru
            _
          // Predicated region
          $region89: #{custom-call.4} parent=76 // pred_check
            _
          $region90: #{custom-call.4} parent=76 // pred_check_branch
            %185 = sbr.rel target = $region92
          $region91: #{custom-call.4} parent=76 // pred_region
            _
          $region92: #{custom-call.4} parent=76 // pred_fallthru
            _
        $region77: #{custom-call.4} parent=15 // pred_fallthru
          _
        %186 = vnop
      $region16: #{custom-call.4} parent=5 // pred_fallthru
        _
      %p187 = scmp.le.s32.totalorder 1, %s12
      %p188 = scmp.lt.s32.totalorder %s12, 7
      %p189 = pnand %p187, %p188
      %p190 = pneg %p189
      // Predicated region
      $region93: #{custom-call.4} parent=5 // pred_check
        _
      $region94: #{custom-call.4} parent=5 // pred_check_branch
        %192 = sbr.rel (%p189) target = $region96
      $region95: #{custom-call.4} parent=5 // pred_region
        #allocation10 [shape = 'f32[12,12]{1,0}', space=vmem, size = 0x2000, scoped, tag = 'a top-left matrix']
        #allocation11 [shape = 'f32[12,12]{1,0}', space=vmem, size = 0x2000, scoped, tag = 'a top-right matrix']
        #allocation12 [shape = 'f32[12,12]{1,0}', space=vmem, size = 0x2000, scoped, tag = 'a bottom-left matrix']
        #allocation13 [shape = 'f32[12,12]{1,0}', space=vmem, size = 0x2000, scoped, tag = 'a bottom-right matrix']
        %s193 = ssub.s32 %s12, 1
        %s194 = sand.u32 %s17, 1
        %s195 = sand.u32 %s17, 1
        %s196 = smul.addr %s195, 16
        %s197 = scalar_lea.vmem [#allocation0], %s196
        %s198 = sand.u32 %s17, 1
        %s199 = sand.u32 %s17, 1
        %s200 = smul.addr %s199, 16
        %s201 = scalar_lea.vmem [#allocation1], %s200
        %s202 = sand.u32 %s17, 1
        %s203 = sand.u32 %s17, 1
        %s204 = smul.addr %s203, 16
        %s205 = scalar_lea.vmem [#allocation2], %s204
        %s206 = sand.u32 %s17, 1
        %s207 = sand.u32 %s17, 1
        %s208 = smul.addr %s207, 16
        %s209 = scalar_lea.vmem [#allocation3], %s208
        %s210 = sand.u32 %s17, 1
        %s211 = sand.u32 %s17, 1
        %s212 = smul.addr %s211, 16
        %s213 = scalar_lea.vmem [#allocation0], %s212
        %s214 = sand.u32 %s17, 1
        %s215 = sand.u32 %s17, 1
        %s216 = smul.addr %s215, 16
        %s217 = scalar_lea.vmem [#allocation1], %s216
        %s218 = sand.u32 %s17, 1
        %s219 = sand.u32 %s17, 1
        %s220 = smul.addr %s219, 16
        %s221 = scalar_lea.vmem [#allocation2], %s220
        %s222 = sand.u32 %s17, 1
        %s223 = sand.u32 %s17, 1
        %s224 = smul.addr %s223, 16
        %s225 = scalar_lea.vmem [#allocation3], %s224
        %p226 = pneg %p40
        %p227 = pneg %p37
        %s228 = sand.u32 %s27, 1
        %s229 = sand.u32 %s27, 1
        %s230 = smul.addr %s229, 8
        %s231 = scalar_lea.vmem [#allocation4], %s230
        %p232 = pneg %p68
        %p233 = pneg %p65
        %s234 = sand.u32 %s55, 1
        %s235 = sand.u32 %s55, 1
        %s236 = smul.addr %s235, 8
        %s237 = scalar_lea.vmem [#allocation5], %s236
        %s238 = sand.u32 %s17, 1
        %s239 = sand.u32 %s17, 1
        %s240 = smul.addr %s239, 16
        %s241 = scalar_lea.vmem [#allocation6], %s240
        %s242 = sand.u32 %s17, 1
        %s243 = sand.u32 %s17, 1
        %s244 = smul.addr %s243, 16
        %s245 = scalar_lea.vmem [#allocation7], %s244
        %s246 = sand.u32 %s17, 1
        %s247 = sand.u32 %s17, 1
        %s248 = smul.addr %s247, 16
        %s249 = scalar_lea.vmem [#allocation8], %s248
        %s250 = sand.u32 %s17, 1
        %s251 = sand.u32 %s17, 1
        %s252 = smul.addr %s251, 16
        %s253 = scalar_lea.vmem [#allocation9], %s252
        %s254 = sshrl.u32 %s17, 3
        %s255 = sshrl.u32 %s17, 3
        %s256 = smov [#allocation10]
        %v257 = vld [vmem:[%s197] sm:$0xff]
        %258 = vst [vmem:[%s256] sm:$0xff] %v257
        %s259 = scalar_lea.vmem %s256, 8
        %s260 = scalar_lea.vmem %s197, 8 [#allocation0]
        %v261 = vld [vmem:[%s260] sm:$0xff]
        %262 = vst [vmem:[%s259] sm:$0xff] %v261
        %s263 = smov [#allocation11]
        %v264 = vld [vmem:[%s201] sm:$0xff]
        %265 = vst [vmem:[%s263] sm:$0xff] %v264
        %s266 = scalar_lea.vmem %s263, 8
        %s267 = scalar_lea.vmem %s201, 8 [#allocation1]
        %v268 = vld [vmem:[%s267] sm:$0xff]
        %269 = vst [vmem:[%s266] sm:$0xff] %v268
        %s270 = smov [#allocation12]
        %v271 = vld [vmem:[%s205] sm:$0xff]
        %272 = vst [vmem:[%s270] sm:$0xff] %v271
        %s273 = scalar_lea.vmem %s270, 8
        %s274 = scalar_lea.vmem %s205, 8 [#allocation2]
        %v275 = vld [vmem:[%s274] sm:$0xff]
        %276 = vst [vmem:[%s273] sm:$0xff] %v275
        %s277 = smov [#allocation13]
        %v278 = vld [vmem:[%s209] sm:$0xff]
        %279 = vst [vmem:[%s277] sm:$0xff] %v278
        %s280 = scalar_lea.vmem %s277, 8
        %s281 = scalar_lea.vmem %s209, 8 [#allocation3]
        %v282 = vld [vmem:[%s281] sm:$0xff]
        %283 = vst [vmem:[%s280] sm:$0xff] %v282
        %284 = vst [vmem:[%s241] sm:$0xff] 0.0
        %s285 = scalar_lea.vmem %s241, 8 [#allocation6]
        %286 = vst [vmem:[%s285] sm:$0xff] 0.0
        %287 = vst [vmem:[%s245] sm:$0xff] 0.0
        %s288 = scalar_lea.vmem %s245, 8 [#allocation7]
        %289 = vst [vmem:[%s288] sm:$0xff] 0.0
        %290 = vst [vmem:[%s249] sm:$0xff] 0.0
        %s291 = scalar_lea.vmem %s249, 8 [#allocation8]
        %292 = vst [vmem:[%s291] sm:$0xff] 0.0
        %293 = vst [vmem:[%s253] sm:$0xff] 0.0
        %s294 = scalar_lea.vmem %s253, 8 [#allocation9]
        %295 = vst [vmem:[%s294] sm:$0xff] 0.0
        %s296 = smov %s241
        %v297 = vlaneseq
        %v298 = vand.u32 %v297, 127
        %v299 = vmov %v298
        %v300 = vlaneseq
        %v301 = vshrl.u32 %v300, 7
        %v302 = vmov %v301
        %v303 = vld [vmem:[%s296] sm:$0xff]
        %vm306 = vcmp.eq.s32.totalorder %v302, %v299
        %v307 = vsel %vm306, 1.0, %v303
        %308 = vst [vmem:[%s296] sm:$0xff] %v307
        %s309 = scalar_lea.vmem %s296, 8
        %v310 = vld [vmem:[%s309] sm:$0xf]
        %v312 = vadd.s32 %v302, 8
        %vm313 = vcmp.eq.s32.totalorder %v312, %v299
        %v314 = vsel %vm313, 1.0, %v310
        %315 = vst [vmem:[%s309] sm:$0xf] %v314
        %s316 = smov %s253
        %v317 = vlaneseq
        %v318 = vand.u32 %v317, 127
        %v319 = vmov %v318
        %v320 = vlaneseq
        %v321 = vshrl.u32 %v320, 7
        %v322 = vmov %v321
        %v323 = vld [vmem:[%s316] sm:$0xff]
        %vm326 = vcmp.eq.s32.totalorder %v322, %v319
        %v327 = vsel %vm326, 1.0, %v323
        %328 = vst [vmem:[%s316] sm:$0xff] %v327
        %s329 = scalar_lea.vmem %s316, 8
        %v330 = vld [vmem:[%s329] sm:$0xf]
        %v332 = vadd.s32 %v322, 8
        %vm333 = vcmp.eq.s32.totalorder %v332, %v319
        %v334 = vsel %vm333, 1.0, %v330
        %335 = vst [vmem:[%s329] sm:$0xf] %v334
        // While loop
        $region97: #{custom-call.4} parent=95 // loop_pre_header
          _
        $region98: #{custom-call.4} parent=95 // loop_header
          %s337 = sphi 0, %s1275
          %v338 = vlaneseq
          %v339 = vand.u32 %v338, 127
          %v340 = vmov %v339
          %v341 = vlaneseq
          %v342 = vshrl.u32 %v341, 7
          %v343 = vmov %v342
          %s344 = smov [#allocation10]
          %v345 = vlaneseq
          %v346 = vand.u32 %v345, 127
          %vm347 = vcmp.ge.s32.totalorder %v346, 0
          %vm348 = vcmp.lt.s32.totalorder %v346, 12
          %vm349 = vmand %vm347, %vm348
          %v350 = vld [vmem:[%s344] sm:$0xff]
          %v351 = vsel %vm349, %v350, 0.0
          %v352 = vmul.f32 %v351, %v351
          %vm355 = vcmp.eq.s32.totalorder %v343, %v340
          %v356 = vsel %vm355, 0.0, %v352
          %s357 = scalar_lea.vmem %s344, 8
          %v358 = vld [vmem:[%s357] sm:$0xf]
          %v359 = vsel %vm349, %v358, 0.0
          %v360 = vmul.f32 %v359, %v359
          %v362 = vadd.s32 %v343, 8
          %vm363 = vcmp.eq.s32.totalorder %v362, %v340
          %v364 = vsel %vm363, 0.0, %v360
          %v365 = vadd.f32 %v356, %v364
          %v366 = vadd.f32 %v352, %v360
          %v367 = vlaneseq
          %v368 = vand.u32 %v367, 127
          %v369 = vmov %v368
          %v370 = vlaneseq
          %v371 = vshrl.u32 %v370, 7
          %v372 = vmov %v371
          %s373 = smov [#allocation11]
          %v374 = vlaneseq
          %v375 = vand.u32 %v374, 127
          %vm376 = vcmp.ge.s32.totalorder %v375, 0
          %vm377 = vcmp.lt.s32.totalorder %v375, 12
          %vm378 = vmand %vm376, %vm377
          %v379 = vld [vmem:[%s373] sm:$0xff]
          %v380 = vsel %vm378, %v379, 0.0
          %v381 = vmul.f32 %v380, %v380
          %v382 = vadd.f32 %v365, %v381
          %v383 = vadd.f32 %v366, %v381
          %s384 = scalar_lea.vmem %s373, 8
          %v385 = vld [vmem:[%s384] sm:$0xf]
          %v386 = vsel %vm378, %v385, 0.0
          %v387 = vmul.f32 %v386, %v386
          %v388 = vadd.f32 %v382, %v387
          %v389 = vadd.f32 %v383, %v387
          %v390 = vlaneseq
          %v391 = vand.u32 %v390, 127
          %v392 = vmov %v391
          %v393 = vlaneseq
          %v394 = vshrl.u32 %v393, 7
          %v395 = vmov %v394
          %s396 = smov [#allocation12]
          %v397 = vlaneseq
          %v398 = vand.u32 %v397, 127
          %vm399 = vcmp.ge.s32.totalorder %v398, 0
          %vm400 = vcmp.lt.s32.totalorder %v398, 12
          %vm401 = vmand %vm399, %vm400
          %v402 = vld [vmem:[%s396] sm:$0xff]
          %v403 = vsel %vm401, %v402, 0.0
          %v404 = vmul.f32 %v403, %v403
          %v405 = vadd.f32 %v388, %v404
          %v406 = vadd.f32 %v389, %v404
          %s407 = scalar_lea.vmem %s396, 8
          %v408 = vld [vmem:[%s407] sm:$0xf]
          %v409 = vsel %vm401, %v408, 0.0
          %v410 = vmul.f32 %v409, %v409
          %v411 = vadd.f32 %v405, %v410
          %v412 = vadd.f32 %v406, %v410
          %v413 = vlaneseq
          %v414 = vand.u32 %v413, 127
          %v415 = vmov %v414
          %v416 = vlaneseq
          %v417 = vshrl.u32 %v416, 7
          %v418 = vmov %v417
          %s419 = smov [#allocation13]
          %v420 = vlaneseq
          %v421 = vand.u32 %v420, 127
          %vm422 = vcmp.ge.s32.totalorder %v421, 0
          %vm423 = vcmp.lt.s32.totalorder %v421, 12
          %vm424 = vmand %vm422, %vm423
          %v425 = vld [vmem:[%s419] sm:$0xff]
          %v426 = vsel %vm424, %v425, 0.0
          %v427 = vmul.f32 %v426, %v426
          %vm430 = vcmp.eq.s32.totalorder %v418, %v415
          %v431 = vsel %vm430, 0.0, %v427
          %v432 = vadd.f32 %v411, %v431
          %v433 = vadd.f32 %v412, %v427
          %s434 = scalar_lea.vmem %s419, 8
          %v435 = vld [vmem:[%s434] sm:$0xf]
          %v436 = vsel %vm424, %v435, 0.0
          %v437 = vmul.f32 %v436, %v436
          %v439 = vadd.s32 %v418, 8
          %vm440 = vcmp.eq.s32.totalorder %v439, %v415
          %v441 = vsel %vm440, 0.0, %v437
          %v442 = vadd.f32 %v432, %v441
          %v443 = vadd.f32 %v433, %v437
          %444 = vadd.xlane.f32.xlu0 %v443
          %v445 = vpop.xlane.xlu0 %444
          %v446 = vrot.slane %v445, 4
          %v447 = vadd.f32 %v445, %v446
          %v448 = vrot.slane %v447, 2
          %v449 = vadd.f32 %v447, %v448
          %v450 = vrot.slane %v449, 1
          %v451 = vadd.f32 %v449, %v450
          %452 = vadd.xlane.f32.xlu0 %v442
          %v453 = vpop.xlane.xlu0 %452
          %v454 = vrot.slane %v453, 4
          %v455 = vadd.f32 %v453, %v454
          %v456 = vrot.slane %v455, 2
          %v457 = vadd.f32 %v455, %v456
          %v458 = vrot.slane %v457, 1
          %v459 = vadd.f32 %v457, %v458
          %s460 = vtos %v459
          %s461 = vtos %v451
          %s462 = smul.f32 1e-10, %s461
          %p463 = scmp.le.f32.partialorder %s460, %s462
          %p464 = scmp.ge.s32.totalorder %s337, 15
          %p465 = por %p463, %p464
        $region99: #{custom-call.4} parent=95 // loop_header_branch
          %1277 = sbr.rel (%p465) target = $region103
        $region100: #{custom-call.4} parent=95 // loop_body
          loop: start=0, step=1, limit=23
          $region104: #{custom-call.4} parent=100 // loop_pre_header
            _
          $region105: #{custom-call.4} parent=100 // loop_header
            %s467 = sphi 0, %s471
            %p468 = scmp.ge.s32.totalorder %s467, 23
          $region106: #{custom-call.4} parent=100 // loop_header_branch
            %470 = sbr.rel (%p468) target = $region110
          $region107: #{custom-call.4} parent=100 // loop_body
            #allocation14 [shape = 'f32[1024]{0}', space=vmem, size = 0x1000, scoped, tag = 'a_tl_diag vmem']
            #allocation15 [shape = 'f32[1024]{0}', space=vmem, size = 0x1000, scoped, tag = 'a_tr_diag vmem']
            #allocation16 [shape = 'f32[1024]{0}', space=vmem, size = 0x1000, scoped, tag = 'a_br_diag vmem']
            #allocation17 [shape = 'f32[1024]{0}', space=vmem, size = 0x1000, scoped, tag = 'rt1 vmem']
            #allocation18 [shape = 'f32[1024]{0}', space=vmem, size = 0x1000, scoped, tag = 'rt2 vmem']
            #allocation19 [shape = 'f32[1024]{0}', space=vmem, size = 0x1000, scoped, tag = 'c vmem']
            #allocation20 [shape = 'f32[1024]{0}', space=vmem, size = 0x1000, scoped, tag = 's vmem']
            #allocation21 [shape = 'f32[8192]{0}', space=vmem, size = 0x8000, scoped, tag = 'c broadcast']
            #allocation22 [shape = 'f32[8192]{0}', space=vmem, size = 0x8000, scoped, tag = 's broadcast']
            %s472 = smov [#allocation10]
            %s473 = smov [#allocation14]
            %v474 = vlaneseq
            %v475 = vand.u32 %v474, 127
            %v476 = vmov %v475
            %v477 = vlaneseq
            %v478 = vshrl.u32 %v477, 7
            %v479 = vmov %v478
            %v480 = vld [vmem:[%s472] sm:$0xff]
            %vm483 = vcmp.eq.s32.totalorder %v479, %v476
            %v484 = vsel %vm483, %v480, 0.0
            %s485 = scalar_lea.vmem %s472, 8
            %v486 = vld [vmem:[%s485] sm:$0xf]
            %v488 = vadd.s32 %v479, 8
            %vm489 = vcmp.eq.s32.totalorder %v488, %v476
            %v490 = vsel %vm489, %v486, %v484
            %v491 = vrot.slane %v490, 4
            %v492 = vadd.f32 %v490, %v491
            %v493 = vrot.slane %v492, 2
            %v494 = vadd.f32 %v492, %v493
            %v495 = vrot.slane %v494, 1
            %v496 = vadd.f32 %v494, %v495
            %497 = vst [vmem:[%s473] sm:$0x1] %v496
            %s498 = smov [#allocation11]
            %s499 = smov [#allocation15]
            %v500 = vlaneseq
            %v501 = vand.u32 %v500, 127
            %v502 = vmov %v501
            %v503 = vlaneseq
            %v504 = vshrl.u32 %v503, 7
            %v505 = vmov %v504
            %v506 = vld [vmem:[%s498] sm:$0xff]
            %vm509 = vcmp.eq.s32.totalorder %v505, %v502
            %v510 = vsel %vm509, %v506, 0.0
            %s511 = scalar_lea.vmem %s498, 8
            %v512 = vld [vmem:[%s511] sm:$0xf]
            %v514 = vadd.s32 %v505, 8
            %vm515 = vcmp.eq.s32.totalorder %v514, %v502
            %v516 = vsel %vm515, %v512, %v510
            %v517 = vrot.slane %v516, 4
            %v518 = vadd.f32 %v516, %v517
            %v519 = vrot.slane %v518, 2
            %v520 = vadd.f32 %v518, %v519
            %v521 = vrot.slane %v520, 1
            %v522 = vadd.f32 %v520, %v521
            %523 = vst [vmem:[%s499] sm:$0x1] %v522
            %s524 = smov [#allocation13]
            %s525 = smov [#allocation16]
            %v526 = vlaneseq
            %v527 = vand.u32 %v526, 127
            %v528 = vmov %v527
            %v529 = vlaneseq
            %v530 = vshrl.u32 %v529, 7
            %v531 = vmov %v530
            %v532 = vld [vmem:[%s524] sm:$0xff]
            %vm535 = vcmp.eq.s32.totalorder %v531, %v528
            %v536 = vsel %vm535, %v532, 0.0
            %s537 = scalar_lea.vmem %s524, 8
            %v538 = vld [vmem:[%s537] sm:$0xf]
            %v540 = vadd.s32 %v531, 8
            %vm541 = vcmp.eq.s32.totalorder %v540, %v528
            %v542 = vsel %vm541, %v538, %v536
            %v543 = vrot.slane %v542, 4
            %v544 = vadd.f32 %v542, %v543
            %v545 = vrot.slane %v544, 2
            %v546 = vadd.f32 %v544, %v545
            %v547 = vrot.slane %v546, 1
            %v548 = vadd.f32 %v546, %v547
            %549 = vst [vmem:[%s525] sm:$0x1] %v548
            %s550 = smov [#allocation19]
            %s551 = smov [#allocation20]
            %s552 = smov [#allocation14]
            %v553 = vld [vmem:[%s552] sm:$0xff]
            %s554 = smov [#allocation15]
            %v555 = vld [vmem:[%s554] sm:$0xff]
            %s556 = smov [#allocation16]
            %v557 = vld [vmem:[%s556] sm:$0xff]
            %v558 = vsub.f32 %v557, %v553
            %v559 = vmul.f32 2.0, %v555
            %v560 = vrcp.pop %v559
            %v561 = vmul.f32 %v559, %v560
            %v562 = vsub.f32 1.0, %v561
            %v563 = vmul.f32 %v560, %v562
            %v564 = vadd.f32 %v560, %v563
            %vm565 = vweird.f32 %v559
            %vm566 = vweird.f32 %v560
            %vm567 = vmor %vm565, %vm566
            %v568 = vsel %vm567, %v560, %v564
            %v569 = vand.u32 2147483647, %v559
            %vm570 = vcmp.eq.f32.partialorder %v569, 8.507059e+37
            %v571 = vand.u32 %v559, 2147483648
            %v572 = vor.u32 1.1754944e-38, %v571
            %v573 = vsel %vm570, %v572, %v568
            %v574 = vmul.f32 %v558, %v573
            %vm575 = vcmp.ge.f32.partialorder %v574, 0.0
            %v576 = vmul.f32 %v574, %v574
            %v577 = vadd.f32 1.0, %v576
            %v578 = vrsqrt.pop %v577
            %v579 = vmul.f32 %v578, %v577
            %v580 = vmul.f32 %v579, %v578
            %v581 = vmul.f32 0.5, %v580
            %v582 = vsub.f32 1.5, %v581
            %v583 = vmul.f32 %v578, %v582
            %v584 = vmul.f32 %v577, %v583
            %vm585 = vcmp.eq.f32.partialorder %v577, inf
            %v586 = vsel %vm585, %v577, %v584
            %vm587 = vcmp.eq.f32.partialorder %v577, 0.0
            %v588 = vand.u32 %v577, 2147483648
            %v589 = vsel %vm587, %v588, %v586
            %v590 = vxor.u32 %v589, 2147483648
            %v591 = vsel %vm575, %v589, %v590
            %v592 = vadd.f32 %v574, %v591
            %v593 = vrcp.pop %v592
            %v594 = vmul.f32 %v592, %v593
            %v595 = vsub.f32 1.0, %v594
            %v596 = vmul.f32 %v593, %v595
            %v597 = vadd.f32 %v593, %v596
            %vm598 = vweird.f32 %v592
            %vm599 = vweird.f32 %v593
            %vm600 = vmor %vm598, %vm599
            %v601 = vsel %vm600, %v593, %v597
            %v602 = vand.u32 2147483647, %v592
            %vm603 = vcmp.eq.f32.partialorder %v602, 8.507059e+37
            %v604 = vand.u32 %v592, 2147483648
            %v605 = vor.u32 1.1754944e-38, %v604
            %v606 = vsel %vm603, %v605, %v601
            %v607 = vand.u32 2147483647, %v553
            %v608 = vand.u32 2147483647, %v555
            %v609 = vand.u32 2147483647, %v557
            %v610 = vmin.f32 %v607, %v609
            %v611 = vmul.f32 1.1920929e-08, %v610
            %vm612 = vcmp.le.f32.partialorder %v608, %v611
            %v613 = vsel %vm612, 0.0, %v606
            %v614 = vmul.f32 %v613, %v613
            %v615 = vadd.f32 1.0, %v614
            %v616 = vrsqrt.pop %v615
            %v617 = vmul.f32 %v616, %v615
            %v618 = vmul.f32 %v617, %v616
            %v619 = vmul.f32 0.5, %v618
            %v620 = vsub.f32 1.5, %v619
            %v621 = vmul.f32 %v616, %v620
            %vm622 = vweird.f32 %v615
            %vm623 = vweird.f32 %v616
            %vm624 = vmor %vm622, %vm623
            %v625 = vsel %vm624, %v616, %v621
            %v626 = vmul.f32 %v613, %v625
            %v627 = vmul.f32 %v613, %v555
            %v628 = vsub.f32 %v553, %v627
            %v629 = vmul.f32 %v613, %v555
            %v630 = vadd.f32 %v557, %v629
            %s631 = smov [#allocation17]
            %632 = vst [vmem:[%s631] sm:$0xff] %v628
            %s633 = smov [#allocation18]
            %634 = vst [vmem:[%s633] sm:$0xff] %v630
            %s635 = smov %s550
            %636 = vst [vmem:[%s635] sm:$0xff] %v625
            %s637 = smov %s551
            %638 = vst [vmem:[%s637] sm:$0xff] %v626
            %s639 = smov [#allocation19]
            %v640 = vld [vmem:[%s639] ss:$0 sm:$0xff]
            %v641 = vlaneseq
            %v642 = vand.u32 %v641, 127
            %v643 = vmov %v642
            %v644 = vlaneseq
            %v645 = vshrl.u32 %v644, 7
            %v646 = vmov %v645
            %vm648 = vcmp.eq.s32.totalorder %v646, %v643
            %v649 = vsel %vm648, %v640, 0.0
            %650 = vadd.xlane.f32.xlu0 %v649
            %v651 = vpop.xlane.xlu0 %650
            %s652 = smov [#allocation21]
            %653 = vst [vmem:[%s652] sm:$0xff] %v651
            %s654 = smov [#allocation19]
            %v655 = vld [vmem:[%s654] ss:$0 sm:$0xff]
            %v656 = vlaneseq
            %v657 = vand.u32 %v656, 127
            %v658 = vmov %v657
            %v659 = vlaneseq
            %v660 = vshrl.u32 %v659, 7
            %v661 = vmov %v660
            %v662 = vadd.s32 %v661, 8
            %vm663 = vcmp.eq.s32.totalorder %v662, %v658
            %v664 = vsel %vm663, %v655, 0.0
            %665 = vadd.xlane.f32.xlu0 %v664
            %v666 = vpop.xlane.xlu0 %665
            %s667 = smov [#allocation21]
            %s668 = scalar_lea.vmem %s667, 8
            %669 = vst [vmem:[%s668] sm:$0xff] %v666
            %s670 = smov [#allocation20]
            %v671 = vld [vmem:[%s670] ss:$0 sm:$0xff]
            %v672 = vlaneseq
            %v673 = vand.u32 %v672, 127
            %v674 = vmov %v673
            %v675 = vlaneseq
            %v676 = vshrl.u32 %v675, 7
            %v677 = vmov %v676
            %vm679 = vcmp.eq.s32.totalorder %v677, %v674
            %v680 = vsel %vm679, %v671, 0.0
            %681 = vadd.xlane.f32.xlu0 %v680
            %v682 = vpop.xlane.xlu0 %681
            %s683 = smov [#allocation22]
            %684 = vst [vmem:[%s683] sm:$0xff] %v682
            %s685 = smov [#allocation20]
            %v686 = vld [vmem:[%s685] ss:$0 sm:$0xff]
            %v687 = vlaneseq
            %v688 = vand.u32 %v687, 127
            %v689 = vmov %v688
            %v690 = vlaneseq
            %v691 = vshrl.u32 %v690, 7
            %v692 = vmov %v691
            %v693 = vadd.s32 %v692, 8
            %vm694 = vcmp.eq.s32.totalorder %v693, %v689
            %v695 = vsel %vm694, %v686, 0.0
            %696 = vadd.xlane.f32.xlu0 %v695
            %v697 = vpop.xlane.xlu0 %696
            %s698 = smov [#allocation22]
            %s699 = scalar_lea.vmem %s698, 8
            %700 = vst [vmem:[%s699] sm:$0xff] %v697
            %s701 = smov [#allocation21]
            %v702 = vld [vmem:[%s701] sm:$0xff]
            %s703 = smov [#allocation22]
            %v704 = vld [vmem:[%s703] sm:$0xff]
            %s705 = smov [#allocation10]
            %s706 = smov [#allocation11]
            %s707 = smov [#allocation12]
            %s708 = smov [#allocation13]
            %v709 = vld [vmem:[%s705] sm:$0xff]
            %v710 = vld [vmem:[%s706] sm:$0xff]
            %v711 = vld [vmem:[%s707] sm:$0xff]
            %v712 = vld [vmem:[%s708] sm:$0xff]
            %v713 = vmul.f32 %v702, %v709
            %v714 = vmul.f32 %v704, %v711
            %v715 = vsub.f32 %v713, %v714
            %v716 = vmul.f32 %v702, %v710
            %v717 = vmul.f32 %v704, %v712
            %v718 = vsub.f32 %v716, %v717
            %v719 = vmul.f32 %v704, %v709
            %v720 = vmul.f32 %v702, %v711
            %v721 = vadd.f32 %v719, %v720
            %v722 = vmul.f32 %v704, %v710
            %v723 = vmul.f32 %v702, %v712
            %v724 = vadd.f32 %v722, %v723
            %725 = vst [vmem:[%s705] sm:$0xff] %v715
            %726 = vst [vmem:[%s706] sm:$0xff] %v718
            %727 = vst [vmem:[%s707] sm:$0xff] %v721
            %728 = vst [vmem:[%s708] sm:$0xff] %v724
            %s729 = smov [#allocation21]
            %s730 = scalar_lea.vmem %s729, 8
            %v731 = vld [vmem:[%s730] sm:$0xff]
            %s732 = smov [#allocation22]
            %s733 = scalar_lea.vmem %s732, 8
            %v734 = vld [vmem:[%s733] sm:$0xff]
            %s735 = smov [#allocation10]
            %s736 = scalar_lea.vmem %s735, 8
            %s737 = smov [#allocation11]
            %s738 = scalar_lea.vmem %s737, 8
            %s739 = smov [#allocation12]
            %s740 = scalar_lea.vmem %s739, 8
            %s741 = smov [#allocation13]
            %s742 = scalar_lea.vmem %s741, 8
            %v743 = vld [vmem:[%s736] sm:$0xf]
            %v744 = vld [vmem:[%s738] sm:$0xf]
            %v745 = vld [vmem:[%s740] sm:$0xf]
            %v746 = vld [vmem:[%s742] sm:$0xf]
            %v747 = vmul.f32 %v731, %v743
            %v748 = vmul.f32 %v734, %v745
            %v749 = vsub.f32 %v747, %v748
            %v750 = vmul.f32 %v731, %v744
            %v751 = vmul.f32 %v734, %v746
            %v752 = vsub.f32 %v750, %v751
            %v753 = vmul.f32 %v734, %v743
            %v754 = vmul.f32 %v731, %v745
            %v755 = vadd.f32 %v753, %v754
            %v756 = vmul.f32 %v734, %v744
            %v757 = vmul.f32 %v731, %v746
            %v758 = vadd.f32 %v756, %v757
            %759 = vst [vmem:[%s736] sm:$0xf] %v749
            %760 = vst [vmem:[%s738] sm:$0xf] %v752
            %761 = vst [vmem:[%s740] sm:$0xf] %v755
            %762 = vst [vmem:[%s742] sm:$0xf] %v758
            %s763 = smov [#allocation19]
            %v764 = vld [vmem:[%s763] ss:$0 sm:$0xff]
            %s765 = smov [#allocation20]
            %v766 = vld [vmem:[%s765] ss:$0 sm:$0xff]
            %s767 = smov [#allocation10]
            %s768 = smov [#allocation11]
            %s769 = smov [#allocation12]
            %s770 = smov [#allocation13]
            %v771 = vld [vmem:[%s767] sm:$0xff]
            %v772 = vld [vmem:[%s768] sm:$0xff]
            %v773 = vld [vmem:[%s769] sm:$0xff]
            %v774 = vld [vmem:[%s770] sm:$0xff]
            %v775 = vmul.f32 %v764, %v771
            %v776 = vmul.f32 %v766, %v772
            %v777 = vsub.f32 %v775, %v776
            %v778 = vmul.f32 %v766, %v771
            %v779 = vmul.f32 %v764, %v772
            %v780 = vadd.f32 %v778, %v779
            %v781 = vmul.f32 %v764, %v773
            %v782 = vmul.f32 %v766, %v774
            %v783 = vsub.f32 %v781, %v782
            %v784 = vmul.f32 %v766, %v773
            %v785 = vmul.f32 %v764, %v774
            %v786 = vadd.f32 %v784, %v785
            %787 = vst [vmem:[%s767] sm:$0xff] %v777
            %788 = vst [vmem:[%s768] sm:$0xff] %v780
            %789 = vst [vmem:[%s769] sm:$0xff] %v783
            %790 = vst [vmem:[%s770] sm:$0xff] %v786
            %s791 = smov [#allocation10]
            %s792 = scalar_lea.vmem %s791, 8
            %s793 = smov [#allocation11]
            %s794 = scalar_lea.vmem %s793, 8
            %s795 = smov [#allocation12]
            %s796 = scalar_lea.vmem %s795, 8
            %s797 = smov [#allocation13]
            %s798 = scalar_lea.vmem %s797, 8
            %v799 = vld [vmem:[%s792] sm:$0xf]
            %v800 = vld [vmem:[%s794] sm:$0xf]
            %v801 = vld [vmem:[%s796] sm:$0xf]
            %v802 = vld [vmem:[%s798] sm:$0xf]
            %v803 = vmul.f32 %v764, %v799
            %v804 = vmul.f32 %v766, %v800
            %v805 = vsub.f32 %v803, %v804
            %v806 = vmul.f32 %v766, %v799
            %v807 = vmul.f32 %v764, %v800
            %v808 = vadd.f32 %v806, %v807
            %v809 = vmul.f32 %v764, %v801
            %v810 = vmul.f32 %v766, %v802
            %v811 = vsub.f32 %v809, %v810
            %v812 = vmul.f32 %v766, %v801
            %v813 = vmul.f32 %v764, %v802
            %v814 = vadd.f32 %v812, %v813
            %815 = vst [vmem:[%s792] sm:$0xf] %v805
            %816 = vst [vmem:[%s794] sm:$0xf] %v808
            %817 = vst [vmem:[%s796] sm:$0xf] %v811
            %818 = vst [vmem:[%s798] sm:$0xf] %v814
            %s819 = smov [#allocation10]
            %s820 = smov [#allocation17]
            %v821 = vlaneseq
            %v822 = vand.u32 %v821, 127
            %v823 = vmov %v822
            %v824 = vlaneseq
            %v825 = vshrl.u32 %v824, 7
            %v826 = vmov %v825
            %v827 = vld [vmem:[%s820] ss:$0 sm:$0xff]
            %v828 = vld [vmem:[%s819] sm:$0xff]
            %vm831 = vcmp.eq.s32.totalorder %v826, %v823
            %v832 = vsel %vm831, %v827, %v828
            %833 = vst [vmem:[%s819] sm:$0xff] %v832
            %v834 = vld [vmem:[%s820] ss:$0 sm:$0xff]
            %s835 = scalar_lea.vmem %s819, 8
            %v836 = vld [vmem:[%s835] sm:$0xf]
            %v838 = vadd.s32 %v826, 8
            %vm839 = vcmp.eq.s32.totalorder %v838, %v823
            %v840 = vsel %vm839, %v834, %v836
            %841 = vst [vmem:[%s835] sm:$0xf] %v840
            %s842 = smov [#allocation11]
            %v843 = vlaneseq
            %v844 = vand.u32 %v843, 127
            %v845 = vmov %v844
            %v846 = vlaneseq
            %v847 = vshrl.u32 %v846, 7
            %v848 = vmov %v847
            %v849 = vld [vmem:[%s842] sm:$0xff]
            %vm852 = vcmp.eq.s32.totalorder %v848, %v845
            %v853 = vsel %vm852, 0.0, %v849
            %854 = vst [vmem:[%s842] sm:$0xff] %v853
            %s855 = scalar_lea.vmem %s842, 8
            %v856 = vld [vmem:[%s855] sm:$0xf]
            %v858 = vadd.s32 %v848, 8
            %vm859 = vcmp.eq.s32.totalorder %v858, %v845
            %v860 = vsel %vm859, 0.0, %v856
            %861 = vst [vmem:[%s855] sm:$0xf] %v860
            %s862 = smov [#allocation12]
            %v863 = vlaneseq
            %v864 = vand.u32 %v863, 127
            %v865 = vmov %v864
            %v866 = vlaneseq
            %v867 = vshrl.u32 %v866, 7
            %v868 = vmov %v867
            %v869 = vld [vmem:[%s862] sm:$0xff]
            %vm872 = vcmp.eq.s32.totalorder %v868, %v865
            %v873 = vsel %vm872, 0.0, %v869
            %874 = vst [vmem:[%s862] sm:$0xff] %v873
            %s875 = scalar_lea.vmem %s862, 8
            %v876 = vld [vmem:[%s875] sm:$0xf]
            %v878 = vadd.s32 %v868, 8
            %vm879 = vcmp.eq.s32.totalorder %v878, %v865
            %v880 = vsel %vm879, 0.0, %v876
            %881 = vst [vmem:[%s875] sm:$0xf] %v880
            %s882 = smov [#allocation13]
            %s883 = smov [#allocation18]
            %v884 = vlaneseq
            %v885 = vand.u32 %v884, 127
            %v886 = vmov %v885
            %v887 = vlaneseq
            %v888 = vshrl.u32 %v887, 7
            %v889 = vmov %v888
            %v890 = vld [vmem:[%s883] ss:$0 sm:$0xff]
            %v891 = vld [vmem:[%s882] sm:$0xff]
            %vm894 = vcmp.eq.s32.totalorder %v889, %v886
            %v895 = vsel %vm894, %v890, %v891
            %896 = vst [vmem:[%s882] sm:$0xff] %v895
            %v897 = vld [vmem:[%s883] ss:$0 sm:$0xff]
            %s898 = scalar_lea.vmem %s882, 8
            %v899 = vld [vmem:[%s898] sm:$0xf]
            %v901 = vadd.s32 %v889, 8
            %vm902 = vcmp.eq.s32.totalorder %v901, %v886
            %v903 = vsel %vm902, %v897, %v899
            %904 = vst [vmem:[%s898] sm:$0xf] %v903
            %s905 = smov [#allocation10]
            %s906 = smov [#allocation11]
            %v907 = vld [vmem:[%s906] sm:$0xff]
            %908 = vrot.lane.b32.xlu0 %v907, 1
            %v909 = vpop.permute.xlu0 %908
            %v910 = vld [vmem:[%s905] sm:$0xff]
            %v911 = vld [vmem:[%s905] sm:$0xff]
            %912 = vrot.lane.b32.xlu0 %v911, 1
            %v913 = vpop.permute.xlu0 %912
            %v914 = vlaneseq
            %v915 = vand.u32 %v914, 127
            %vm916 = vcmp.eq.s32.totalorder %v915, 0
            %v917 = vsel %vm916, %v911, %v913
            %v918 = vlaneseq
            %v919 = vand.u32 %v918, 127
            %vm920 = vcmp.eq.s32.totalorder %v919, 1
            %v921 = vsel %vm920, %v909, %v917
            %v922 = vlaneseq
            %v923 = vand.u32 %v922, 127
            %vm924 = vcmp.ge.s32.totalorder %v923, 0
            %vm925 = vcmp.lt.s32.totalorder %v923, 12
            %vm926 = vmand %vm924, %vm925
            %v927 = vsel %vm926, %v921, 0.0
            %v928 = vld [vmem:[%s906] sm:$0xff]
            %929 = vrot.lane.b32.xlu0 %v928, 127
            %v930 = vpop.permute.xlu0 %929
            %v931 = vlaneseq
            %v932 = vand.u32 %v931, 127
            %vm933 = vcmp.eq.s32.totalorder %v932, 11
            %v934 = vsel %vm933, %v910, %v930
            %s935 = smov [#allocation10]
            %s936 = scalar_lea.vmem %s935, 8
            %s937 = smov [#allocation11]
            %s938 = scalar_lea.vmem %s937, 8
            %v939 = vld [vmem:[%s938] sm:$0xf]
            %940 = vrot.lane.b32.xlu0 %v939, 1
            %v941 = vpop.permute.xlu0 %940
            %v942 = vld [vmem:[%s936] sm:$0xf]
            %v943 = vld [vmem:[%s936] sm:$0xf]
            %944 = vrot.lane.b32.xlu0 %v943, 1
            %v945 = vpop.permute.xlu0 %944
            %v946 = vlaneseq
            %v947 = vand.u32 %v946, 127
            %vm948 = vcmp.eq.s32.totalorder %v947, 0
            %v949 = vsel %vm948, %v943, %v945
            %v950 = vlaneseq
            %v951 = vand.u32 %v950, 127
            %vm952 = vcmp.eq.s32.totalorder %v951, 1
            %v953 = vsel %vm952, %v941, %v949
            %v954 = vlaneseq
            %v955 = vand.u32 %v954, 127
            %vm956 = vcmp.ge.s32.totalorder %v955, 0
            %vm957 = vcmp.lt.s32.totalorder %v955, 12
            %vm958 = vmand %vm956, %vm957
            %v959 = vsel %vm958, %v953, 0.0
            %v960 = vld [vmem:[%s938] sm:$0xf]
            %961 = vrot.lane.b32.xlu0 %v960, 127
            %v962 = vpop.permute.xlu0 %961
            %v963 = vlaneseq
            %v964 = vand.u32 %v963, 127
            %vm965 = vcmp.eq.s32.totalorder %v964, 11
            %v966 = vsel %vm965, %v942, %v962
            %967 = vst [vmem:[%s905] sm:$0xff] %v927
            %968 = vst [vmem:[%s906] sm:$0xff] %v934
            %969 = vst [vmem:[%s936] sm:$0xf] %v959
            %970 = vst [vmem:[%s938] sm:$0xf] %v966
            %s971 = smov [#allocation12]
            %s972 = smov [#allocation13]
            %v973 = vld [vmem:[%s972] sm:$0xff]
            %974 = vrot.lane.b32.xlu0 %v973, 1
            %v975 = vpop.permute.xlu0 %974
            %v976 = vld [vmem:[%s971] sm:$0xff]
            %v977 = vld [vmem:[%s971] sm:$0xff]
            %978 = vrot.lane.b32.xlu0 %v977, 1
            %v979 = vpop.permute.xlu0 %978
            %v980 = vlaneseq
            %v981 = vand.u32 %v980, 127
            %vm982 = vcmp.eq.s32.totalorder %v981, 0
            %v983 = vsel %vm982, %v977, %v979
            %v984 = vlaneseq
            %v985 = vand.u32 %v984, 127
            %vm986 = vcmp.eq.s32.totalorder %v985, 1
            %v987 = vsel %vm986, %v975, %v983
            %v988 = vlaneseq
            %v989 = vand.u32 %v988, 127
            %vm990 = vcmp.ge.s32.totalorder %v989, 0
            %vm991 = vcmp.lt.s32.totalorder %v989, 12
            %vm992 = vmand %vm990, %vm991
            %v993 = vsel %vm992, %v987, 0.0
            %v994 = vld [vmem:[%s972] sm:$0xff]
            %995 = vrot.lane.b32.xlu0 %v994, 127
            %v996 = vpop.permute.xlu0 %995
            %v997 = vlaneseq
            %v998 = vand.u32 %v997, 127
            %vm999 = vcmp.eq.s32.totalorder %v998, 11
            %v1000 = vsel %vm999, %v976, %v996
            %s1001 = smov [#allocation12]
            %s1002 = scalar_lea.vmem %s1001, 8
            %s1003 = smov [#allocation13]
            %s1004 = scalar_lea.vmem %s1003, 8
            %v1005 = vld [vmem:[%s1004] sm:$0xf]
            %1006 = vrot.lane.b32.xlu0 %v1005, 1
            %v1007 = vpop.permute.xlu0 %1006
            %v1008 = vld [vmem:[%s1002] sm:$0xf]
            %v1009 = vld [vmem:[%s1002] sm:$0xf]
            %1010 = vrot.lane.b32.xlu0 %v1009, 1
            %v1011 = vpop.permute.xlu0 %1010
            %v1012 = vlaneseq
            %v1013 = vand.u32 %v1012, 127
            %vm1014 = vcmp.eq.s32.totalorder %v1013, 0
            %v1015 = vsel %vm1014, %v1009, %v1011
            %v1016 = vlaneseq
            %v1017 = vand.u32 %v1016, 127
            %vm1018 = vcmp.eq.s32.totalorder %v1017, 1
            %v1019 = vsel %vm1018, %v1007, %v1015
            %v1020 = vlaneseq
            %v1021 = vand.u32 %v1020, 127
            %vm1022 = vcmp.ge.s32.totalorder %v1021, 0
            %vm1023 = vcmp.lt.s32.totalorder %v1021, 12
            %vm1024 = vmand %vm1022, %vm1023
            %v1025 = vsel %vm1024, %v1019, 0.0
            %v1026 = vld [vmem:[%s1004] sm:$0xf]
            %1027 = vrot.lane.b32.xlu0 %v1026, 127
            %v1028 = vpop.permute.xlu0 %1027
            %v1029 = vlaneseq
            %v1030 = vand.u32 %v1029, 127
            %vm1031 = vcmp.eq.s32.totalorder %v1030, 11
            %v1032 = vsel %vm1031, %v1008, %v1028
            %1033 = vst [vmem:[%s971] sm:$0xff] %v993
            %1034 = vst [vmem:[%s972] sm:$0xff] %v1000
            %1035 = vst [vmem:[%s1002] sm:$0xf] %v1025
            %1036 = vst [vmem:[%s1004] sm:$0xf] %v1032
            %s1037 = smov [#allocation10]
            %s1038 = smov [#allocation12]
            %v1039 = vld [vmem:[%s1037] ss:$0 sm:$0xff]
            %s1041 = scalar_lea.vmem %s1037, 4294967295
            %v1042 = vld [vmem:[%s1041] sm:$0xfe]
            %v1043 = vlaneseq
            %v1044 = vshrl.u32 %v1043, 7
            %vm1045 = vcmp.eq.s32.totalorder %v1044, 0
            %v1046 = vsel %vm1045, %v1039, %v1042
            %s1047 = scalar_lea.vmem %s1037, 7
            %v1048 = vld [vmem:[%s1047] ss:$0 sm:$0xff]
            %1049 = vst [vmem:[%s1037] sm:$0xff] %v1046
            %s1050 = scalar_lea.vmem %s1037, 8
            %s1052 = scalar_lea.vmem %s1050, 4294967295
            %v1053 = vld [vmem:[%s1052] sm:$0xe]
            %v1054 = vlaneseq
            %v1055 = vshrl.u32 %v1054, 7
            %vm1056 = vcmp.eq.s32.totalorder %v1055, 0
            %v1057 = vsel %vm1056, %v1048, %v1053
            %s1058 = scalar_lea.vmem %s1050, 3
            %v1059 = vld [vmem:[%s1058] ss:$0 sm:$0xff]
            %1060 = vst [vmem:[%s1050] sm:$0xf] %v1057
            %v1061 = vld [vmem:[%s1038] ss:$0 sm:$0xff]
            %s1062 = scalar_lea.vmem %s1037, 1
            %1063 = vst [vmem:[%s1062] sm:$0x1] %v1061
            %s1064 = scalar_lea.vmem %s1038, 8
            %s1065 = scalar_lea.vmem %s1064, 1
            %v1066 = vld [vmem:[%s1065] sm:$0x7]
            %v1067 = vlaneseq
            %v1068 = vshrl.u32 %v1067, 7
            %vm1069 = vcmp.eq.s32.totalorder %v1068, 3
            %v1070 = vsel %vm1069, %v1059, %v1066
            %v1071 = vld [vmem:[%s1064] ss:$0 sm:$0xff]
            %1072 = vst [vmem:[%s1064] sm:$0xf] %v1070
            %s1073 = scalar_lea.vmem %s1038, 1
            %v1074 = vld [vmem:[%s1073] sm:$0x7f]
            %v1075 = vlaneseq
            %v1076 = vshrl.u32 %v1075, 7
            %vm1077 = vcmp.eq.s32.totalorder %v1076, 7
            %v1078 = vsel %vm1077, %v1071, %v1074
            %v1079 = vld [vmem:[%s1038] ss:$0 sm:$0xff]
            %1080 = vst [vmem:[%s1038] sm:$0xff] %v1078
            %s1081 = smov [#allocation11]
            %s1082 = smov [#allocation13]
            %v1083 = vld [vmem:[%s1081] ss:$0 sm:$0xff]
            %s1085 = scalar_lea.vmem %s1081, 4294967295
            %v1086 = vld [vmem:[%s1085] sm:$0xfe]
            %v1087 = vlaneseq
            %v1088 = vshrl.u32 %v1087, 7
            %vm1089 = vcmp.eq.s32.totalorder %v1088, 0
            %v1090 = vsel %vm1089, %v1083, %v1086
            %s1091 = scalar_lea.vmem %s1081, 7
            %v1092 = vld [vmem:[%s1091] ss:$0 sm:$0xff]
            %1093 = vst [vmem:[%s1081] sm:$0xff] %v1090
            %s1094 = scalar_lea.vmem %s1081, 8
            %s1096 = scalar_lea.vmem %s1094, 4294967295
            %v1097 = vld [vmem:[%s1096] sm:$0xe]
            %v1098 = vlaneseq
            %v1099 = vshrl.u32 %v1098, 7
            %vm1100 = vcmp.eq.s32.totalorder %v1099, 0
            %v1101 = vsel %vm1100, %v1092, %v1097
            %s1102 = scalar_lea.vmem %s1094, 3
            %v1103 = vld [vmem:[%s1102] ss:$0 sm:$0xff]
            %1104 = vst [vmem:[%s1094] sm:$0xf] %v1101
            %v1105 = vld [vmem:[%s1082] ss:$0 sm:$0xff]
            %s1106 = scalar_lea.vmem %s1081, 1
            %1107 = vst [vmem:[%s1106] sm:$0x1] %v1105
            %s1108 = scalar_lea.vmem %s1082, 8
            %s1109 = scalar_lea.vmem %s1108, 1
            %v1110 = vld [vmem:[%s1109] sm:$0x7]
            %v1111 = vlaneseq
            %v1112 = vshrl.u32 %v1111, 7
            %vm1113 = vcmp.eq.s32.totalorder %v1112, 3
            %v1114 = vsel %vm1113, %v1103, %v1110
            %v1115 = vld [vmem:[%s1108] ss:$0 sm:$0xff]
            %1116 = vst [vmem:[%s1108] sm:$0xf] %v1114
            %s1117 = scalar_lea.vmem %s1082, 1
            %v1118 = vld [vmem:[%s1117] sm:$0x7f]
            %v1119 = vlaneseq
            %v1120 = vshrl.u32 %v1119, 7
            %vm1121 = vcmp.eq.s32.totalorder %v1120, 7
            %v1122 = vsel %vm1121, %v1115, %v1118
            %v1123 = vld [vmem:[%s1082] ss:$0 sm:$0xff]
            %1124 = vst [vmem:[%s1082] sm:$0xff] %v1122
            %s1125 = smov [#allocation21]
            %v1126 = vld [vmem:[%s1125] sm:$0xff]
            %s1127 = smov [#allocation22]
            %v1128 = vld [vmem:[%s1127] sm:$0xff]
            %s1129 = smov %s241
            %s1130 = smov %s245
            %s1131 = smov %s249
            %s1132 = smov %s253
            %v1133 = vld [vmem:[%s1129] sm:$0xff]
            %v1134 = vld [vmem:[%s1130] sm:$0xff]
            %v1135 = vld [vmem:[%s1131] sm:$0xff]
            %v1136 = vld [vmem:[%s1132] sm:$0xff]
            %v1137 = vmul.f32 %v1126, %v1133
            %v1138 = vmul.f32 %v1128, %v1135
            %v1139 = vsub.f32 %v1137, %v1138
            %v1140 = vmul.f32 %v1126, %v1134
            %v1141 = vmul.f32 %v1128, %v1136
            %v1142 = vsub.f32 %v1140, %v1141
            %v1143 = vmul.f32 %v1128, %v1133
            %v1144 = vmul.f32 %v1126, %v1135
            %v1145 = vadd.f32 %v1143, %v1144
            %v1146 = vmul.f32 %v1128, %v1134
            %v1147 = vmul.f32 %v1126, %v1136
            %v1148 = vadd.f32 %v1146, %v1147
            %1149 = vst [vmem:[%s1129] sm:$0xff] %v1139
            %1150 = vst [vmem:[%s1130] sm:$0xff] %v1142
            %1151 = vst [vmem:[%s1131] sm:$0xff] %v1145
            %1152 = vst [vmem:[%s1132] sm:$0xff] %v1148
            %s1153 = smov [#allocation21]
            %s1154 = scalar_lea.vmem %s1153, 8
            %v1155 = vld [vmem:[%s1154] sm:$0xff]
            %s1156 = smov [#allocation22]
            %s1157 = scalar_lea.vmem %s1156, 8
            %v1158 = vld [vmem:[%s1157] sm:$0xff]
            %s1159 = smov %s241
            %s1160 = scalar_lea.vmem %s1159, 8
            %s1161 = smov %s245
            %s1162 = scalar_lea.vmem %s1161, 8
            %s1163 = smov %s249
            %s1164 = scalar_lea.vmem %s1163, 8
            %s1165 = smov %s253
            %s1166 = scalar_lea.vmem %s1165, 8
            %v1167 = vld [vmem:[%s1160] sm:$0xf]
            %v1168 = vld [vmem:[%s1162] sm:$0xf]
            %v1169 = vld [vmem:[%s1164] sm:$0xf]
            %v1170 = vld [vmem:[%s1166] sm:$0xf]
            %v1171 = vmul.f32 %v1155, %v1167
            %v1172 = vmul.f32 %v1158, %v1169
            %v1173 = vsub.f32 %v1171, %v1172
            %v1174 = vmul.f32 %v1155, %v1168
            %v1175 = vmul.f32 %v1158, %v1170
            %v1176 = vsub.f32 %v1174, %v1175
            %v1177 = vmul.f32 %v1158, %v1167
            %v1178 = vmul.f32 %v1155, %v1169
            %v1179 = vadd.f32 %v1177, %v1178
            %v1180 = vmul.f32 %v1158, %v1168
            %v1181 = vmul.f32 %v1155, %v1170
            %v1182 = vadd.f32 %v1180, %v1181
            %1183 = vst [vmem:[%s1160] sm:$0xf] %v1173
            %1184 = vst [vmem:[%s1162] sm:$0xf] %v1176
            %1185 = vst [vmem:[%s1164] sm:$0xf] %v1179
            %1186 = vst [vmem:[%s1166] sm:$0xf] %v1182
            %s1187 = smov %s241
            %s1188 = smov %s249
            %v1189 = vld [vmem:[%s1187] ss:$0 sm:$0xff]
            %s1191 = scalar_lea.vmem %s1187, 4294967295
            %v1192 = vld [vmem:[%s1191] sm:$0xfe]
            %v1193 = vlaneseq
            %v1194 = vshrl.u32 %v1193, 7
            %vm1195 = vcmp.eq.s32.totalorder %v1194, 0
            %v1196 = vsel %vm1195, %v1189, %v1192
            %s1197 = scalar_lea.vmem %s1187, 7
            %v1198 = vld [vmem:[%s1197] ss:$0 sm:$0xff]
            %1199 = vst [vmem:[%s1187] sm:$0xff] %v1196
            %s1200 = scalar_lea.vmem %s1187, 8
            %s1202 = scalar_lea.vmem %s1200, 4294967295
            %v1203 = vld [vmem:[%s1202] sm:$0xe]
            %v1204 = vlaneseq
            %v1205 = vshrl.u32 %v1204, 7
            %vm1206 = vcmp.eq.s32.totalorder %v1205, 0
            %v1207 = vsel %vm1206, %v1198, %v1203
            %s1208 = scalar_lea.vmem %s1200, 3
            %v1209 = vld [vmem:[%s1208] ss:$0 sm:$0xff]
            %1210 = vst [vmem:[%s1200] sm:$0xf] %v1207
            %v1211 = vld [vmem:[%s1188] ss:$0 sm:$0xff]
            %s1212 = scalar_lea.vmem %s1187, 1
            %1213 = vst [vmem:[%s1212] sm:$0x1] %v1211
            %s1214 = scalar_lea.vmem %s1188, 8
            %s1215 = scalar_lea.vmem %s1214, 1
            %v1216 = vld [vmem:[%s1215] sm:$0x7]
            %v1217 = vlaneseq
            %v1218 = vshrl.u32 %v1217, 7
            %vm1219 = vcmp.eq.s32.totalorder %v1218, 3
            %v1220 = vsel %vm1219, %v1209, %v1216
            %v1221 = vld [vmem:[%s1214] ss:$0 sm:$0xff]
            %1222 = vst [vmem:[%s1214] sm:$0xf] %v1220
            %s1223 = scalar_lea.vmem %s1188, 1
            %v1224 = vld [vmem:[%s1223] sm:$0x7f]
            %v1225 = vlaneseq
            %v1226 = vshrl.u32 %v1225, 7
            %vm1227 = vcmp.eq.s32.totalorder %v1226, 7
            %v1228 = vsel %vm1227, %v1221, %v1224
            %v1229 = vld [vmem:[%s1188] ss:$0 sm:$0xff]
            %1230 = vst [vmem:[%s1188] sm:$0xff] %v1228
            %s1231 = smov %s245
            %s1232 = smov %s253
            %v1233 = vld [vmem:[%s1231] ss:$0 sm:$0xff]
            %s1235 = scalar_lea.vmem %s1231, 4294967295
            %v1236 = vld [vmem:[%s1235] sm:$0xfe]
            %v1237 = vlaneseq
            %v1238 = vshrl.u32 %v1237, 7
            %vm1239 = vcmp.eq.s32.totalorder %v1238, 0
            %v1240 = vsel %vm1239, %v1233, %v1236
            %s1241 = scalar_lea.vmem %s1231, 7
            %v1242 = vld [vmem:[%s1241] ss:$0 sm:$0xff]
            %1243 = vst [vmem:[%s1231] sm:$0xff] %v1240
            %s1244 = scalar_lea.vmem %s1231, 8
            %s1246 = scalar_lea.vmem %s1244, 4294967295
            %v1247 = vld [vmem:[%s1246] sm:$0xe]
            %v1248 = vlaneseq
            %v1249 = vshrl.u32 %v1248, 7
            %vm1250 = vcmp.eq.s32.totalorder %v1249, 0
            %v1251 = vsel %vm1250, %v1242, %v1247
            %s1252 = scalar_lea.vmem %s1244, 3
            %v1253 = vld [vmem:[%s1252] ss:$0 sm:$0xff]
            %1254 = vst [vmem:[%s1244] sm:$0xf] %v1251
            %v1255 = vld [vmem:[%s1232] ss:$0 sm:$0xff]
            %s1256 = scalar_lea.vmem %s1231, 1
            %1257 = vst [vmem:[%s1256] sm:$0x1] %v1255
            %s1258 = scalar_lea.vmem %s1232, 8
            %s1259 = scalar_lea.vmem %s1258, 1
            %v1260 = vld [vmem:[%s1259] sm:$0x7]
            %v1261 = vlaneseq
            %v1262 = vshrl.u32 %v1261, 7
            %vm1263 = vcmp.eq.s32.totalorder %v1262, 3
            %v1264 = vsel %vm1263, %v1253, %v1260
            %v1265 = vld [vmem:[%s1258] ss:$0 sm:$0xff]
            %1266 = vst [vmem:[%s1258] sm:$0xf] %v1264
            %s1267 = scalar_lea.vmem %s1232, 1
            %v1268 = vld [vmem:[%s1267] sm:$0x7f]
            %v1269 = vlaneseq
            %v1270 = vshrl.u32 %v1269, 7
            %vm1271 = vcmp.eq.s32.totalorder %v1270, 7
            %v1272 = vsel %vm1271, %v1265, %v1268
            %v1273 = vld [vmem:[%s1232] ss:$0 sm:$0xff]
            %1274 = vst [vmem:[%s1232] sm:$0xff] %v1272
          $region108: #{custom-call.4} parent=100 // loop_footer
            %s471 = sadd.s32 1, %s467
          $region109: #{custom-call.4} parent=100 // loop_footer_branch
            %466 = sbr.rel target = $region105
          $region110: #{custom-call.4} parent=100 // loop_exit
            _
          %s1275 = sadd.s32 %s337, 1
        $region101: #{custom-call.4} parent=95 // loop_footer
          _
        $region102: #{custom-call.4} parent=95 // loop_footer_branch
          %336 = sbr.rel target = $region98
        $region103: #{custom-call.4} parent=95 // loop_exit
          _
        %s1278 = sand.u32 %s17, 7
        %s1279 = scalar_lea.vmem %s231, %s1278 [#allocation4]
        %s1280 = sand.u32 %s17, 7
        %s1281 = scalar_lea.vmem %s237, %s1280 [#allocation5]
        %s1282 = smov [#allocation10]
        %s1283 = smov %s1279
        %v1284 = vlaneseq
        %v1285 = vand.u32 %v1284, 127
        %v1286 = vmov %v1285
        %v1287 = vlaneseq
        %v1288 = vshrl.u32 %v1287, 7
        %v1289 = vmov %v1288
        %v1290 = vld [vmem:[%s1282] sm:$0xff]
        %vm1293 = vcmp.eq.s32.totalorder %v1289, %v1286
        %v1294 = vsel %vm1293, %v1290, 0.0
        %s1295 = scalar_lea.vmem %s1282, 8
        %v1296 = vld [vmem:[%s1295] sm:$0xf]
        %v1298 = vadd.s32 %v1289, 8
        %vm1299 = vcmp.eq.s32.totalorder %v1298, %v1286
        %v1300 = vsel %vm1299, %v1296, %v1294
        %v1301 = vrot.slane %v1300, 4
        %v1302 = vadd.f32 %v1300, %v1301
        %v1303 = vrot.slane %v1302, 2
        %v1304 = vadd.f32 %v1302, %v1303
        %v1305 = vrot.slane %v1304, 1
        %v1306 = vadd.f32 %v1304, %v1305
        %1307 = vst [vmem:[%s1283] sm:$0x1] %v1306
        %s1308 = smov [#allocation13]
        %s1309 = smov %s1281
        %v1310 = vlaneseq
        %v1311 = vand.u32 %v1310, 127
        %v1312 = vmov %v1311
        %v1313 = vlaneseq
        %v1314 = vshrl.u32 %v1313, 7
        %v1315 = vmov %v1314
        %v1316 = vld [vmem:[%s1308] sm:$0xff]
        %vm1319 = vcmp.eq.s32.totalorder %v1315, %v1312
        %v1320 = vsel %vm1319, %v1316, 0.0
        %s1321 = scalar_lea.vmem %s1308, 8
        %v1322 = vld [vmem:[%s1321] sm:$0xf]
        %v1324 = vadd.s32 %v1315, 8
        %vm1325 = vcmp.eq.s32.totalorder %v1324, %v1312
        %v1326 = vsel %vm1325, %v1322, %v1320
        %v1327 = vrot.slane %v1326, 4
        %v1328 = vadd.f32 %v1326, %v1327
        %v1329 = vrot.slane %v1328, 2
        %v1330 = vadd.f32 %v1328, %v1329
        %v1331 = vrot.slane %v1330, 1
        %v1332 = vadd.f32 %v1330, %v1331
        %1333 = vst [vmem:[%s1309] sm:$0x1] %v1332
        %s1334 = sand.u32 %s27, 1
        %s1335 = sand.u32 %s27, 1
        %s1336 = smul.addr %s1335, 8
        %s1337 = scalar_lea.vmem [#allocation4], %s1336
        %s1338 = sand.u32 %s55, 1
        %s1339 = sand.u32 %s55, 1
        %s1340 = smul.addr %s1339, 8
        %s1341 = scalar_lea.vmem [#allocation5], %s1340
        %s1342 = sand.u32 %s17, 1
        %s1343 = sand.u32 %s17, 1
        %s1344 = smul.addr %s1343, 16
        %s1345 = scalar_lea.vmem [#allocation6], %s1344
        %s1346 = sand.u32 %s17, 1
        %s1347 = sand.u32 %s17, 1
        %s1348 = smul.addr %s1347, 16
        %s1349 = scalar_lea.vmem [#allocation7], %s1348
        %s1350 = sand.u32 %s17, 1
        %s1351 = sand.u32 %s17, 1
        %s1352 = smul.addr %s1351, 16
        %s1353 = scalar_lea.vmem [#allocation8], %s1352
        %s1354 = sand.u32 %s17, 1
        %s1355 = sand.u32 %s17, 1
        %s1356 = smul.addr %s1355, 16
        %s1357 = scalar_lea.vmem [#allocation9], %s1356
        // Predicated region
        $region111: #{custom-call.4} parent=95 // pred_check
          %p1358 = pneg %p37
        $region112: #{custom-call.4} parent=95 // pred_check_branch
          %1360 = sbr.rel (%p1358) target = $region114
        $region113: #{custom-call.4} parent=95 // pred_region
          %s1361 = sshrl.u32 %s17, 3
          %s1362 = smul.addr %s1361, 8
          %s1363 = scalar_lea.vmem %s4, %s1362
          // Predicated region
          $region115: #{custom-call.4} parent=113 // pred_check
            _
          $region116: #{custom-call.4} parent=113 // pred_check_branch
            %1365 = sbr.rel (0) target = $region118
          $region117: #{custom-call.4} parent=113 // pred_region
            // Predicated region
            $region119: #{custom-call.4} parent=117 // pred_check
              _
            $region120: #{custom-call.4} parent=117 // pred_check_branch
              %1367 = sbr.rel (0) target = $region122
            $region121: #{custom-call.4} parent=117 // pred_region
              // Predicated region
              $region134: #{custom-call.4} parent=121 // pred_check
                _
              $region135: #{custom-call.4} parent=121 // pred_check_branch
                %1383 = sbr.rel (0) target = $region137
              $region136: #{custom-call.4} parent=121 // pred_region
                loop: start=0, step=1, limit=1
                $region138: #{custom-call.4} parent=136 // loop_pre_header
                  _
                $region139: #{custom-call.4} parent=136 // loop_header
                  %s1385 = sphi 0, %s1389
                  %p1386 = scmp.ge.s32.totalorder %s1385, 1
                  %s1390 = sphi %s1337, %s1337
                  %s1391 = sphi %s1363, %s1363
                $region140: #{custom-call.4} parent=136 // loop_header_branch
                  %1388 = sbr.rel (%p1386) target = $region144
                $region141: #{custom-call.4} parent=136 // loop_body
                  %v1392 = vld [vmem:[%s1390] sm:$0xff]
                  %1393 = vst [vmem:[%s1391] sm:$0xff] %v1392
                $region142: #{custom-call.4} parent=136 // loop_footer
                  %s1389 = sadd.s32 1, %s1385
                $region143: #{custom-call.4} parent=136 // loop_footer_branch
                  %1384 = sbr.rel target = $region139
                $region144: #{custom-call.4} parent=136 // loop_exit
                  _
              $region137: #{custom-call.4} parent=121 // pred_fallthru
                _
              // Predicated region
              $region145: #{custom-call.4} parent=121 // pred_check
                _
              $region146: #{custom-call.4} parent=121 // pred_check_branch
                %1395 = sbr.rel target = $region148
              $region147: #{custom-call.4} parent=121 // pred_region
                _
              $region148: #{custom-call.4} parent=121 // pred_fallthru
                _
            $region122: #{custom-call.4} parent=117 // pred_fallthru
              _
            // Predicated region
            $region123: #{custom-call.4} parent=117 // pred_check
              _
            $region124: #{custom-call.4} parent=117 // pred_check_branch
              %1369 = sbr.rel target = $region126
            $region125: #{custom-call.4} parent=117 // pred_region
              %s1371 = ssub.s32 256, 1
              loop: start=0, step=1, limit=1
              $region127: #{custom-call.4} parent=125 // loop_pre_header
                _
              $region128: #{custom-call.4} parent=125 // loop_header
                %s1373 = sphi 0, %s1377
                %p1374 = scmp.ge.s32.totalorder %s1373, 1
                %s1378 = sphi %s1337, %s1337
                %s1379 = sphi %s1363, %s1363
              $region129: #{custom-call.4} parent=125 // loop_header_branch
                %1376 = sbr.rel (%p1374) target = $region133
              $region130: #{custom-call.4} parent=125 // loop_body
                %v1380 = vld [vmem:[%s1378] sm:%s1371]
                %1381 = vst [vmem:[%s1379] sm:%s1371] %v1380
              $region131: #{custom-call.4} parent=125 // loop_footer
                %s1377 = sadd.s32 1, %s1373
              $region132: #{custom-call.4} parent=125 // loop_footer_branch
                %1372 = sbr.rel target = $region128
              $region133: #{custom-call.4} parent=125 // loop_exit
                _
            $region126: #{custom-call.4} parent=117 // pred_fallthru
              _
          $region118: #{custom-call.4} parent=113 // pred_fallthru
            _
          %1396 = vnop
        $region114: #{custom-call.4} parent=95 // pred_fallthru
          _
        // Predicated region
        $region149: #{custom-call.4} parent=95 // pred_check
          %p1397 = pneg %p65
        $region150: #{custom-call.4} parent=95 // pred_check_branch
          %1399 = sbr.rel (%p1397) target = $region152
        $region151: #{custom-call.4} parent=95 // pred_region
          %s1400 = sshrl.u32 %s17, 3
          %s1401 = smul.addr %s1400, 8
          %s1402 = scalar_lea.vmem %s5, %s1401
          // Predicated region
          $region153: #{custom-call.4} parent=151 // pred_check
            _
          $region154: #{custom-call.4} parent=151 // pred_check_branch
            %1404 = sbr.rel (0) target = $region156
          $region155: #{custom-call.4} parent=151 // pred_region
            // Predicated region
            $region157: #{custom-call.4} parent=155 // pred_check
              _
            $region158: #{custom-call.4} parent=155 // pred_check_branch
              %1406 = sbr.rel (0) target = $region160
            $region159: #{custom-call.4} parent=155 // pred_region
              // Predicated region
              $region172: #{custom-call.4} parent=159 // pred_check
                _
              $region173: #{custom-call.4} parent=159 // pred_check_branch
                %1422 = sbr.rel (0) target = $region175
              $region174: #{custom-call.4} parent=159 // pred_region
                loop: start=0, step=1, limit=1
                $region176: #{custom-call.4} parent=174 // loop_pre_header
                  _
                $region177: #{custom-call.4} parent=174 // loop_header
                  %s1424 = sphi 0, %s1428
                  %p1425 = scmp.ge.s32.totalorder %s1424, 1
                  %s1429 = sphi %s1341, %s1341
                  %s1430 = sphi %s1402, %s1402
                $region178: #{custom-call.4} parent=174 // loop_header_branch
                  %1427 = sbr.rel (%p1425) target = $region182
                $region179: #{custom-call.4} parent=174 // loop_body
                  %v1431 = vld [vmem:[%s1429] sm:$0xff]
                  %1432 = vst [vmem:[%s1430] sm:$0xff] %v1431
                $region180: #{custom-call.4} parent=174 // loop_footer
                  %s1428 = sadd.s32 1, %s1424
                $region181: #{custom-call.4} parent=174 // loop_footer_branch
                  %1423 = sbr.rel target = $region177
                $region182: #{custom-call.4} parent=174 // loop_exit
                  _
              $region175: #{custom-call.4} parent=159 // pred_fallthru
                _
              // Predicated region
              $region183: #{custom-call.4} parent=159 // pred_check
                _
              $region184: #{custom-call.4} parent=159 // pred_check_branch
                %1434 = sbr.rel target = $region186
              $region185: #{custom-call.4} parent=159 // pred_region
                _
              $region186: #{custom-call.4} parent=159 // pred_fallthru
                _
            $region160: #{custom-call.4} parent=155 // pred_fallthru
              _
            // Predicated region
            $region161: #{custom-call.4} parent=155 // pred_check
              _
            $region162: #{custom-call.4} parent=155 // pred_check_branch
              %1408 = sbr.rel target = $region164
            $region163: #{custom-call.4} parent=155 // pred_region
              %s1410 = ssub.s32 256, 1
              loop: start=0, step=1, limit=1
              $region165: #{custom-call.4} parent=163 // loop_pre_header
                _
              $region166: #{custom-call.4} parent=163 // loop_header
                %s1412 = sphi 0, %s1416
                %p1413 = scmp.ge.s32.totalorder %s1412, 1
                %s1417 = sphi %s1341, %s1341
                %s1418 = sphi %s1402, %s1402
              $region167: #{custom-call.4} parent=163 // loop_header_branch
                %1415 = sbr.rel (%p1413) target = $region171
              $region168: #{custom-call.4} parent=163 // loop_body
                %v1419 = vld [vmem:[%s1417] sm:%s1410]
                %1420 = vst [vmem:[%s1418] sm:%s1410] %v1419
              $region169: #{custom-call.4} parent=163 // loop_footer
                %s1416 = sadd.s32 1, %s1412
              $region170: #{custom-call.4} parent=163 // loop_footer_branch
                %1411 = sbr.rel target = $region166
              $region171: #{custom-call.4} parent=163 // loop_exit
                _
            $region164: #{custom-call.4} parent=155 // pred_fallthru
              _
          $region156: #{custom-call.4} parent=151 // pred_fallthru
            _
          %1435 = vnop
        $region152: #{custom-call.4} parent=95 // pred_fallthru
          _
        %s1436 = smul.addr %s17, 16
        %s1437 = scalar_lea.vmem %s6, %s1436
        // Predicated region
        $region187: #{custom-call.4} parent=95 // pred_check
          _
        $region188: #{custom-call.4} parent=95 // pred_check_branch
          %1439 = sbr.rel (0) target = $region190
        $region189: #{custom-call.4} parent=95 // pred_region
          // Predicated region
          $region191: #{custom-call.4} parent=189 // pred_check
            _
          $region192: #{custom-call.4} parent=189 // pred_check_branch
            %1441 = sbr.rel (0) target = $region194
          $region193: #{custom-call.4} parent=189 // pred_region
            loop: start=0, step=1, limit=1
            $region195: #{custom-call.4} parent=193 // loop_pre_header
              _
            $region196: #{custom-call.4} parent=193 // loop_header
              %s1443 = sphi 0, %s1447
              %p1444 = scmp.ge.s32.totalorder %s1443, 1
              %s1448 = sphi %s1345, %s1345
              %s1449 = sphi %s1437, %s1437
            $region197: #{custom-call.4} parent=193 // loop_header_branch
              %1446 = sbr.rel (%p1444) target = $region201
            $region198: #{custom-call.4} parent=193 // loop_body
              %v1450 = vld [vmem:[%s1448] sm:$0xff]
              %1451 = vst [vmem:[%s1449] sm:$0xff] %v1450
              %v1452 = vld [vmem:[%s1448 + $0x8] sm:$0xff]
              %1453 = vst [vmem:[%s1449 + $0x8] sm:$0xff] %v1452
            $region199: #{custom-call.4} parent=193 // loop_footer
              %s1447 = sadd.s32 1, %s1443
            $region200: #{custom-call.4} parent=193 // loop_footer_branch
              %1442 = sbr.rel target = $region196
            $region201: #{custom-call.4} parent=193 // loop_exit
              _
          $region194: #{custom-call.4} parent=189 // pred_fallthru
            _
          // Predicated region
          $region202: #{custom-call.4} parent=189 // pred_check
            _
          $region203: #{custom-call.4} parent=189 // pred_check_branch
            %1455 = sbr.rel target = $region205
          $region204: #{custom-call.4} parent=189 // pred_region
            _
          $region205: #{custom-call.4} parent=189 // pred_fallthru
            _
        $region190: #{custom-call.4} parent=95 // pred_fallthru
          _
        %1456 = vnop
        %s1457 = smul.addr %s17, 16
        %s1458 = scalar_lea.vmem %s7, %s1457
        // Predicated region
        $region206: #{custom-call.4} parent=95 // pred_check
          _
        $region207: #{custom-call.4} parent=95 // pred_check_branch
          %1460 = sbr.rel (0) target = $region209
        $region208: #{custom-call.4} parent=95 // pred_region
          // Predicated region
          $region210: #{custom-call.4} parent=208 // pred_check
            _
          $region211: #{custom-call.4} parent=208 // pred_check_branch
            %1462 = sbr.rel (0) target = $region213
          $region212: #{custom-call.4} parent=208 // pred_region
            loop: start=0, step=1, limit=1
            $region214: #{custom-call.4} parent=212 // loop_pre_header
              _
            $region215: #{custom-call.4} parent=212 // loop_header
              %s1464 = sphi 0, %s1468
              %p1465 = scmp.ge.s32.totalorder %s1464, 1
              %s1469 = sphi %s1349, %s1349
              %s1470 = sphi %s1458, %s1458
            $region216: #{custom-call.4} parent=212 // loop_header_branch
              %1467 = sbr.rel (%p1465) target = $region220
            $region217: #{custom-call.4} parent=212 // loop_body
              %v1471 = vld [vmem:[%s1469] sm:$0xff]
              %1472 = vst [vmem:[%s1470] sm:$0xff] %v1471
              %v1473 = vld [vmem:[%s1469 + $0x8] sm:$0xff]
              %1474 = vst [vmem:[%s1470 + $0x8] sm:$0xff] %v1473
            $region218: #{custom-call.4} parent=212 // loop_footer
              %s1468 = sadd.s32 1, %s1464
            $region219: #{custom-call.4} parent=212 // loop_footer_branch
              %1463 = sbr.rel target = $region215
            $region220: #{custom-call.4} parent=212 // loop_exit
              _
          $region213: #{custom-call.4} parent=208 // pred_fallthru
            _
          // Predicated region
          $region221: #{custom-call.4} parent=208 // pred_check
            _
          $region222: #{custom-call.4} parent=208 // pred_check_branch
            %1476 = sbr.rel target = $region224
          $region223: #{custom-call.4} parent=208 // pred_region
            _
          $region224: #{custom-call.4} parent=208 // pred_fallthru
            _
        $region209: #{custom-call.4} parent=95 // pred_fallthru
          _
        %1477 = vnop
        %s1478 = smul.addr %s17, 16
        %s1479 = scalar_lea.vmem %s8, %s1478
        // Predicated region
        $region225: #{custom-call.4} parent=95 // pred_check
          _
        $region226: #{custom-call.4} parent=95 // pred_check_branch
          %1481 = sbr.rel (0) target = $region228
        $region227: #{custom-call.4} parent=95 // pred_region
          // Predicated region
          $region229: #{custom-call.4} parent=227 // pred_check
            _
          $region230: #{custom-call.4} parent=227 // pred_check_branch
            %1483 = sbr.rel (0) target = $region232
          $region231: #{custom-call.4} parent=227 // pred_region
            loop: start=0, step=1, limit=1
            $region233: #{custom-call.4} parent=231 // loop_pre_header
              _
            $region234: #{custom-call.4} parent=231 // loop_header
              %s1485 = sphi 0, %s1489
              %p1486 = scmp.ge.s32.totalorder %s1485, 1
              %s1490 = sphi %s1353, %s1353
              %s1491 = sphi %s1479, %s1479
            $region235: #{custom-call.4} parent=231 // loop_header_branch
              %1488 = sbr.rel (%p1486) target = $region239
            $region236: #{custom-call.4} parent=231 // loop_body
              %v1492 = vld [vmem:[%s1490] sm:$0xff]
              %1493 = vst [vmem:[%s1491] sm:$0xff] %v1492
              %v1494 = vld [vmem:[%s1490 + $0x8] sm:$0xff]
              %1495 = vst [vmem:[%s1491 + $0x8] sm:$0xff] %v1494
            $region237: #{custom-call.4} parent=231 // loop_footer
              %s1489 = sadd.s32 1, %s1485
            $region238: #{custom-call.4} parent=231 // loop_footer_branch
              %1484 = sbr.rel target = $region234
            $region239: #{custom-call.4} parent=231 // loop_exit
              _
          $region232: #{custom-call.4} parent=227 // pred_fallthru
            _
          // Predicated region
          $region240: #{custom-call.4} parent=227 // pred_check
            _
          $region241: #{custom-call.4} parent=227 // pred_check_branch
            %1497 = sbr.rel target = $region243
          $region242: #{custom-call.4} parent=227 // pred_region
            _
          $region243: #{custom-call.4} parent=227 // pred_fallthru
            _
        $region228: #{custom-call.4} parent=95 // pred_fallthru
          _
        %1498 = vnop
        %s1499 = smul.addr %s17, 16
        %s1500 = scalar_lea.vmem %s9, %s1499
        // Predicated region
        $region244: #{custom-call.4} parent=95 // pred_check
          _
        $region245: #{custom-call.4} parent=95 // pred_check_branch
          %1502 = sbr.rel (0) target = $region247
        $region246: #{custom-call.4} parent=95 // pred_region
          // Predicated region
          $region248: #{custom-call.4} parent=246 // pred_check
            _
          $region249: #{custom-call.4} parent=246 // pred_check_branch
            %1504 = sbr.rel (0) target = $region251
          $region250: #{custom-call.4} parent=246 // pred_region
            loop: start=0, step=1, limit=1
            $region252: #{custom-call.4} parent=250 // loop_pre_header
              _
            $region253: #{custom-call.4} parent=250 // loop_header
              %s1506 = sphi 0, %s1510
              %p1507 = scmp.ge.s32.totalorder %s1506, 1
              %s1511 = sphi %s1357, %s1357
              %s1512 = sphi %s1500, %s1500
            $region254: #{custom-call.4} parent=250 // loop_header_branch
              %1509 = sbr.rel (%p1507) target = $region258
            $region255: #{custom-call.4} parent=250 // loop_body
              %v1513 = vld [vmem:[%s1511] sm:$0xff]
              %1514 = vst [vmem:[%s1512] sm:$0xff] %v1513
              %v1515 = vld [vmem:[%s1511 + $0x8] sm:$0xff]
              %1516 = vst [vmem:[%s1512 + $0x8] sm:$0xff] %v1515
            $region256: #{custom-call.4} parent=250 // loop_footer
              %s1510 = sadd.s32 1, %s1506
            $region257: #{custom-call.4} parent=250 // loop_footer_branch
              %1505 = sbr.rel target = $region253
            $region258: #{custom-call.4} parent=250 // loop_exit
              _
          $region251: #{custom-call.4} parent=246 // pred_fallthru
            _
          // Predicated region
          $region259: #{custom-call.4} parent=246 // pred_check
            _
          $region260: #{custom-call.4} parent=246 // pred_check_branch
            %1518 = sbr.rel target = $region262
          $region261: #{custom-call.4} parent=246 // pred_region
            _
          $region262: #{custom-call.4} parent=246 // pred_fallthru
            _
        $region247: #{custom-call.4} parent=95 // pred_fallthru
          _
        %1519 = vnop
      $region96: #{custom-call.4} parent=5 // pred_fallthru
        _
      %p1520 = scmp.le.s32.totalorder 2, %s12
      // Predicated region
      $region263: #{custom-call.4} parent=5 // pred_check
        %p1521 = pneg %p1520
      $region264: #{custom-call.4} parent=5 // pred_check_branch
        %1523 = sbr.rel (%p1521) target = $region266
      $region265: #{custom-call.4} parent=5 // pred_region
        %s1524 = ssub.s32 %s12, 2
        // Predicated region
        $region267: #{custom-call.4} parent=265 // pred_check
          %p1525 = pneg %p43
        $region268: #{custom-call.4} parent=265 // pred_check_branch
          %1527 = sbr.rel (%p1525) target = $region270
        $region269: #{custom-call.4} parent=265 // pred_region
          %s1528 = sand.u32 %s28, 1
          %s1529 = sand.u32 %s28, 1
          %s1530 = smul.addr %s1529, 8
          %s1531 = scalar_lea.vmem [#allocation4], %s1530
        $region270: #{custom-call.4} parent=265 // pred_fallthru
          _
        // Predicated region
        $region271: #{custom-call.4} parent=265 // pred_check
          %p1532 = pneg %p71
        $region272: #{custom-call.4} parent=265 // pred_check_branch
          %1534 = sbr.rel (%p1532) target = $region274
        $region273: #{custom-call.4} parent=265 // pred_region
          %s1535 = sand.u32 %s56, 1
          %s1536 = sand.u32 %s56, 1
          %s1537 = smul.addr %s1536, 8
          %s1538 = scalar_lea.vmem [#allocation5], %s1537
        $region274: #{custom-call.4} parent=265 // pred_fallthru
          _
        %s1539 = sand.u32 %s18, 1
        %s1540 = sand.u32 %s18, 1
        %s1541 = smul.addr %s1540, 16
        %s1542 = scalar_lea.vmem [#allocation6], %s1541
        %s1543 = sand.u32 %s18, 1
        %s1544 = sand.u32 %s18, 1
        %s1545 = smul.addr %s1544, 16
        %s1546 = scalar_lea.vmem [#allocation7], %s1545
        %s1547 = sand.u32 %s18, 1
        %s1548 = sand.u32 %s18, 1
        %s1549 = smul.addr %s1548, 16
        %s1550 = scalar_lea.vmem [#allocation8], %s1549
        %s1551 = sand.u32 %s18, 1
        %s1552 = sand.u32 %s18, 1
        %s1553 = smul.addr %s1552, 16
        %s1554 = scalar_lea.vmem [#allocation9], %s1553
      $region266: #{custom-call.4} parent=5 // pred_fallthru
        _
    $region6: #{custom-call.4} parent=1 // loop_footer
      %s16 = sadd.s32 1, %s12
    $region7: #{custom-call.4} parent=1 // loop_footer_branch
      %11 = sbr.rel target = $region3
    $region8: #{custom-call.4} parent=1 // loop_exit
      _

// kernel: tensor_cspnet_forward.3
$region0: #{tensor_cspnet_forward.3}
  #allocation0 [shape = 'u32[]', space=smem, size = 0x4, offset = 0x4, fixed_abs, tag = 'smem constant byte address 0x4 - core index']
  #allocation1 [shape = 'u32[72,128]{1,0:T(1,128)}', space=vmem, size = 0x9000, scoped, tag = 'internal scratch']
  %s0 = inlined_call_operand.vmem [shape: f32[3,24,48], index: 0, kind: input, shape index: {}]
  %s1 = inlined_call_operand.vmem [shape: f32[3,24,24], index: 1, kind: input, shape index: {}]
  %s2 = inlined_call_operand.vmem [shape: f32[3,48,48], index: 2, kind: input, shape index: {}]
  %s3 = inlined_call_operand.vmem [shape: f32[3,24,48], index: 3, kind: output, shape index: {}]
  %s4 = sld [smem:[#allocation0]]
  $region22: #{tensor_cspnet_forward.3} parent=0
    _
  %s6 = ssub.s32 1, %s4
  %s7 = scalar_select 0, %s6, %s4
  // Predicated region
  $region2: #{tensor_cspnet_forward.3} parent=0 // pred_check
    _
  $region3: #{tensor_cspnet_forward.3} parent=0 // pred_check_branch
    %9 = sbr.rel (0) target = $region5
  $region4: #{tensor_cspnet_forward.3} parent=0 // pred_region
    _
  $region5: #{tensor_cspnet_forward.3} parent=0 // pred_fallthru
    _
  // Predicated region
  $region6: #{tensor_cspnet_forward.3} parent=0 // pred_check
    _
  $region7: #{tensor_cspnet_forward.3} parent=0 // pred_check_branch
    %11 = sbr.rel (0) target = $region9
  $region8: #{tensor_cspnet_forward.3} parent=0 // pred_region
    _
  $region9: #{tensor_cspnet_forward.3} parent=0 // pred_fallthru
    _
  // Predicated region
  $region10: #{tensor_cspnet_forward.3} parent=0 // pred_check
    _
  $region11: #{tensor_cspnet_forward.3} parent=0 // pred_check_branch
    %13 = sbr.rel (0) target = $region13
  $region12: #{tensor_cspnet_forward.3} parent=0 // pred_region
    _
  $region13: #{tensor_cspnet_forward.3} parent=0 // pred_fallthru
    _
  %v14 = vld [vmem:[%s1] sm:$0xff]
  %v15 = vld [vmem:[%s1 + $0x8] sm:$0xff]
  %v16 = vld [vmem:[%s1 + $0x10] sm:$0xff]
  %v17 = vld [vmem:[%s0] sm:$0xff]
  %v18 = vld [vmem:[%s0 + $0x8] sm:$0xff]
  %v19 = vld [vmem:[%s0 + $0x10] sm:$0xff]
  %vm20 = vcmask 195584
  %v22 = vsel %vm20, %v14, 0
  %v25 = vsel %vm20, %v15, 0
  %v28 = vsel %vm20, %v16, 0
  %30 = vmatpush.msra.mxu0 0.0
  %31 = vmatpush.msra.mxu0 0.0
  %32 = vmatpush.msra.mxu0 0.0
  %33 = vmatpush.msra.mxu0 0.0
  %34 = vmatpush.msra.mxu0 0.0
  %35 = vmatpush.msra.mxu0 0.0
  %36 = vmatpush.msra.mxu0 0.0
  %37 = vmatpush.msra.mxu0 0.0
  %38 = vmatpush.msra.mxu0 0.0
  %39 = vmatpush.msra.mxu0 0.0
  %40 = vmatpush.msra.mxu0 0.0
  %41 = vmatpush.msra.mxu0 0.0
  %42 = vmatpush.msra.mxu0 0.0
  %43 = vmatpush.msra.mxu0 %v19
  %44 = vmatpush.msra.mxu0 %v18
  %45 = vmatpush.msra.mxu0 %v17
  %46 = vmatmul.f32.gmra.mxu0 %v22
  %v47 = vpop.f32.mrf.mxu0
  %v48 = vadd.f32 0.0, %v47
  %49 = vmatmul.f32.gmra.mxu0 %v25
  %v50 = vpop.f32.mrf.mxu0
  %v51 = vadd.f32 0.0, %v50
  %52 = vmatmul.f32.gmra.mxu0 %v28
  %v53 = vpop.f32.mrf.mxu0
  %v54 = vadd.f32 0.0, %v53
  %55 = vdwg.mxu0
  %v56 = vld [vmem:[%s2] sm:$0xff]
  %v57 = vld [vmem:[%s2 + $0x8] sm:$0xff]
  %v58 = vld [vmem:[%s2 + $0x10] sm:$0xff]
  %v59 = vld [vmem:[%s2 + $0x18] sm:$0xff]
  %v60 = vld [vmem:[%s2 + $0x20] sm:$0xff]
  %v61 = vld [vmem:[%s2 + $0x28] sm:$0xff]
  %vm62 = vcmask 392192
  %v64 = vsel %vm62, %v48, 0
  %v67 = vsel %vm62, %v51, 0
  %v70 = vsel %vm62, %v54, 0
  %72 = vmatpush.msra.mxu0 0.0
  %73 = vmatpush.msra.mxu0 0.0
  %74 = vmatpush.msra.mxu0 0.0
  %75 = vmatpush.msra.mxu0 0.0
  %76 = vmatpush.msra.mxu0 0.0
  %77 = vmatpush.msra.mxu0 0.0
  %78 = vmatpush.msra.mxu0 0.0
  %79 = vmatpush.msra.mxu0 0.0
  %80 = vmatpush.msra.mxu0 0.0
  %81 = vmatpush.msra.mxu0 0.0
  %82 = vmatpush.msra.mxu0 %v61
  %83 = vmatpush.msra.mxu0 %v60
  %84 = vmatpush.msra.mxu0 %v59
  %85 = vmatpush.msra.mxu0 %v58
  %86 = vmatpush.msra.mxu0 %v57
  %87 = vmatpush.msra.mxu0 %v56
  %88 = vmatmul.f32.gmra.mxu0 %v64
  %v89 = vpop.f32.mrf.mxu0
  %v90 = vadd.f32 0.0, %v89
  %91 = vmatmul.f32.gmra.mxu0 %v67
  %v92 = vpop.f32.mrf.mxu0
  %v93 = vadd.f32 0.0, %v92
  %94 = vmatmul.f32.gmra.mxu0 %v70
  %v95 = vpop.f32.mrf.mxu0
  %v96 = vadd.f32 0.0, %v95
  %97 = vdwg.mxu0
  %98 = vst.msk [vmem:[%s3] sm:$0xff] %vm62, %v90
  %99 = vst.msk [vmem:[%s3 + $0x8] sm:$0xff] %vm62, %v93
  %100 = vst.msk [vmem:[%s3 + $0x10] sm:$0xff] %vm62, %v96
  %s101 = scalar_lea.vmem %s1, 24
  %v102 = vld [vmem:[%s101] sm:$0xff]
  %v103 = vld [vmem:[%s101 + $0x8] sm:$0xff]
  %v104 = vld [vmem:[%s101 + $0x10] sm:$0xff]
  %s105 = scalar_lea.vmem %s0, 24
  %v106 = vld [vmem:[%s105] sm:$0xff]
  %v107 = vld [vmem:[%s105 + $0x8] sm:$0xff]
  %v108 = vld [vmem:[%s105 + $0x10] sm:$0xff]
  %v110 = vsel %vm20, %v102, 0
  %v113 = vsel %vm20, %v103, 0
  %v116 = vsel %vm20, %v104, 0
  %118 = vmatpush.msra.mxu0 0.0
  %119 = vmatpush.msra.mxu0 0.0
  %120 = vmatpush.msra.mxu0 0.0
  %121 = vmatpush.msra.mxu0 0.0
  %122 = vmatpush.msra.mxu0 0.0
  %123 = vmatpush.msra.mxu0 0.0
  %124 = vmatpush.msra.mxu0 0.0
  %125 = vmatpush.msra.mxu0 0.0
  %126 = vmatpush.msra.mxu0 0.0
  %127 = vmatpush.msra.mxu0 0.0
  %128 = vmatpush.msra.mxu0 0.0
  %129 = vmatpush.msra.mxu0 0.0
  %130 = vmatpush.msra.mxu0 0.0
  %131 = vmatpush.msra.mxu0 %v108
  %132 = vmatpush.msra.mxu0 %v107
  %133 = vmatpush.msra.mxu0 %v106
  %134 = vmatmul.f32.gmra.mxu0 %v110
  %v135 = vpop.f32.mrf.mxu0
  %v136 = vadd.f32 0.0, %v135
  %137 = vmatmul.f32.gmra.mxu0 %v113
  %v138 = vpop.f32.mrf.mxu0
  %v139 = vadd.f32 0.0, %v138
  %140 = vmatmul.f32.gmra.mxu0 %v116
  %v141 = vpop.f32.mrf.mxu0
  %v142 = vadd.f32 0.0, %v141
  %143 = vdwg.mxu0
  %s144 = scalar_lea.vmem %s2, 48
  %v145 = vld [vmem:[%s144] sm:$0xff]
  %v146 = vld [vmem:[%s144 + $0x8] sm:$0xff]
  %v147 = vld [vmem:[%s144 + $0x10] sm:$0xff]
  %v148 = vld [vmem:[%s144 + $0x18] sm:$0xff]
  %v149 = vld [vmem:[%s144 + $0x20] sm:$0xff]
  %v150 = vld [vmem:[%s144 + $0x28] sm:$0xff]
  %v152 = vsel %vm62, %v136, 0
  %v155 = vsel %vm62, %v139, 0
  %v158 = vsel %vm62, %v142, 0
  %160 = vmatpush.msra.mxu0 0.0
  %161 = vmatpush.msra.mxu0 0.0
  %162 = vmatpush.msra.mxu0 0.0
  %163 = vmatpush.msra.mxu0 0.0
  %164 = vmatpush.msra.mxu0 0.0
  %165 = vmatpush.msra.mxu0 0.0
  %166 = vmatpush.msra.mxu0 0.0
  %167 = vmatpush.msra.mxu0 0.0
  %168 = vmatpush.msra.mxu0 0.0
  %169 = vmatpush.msra.mxu0 0.0
  %170 = vmatpush.msra.mxu0 %v150
  %171 = vmatpush.msra.mxu0 %v149
  %172 = vmatpush.msra.mxu0 %v148
  %173 = vmatpush.msra.mxu0 %v147
  %174 = vmatpush.msra.mxu0 %v146
  %175 = vmatpush.msra.mxu0 %v145
  %176 = vmatmul.f32.gmra.mxu0 %v152
  %v177 = vpop.f32.mrf.mxu0
  %v178 = vadd.f32 0.0, %v177
  %179 = vmatmul.f32.gmra.mxu0 %v155
  %v180 = vpop.f32.mrf.mxu0
  %v181 = vadd.f32 0.0, %v180
  %182 = vmatmul.f32.gmra.mxu0 %v158
  %v183 = vpop.f32.mrf.mxu0
  %v184 = vadd.f32 0.0, %v183
  %185 = vdwg.mxu0
  %s186 = scalar_lea.vmem %s3, 24
  %187 = vst.msk [vmem:[%s186] sm:$0xff] %vm62, %v178
  %188 = vst.msk [vmem:[%s186 + $0x8] sm:$0xff] %vm62, %v181
  %189 = vst.msk [vmem:[%s186 + $0x10] sm:$0xff] %vm62, %v184
  %s190 = scalar_lea.vmem %s1, 48
  %v191 = vld [vmem:[%s190] sm:$0xff]
  %v192 = vld [vmem:[%s190 + $0x8] sm:$0xff]
  %v193 = vld [vmem:[%s190 + $0x10] sm:$0xff]
  %s194 = scalar_lea.vmem %s0, 48
  %v195 = vld [vmem:[%s194] sm:$0xff]
  %v196 = vld [vmem:[%s194 + $0x8] sm:$0xff]
  %v197 = vld [vmem:[%s194 + $0x10] sm:$0xff]
  %v199 = vsel %vm20, %v191, 0
  %v202 = vsel %vm20, %v192, 0
  %v205 = vsel %vm20, %v193, 0
  %207 = vmatpush.msra.mxu0 0.0
  %208 = vmatpush.msra.mxu0 0.0
  %209 = vmatpush.msra.mxu0 0.0
  %210 = vmatpush.msra.mxu0 0.0
  %211 = vmatpush.msra.mxu0 0.0
  %212 = vmatpush.msra.mxu0 0.0
  %213 = vmatpush.msra.mxu0 0.0
  %214 = vmatpush.msra.mxu0 0.0
  %215 = vmatpush.msra.mxu0 0.0
  %216 = vmatpush.msra.mxu0 0.0
  %217 = vmatpush.msra.mxu0 0.0
  %218 = vmatpush.msra.mxu0 0.0
  %219 = vmatpush.msra.mxu0 0.0
  %220 = vmatpush.msra.mxu0 %v197
  %221 = vmatpush.msra.mxu0 %v196
  %222 = vmatpush.msra.mxu0 %v195
  %223 = vmatmul.f32.gmra.mxu0 %v199
  %v224 = vpop.f32.mrf.mxu0
  %v225 = vadd.f32 0.0, %v224
  %226 = vmatmul.f32.gmra.mxu0 %v202
  %v227 = vpop.f32.mrf.mxu0
  %v228 = vadd.f32 0.0, %v227
  %229 = vmatmul.f32.gmra.mxu0 %v205
  %v230 = vpop.f32.mrf.mxu0
  %v231 = vadd.f32 0.0, %v230
  %232 = vdwg.mxu0
  %s233 = scalar_lea.vmem %s2, 96
  %v234 = vld [vmem:[%s233] sm:$0xff]
  %v235 = vld [vmem:[%s233 + $0x8] sm:$0xff]
  %v236 = vld [vmem:[%s233 + $0x10] sm:$0xff]
  %v237 = vld [vmem:[%s233 + $0x18] sm:$0xff]
  %v238 = vld [vmem:[%s233 + $0x20] sm:$0xff]
  %v239 = vld [vmem:[%s233 + $0x28] sm:$0xff]
  %v241 = vsel %vm62, %v225, 0
  %v244 = vsel %vm62, %v228, 0
  %v247 = vsel %vm62, %v231, 0
  %249 = vmatpush.msra.mxu0 0.0
  %250 = vmatpush.msra.mxu0 0.0
  %251 = vmatpush.msra.mxu0 0.0
  %252 = vmatpush.msra.mxu0 0.0
  %253 = vmatpush.msra.mxu0 0.0
  %254 = vmatpush.msra.mxu0 0.0
  %255 = vmatpush.msra.mxu0 0.0
  %256 = vmatpush.msra.mxu0 0.0
  %257 = vmatpush.msra.mxu0 0.0
  %258 = vmatpush.msra.mxu0 0.0
  %259 = vmatpush.msra.mxu0 %v239
  %260 = vmatpush.msra.mxu0 %v238
  %261 = vmatpush.msra.mxu0 %v237
  %262 = vmatpush.msra.mxu0 %v236
  %263 = vmatpush.msra.mxu0 %v235
  %264 = vmatpush.msra.mxu0 %v234
  %265 = vmatmul.f32.gmra.mxu0 %v241
  %v266 = vpop.f32.mrf.mxu0
  %v267 = vadd.f32 0.0, %v266
  %268 = vmatmul.f32.gmra.mxu0 %v244
  %v269 = vpop.f32.mrf.mxu0
  %v270 = vadd.f32 0.0, %v269
  %271 = vmatmul.f32.gmra.mxu0 %v247
  %v272 = vpop.f32.mrf.mxu0
  %v273 = vadd.f32 0.0, %v272
  %274 = vdwg.mxu0
  %s275 = scalar_lea.vmem %s3, 48
  %276 = vst.msk [vmem:[%s275] sm:$0xff] %vm62, %v267
  %277 = vst.msk [vmem:[%s275 + $0x8] sm:$0xff] %vm62, %v270
  %278 = vst.msk [vmem:[%s275 + $0x10] sm:$0xff] %vm62, %v273
  // Predicated region
  $region14: #{tensor_cspnet_forward.3} parent=0 // pred_check
    _
  $region15: #{tensor_cspnet_forward.3} parent=0 // pred_check_branch
    %280 = sbr.rel (0) target = $region17
  $region16: #{tensor_cspnet_forward.3} parent=0 // pred_region
    _
  $region17: #{tensor_cspnet_forward.3} parent=0 // pred_fallthru
    _
  // Predicated region
  $region18: #{tensor_cspnet_forward.3} parent=0 // pred_check
    _
  $region19: #{tensor_cspnet_forward.3} parent=0 // pred_check_branch
    %282 = sbr.rel (0) target = $region21
  $region20: #{tensor_cspnet_forward.3} parent=0 // pred_region
    _
  $region21: #{tensor_cspnet_forward.3} parent=0 // pred_fallthru
    _

// kernel: tensor_cspnet_forward.4
$region0: #{tensor_cspnet_forward.4}
  #allocation0 [shape = 'u32[]', space=smem, size = 0x4, offset = 0x4, fixed_abs, tag = 'smem constant byte address 0x4 - core index']
  #allocation1 [shape = 'u32[72,128]{1,0:T(1,128)}', space=vmem, size = 0x9000, scoped, tag = 'internal scratch']
  %s0 = inlined_call_operand.vmem [shape: f32[6,24,24], index: 0, kind: input, shape index: {}]
  %s1 = inlined_call_operand.vmem [shape: f32[6,1,24], index: 1, kind: input, shape index: {}]
  %s2 = inlined_call_operand.vmem [shape: f32[6,24,24], index: 2, kind: output, shape index: {}]
  %s3 = sld [smem:[#allocation0]]
  $region18: #{tensor_cspnet_forward.4} parent=0
    _
  %s5 = ssub.s32 1, %s3
  %s6 = scalar_select 0, %s5, %s3
  // Predicated region
  $region2: #{tensor_cspnet_forward.4} parent=0 // pred_check
    _
  $region3: #{tensor_cspnet_forward.4} parent=0 // pred_check_branch
    %8 = sbr.rel (0) target = $region5
  $region4: #{tensor_cspnet_forward.4} parent=0 // pred_region
    _
  $region5: #{tensor_cspnet_forward.4} parent=0 // pred_fallthru
    _
  // Predicated region
  $region6: #{tensor_cspnet_forward.4} parent=0 // pred_check
    _
  $region7: #{tensor_cspnet_forward.4} parent=0 // pred_check_branch
    %10 = sbr.rel (0) target = $region9
  $region8: #{tensor_cspnet_forward.4} parent=0 // pred_region
    _
  $region9: #{tensor_cspnet_forward.4} parent=0 // pred_fallthru
    _
  %v11 = vld [vmem:[%s0] sm:$0xff]
  %v12 = vld [vmem:[%s0 + $0x8] sm:$0xff]
  %v13 = vld [vmem:[%s0 + $0x10] sm:$0xff]
  %v14 = vld [vmem:[%s0 + $0x18] sm:$0xff]
  %v15 = vld [vmem:[%s0 + $0x20] sm:$0xff]
  %v16 = vld [vmem:[%s0 + $0x28] sm:$0xff]
  %v17 = vld [vmem:[%s0 + $0x30] sm:$0xff]
  %v18 = vld [vmem:[%s0 + $0x38] sm:$0xff]
  %v19 = vld [vmem:[%s0 + $0x40] sm:$0xff]
  %v20 = vld [vmem:[%s0 + $0x48] sm:$0xff]
  %v21 = vld [vmem:[%s0 + $0x50] sm:$0xff]
  %v22 = vld [vmem:[%s0 + $0x58] sm:$0xff]
  %v23 = vld [vmem:[%s0 + $0x60] sm:$0xff]
  %v24 = vld [vmem:[%s0 + $0x68] sm:$0xff]
  %v25 = vld [vmem:[%s0 + $0x70] sm:$0xff]
  %v26 = vld [vmem:[%s0 + $0x78] sm:$0xff]
  %v27 = vld [vmem:[%s0 + $0x80] sm:$0xff]
  %v28 = vld [vmem:[%s0 + $0x88] sm:$0xff]
  %v29 = vld [vmem:[%s1] sm:$0x1]
  %v30 = vld [vmem:[%s1 + $0x1] sm:$0x1]
  %v31 = vld [vmem:[%s1 + $0x2] sm:$0x1]
  %v32 = vld [vmem:[%s1 + $0x3] sm:$0x1]
  %v33 = vld [vmem:[%s1 + $0x4] sm:$0x1]
  %v34 = vld [vmem:[%s1 + $0x5] sm:$0x1]
  %v35 = vmax.f32 %v29, 0.0001
  %v36 = vmax.f32 %v30, 0.0001
  %v37 = vmax.f32 %v31, 0.0001
  %v38 = vmax.f32 %v32, 0.0001
  %v39 = vmax.f32 %v33, 0.0001
  %v40 = vmax.f32 %v34, 0.0001
  %v41 = vlog2.pop %v35
  %v42 = vmul.f32 %v41, 0.6931472
  %v43 = vlog2.pop %v36
  %v44 = vmul.f32 %v43, 0.6931472
  %v45 = vlog2.pop %v37
  %v46 = vmul.f32 %v45, 0.6931472
  %v47 = vlog2.pop %v38
  %v48 = vmul.f32 %v47, 0.6931472
  %v49 = vlog2.pop %v39
  %v50 = vmul.f32 %v49, 0.6931472
  %v51 = vlog2.pop %v40
  %v52 = vmul.f32 %v51, 0.6931472
  %v59 = vperm.slane %v42, 0
  %v60 = vperm.slane %v44, 0
  %v61 = vperm.slane %v46, 0
  %v62 = vperm.slane %v48, 0
  %v63 = vperm.slane %v50, 0
  %v64 = vperm.slane %v52, 0
  %v71 = vmul.f32 %v11, %v59
  %v72 = vmul.f32 %v12, %v59
  %v73 = vmul.f32 %v13, %v59
  %v74 = vmul.f32 %v14, %v60
  %v75 = vmul.f32 %v15, %v60
  %v76 = vmul.f32 %v16, %v60
  %v77 = vmul.f32 %v17, %v61
  %v78 = vmul.f32 %v18, %v61
  %v79 = vmul.f32 %v19, %v61
  %v80 = vmul.f32 %v20, %v62
  %v81 = vmul.f32 %v21, %v62
  %v82 = vmul.f32 %v22, %v62
  %v83 = vmul.f32 %v23, %v63
  %v84 = vmul.f32 %v24, %v63
  %v85 = vmul.f32 %v25, %v63
  %v86 = vmul.f32 %v26, %v64
  %v87 = vmul.f32 %v27, %v64
  %v88 = vmul.f32 %v28, %v64
  %vm89 = vcmask 195584
  %v91 = vsel %vm89, %v71, 0
  %v94 = vsel %vm89, %v72, 0
  %v97 = vsel %vm89, %v73, 0
  %v100 = vsel %vm89, %v11, 0
  %v103 = vsel %vm89, %v12, 0
  %v106 = vsel %vm89, %v13, 0
  %108 = vmatpush.xpose.msra.mxu0 0.0
  %109 = vmatpush.xpose.msra.mxu0 0.0
  %110 = vmatpush.xpose.msra.mxu0 0.0
  %111 = vmatpush.xpose.msra.mxu0 0.0
  %112 = vmatpush.xpose.msra.mxu0 0.0
  %113 = vmatpush.xpose.msra.mxu0 0.0
  %114 = vmatpush.xpose.msra.mxu0 0.0
  %115 = vmatpush.xpose.msra.mxu0 0.0
  %116 = vmatpush.xpose.msra.mxu0 0.0
  %117 = vmatpush.xpose.msra.mxu0 0.0
  %118 = vmatpush.xpose.msra.mxu0 0.0
  %119 = vmatpush.xpose.msra.mxu0 0.0
  %120 = vmatpush.xpose.msra.mxu0 0.0
  %121 = vmatpush.xpose.msra.mxu0 %v106
  %122 = vmatpush.xpose.msra.mxu0 %v103
  %123 = vmatpush.xpose.msra.mxu0 %v100
  %124 = vmatmul.f32.gmra.mxu0 %v91
  %v125 = vpop.f32.mrf.mxu0
  %v126 = vadd.f32 0.0, %v125
  %127 = vmatmul.f32.gmra.mxu0 %v94
  %v128 = vpop.f32.mrf.mxu0
  %v129 = vadd.f32 0.0, %v128
  %130 = vmatmul.f32.gmra.mxu0 %v97
  %v131 = vpop.f32.mrf.mxu0
  %v132 = vadd.f32 0.0, %v131
  %133 = vdwg.mxu0
  %v135 = vsel %vm89, %v74, 0
  %v138 = vsel %vm89, %v75, 0
  %v141 = vsel %vm89, %v76, 0
  %v144 = vsel %vm89, %v14, 0
  %v147 = vsel %vm89, %v15, 0
  %v150 = vsel %vm89, %v16, 0
  %152 = vmatpush.xpose.msra.mxu0 0.0
  %153 = vmatpush.xpose.msra.mxu0 0.0
  %154 = vmatpush.xpose.msra.mxu0 0.0
  %155 = vmatpush.xpose.msra.mxu0 0.0
  %156 = vmatpush.xpose.msra.mxu0 0.0
  %157 = vmatpush.xpose.msra.mxu0 0.0
  %158 = vmatpush.xpose.msra.mxu0 0.0
  %159 = vmatpush.xpose.msra.mxu0 0.0
  %160 = vmatpush.xpose.msra.mxu0 0.0
  %161 = vmatpush.xpose.msra.mxu0 0.0
  %162 = vmatpush.xpose.msra.mxu0 0.0
  %163 = vmatpush.xpose.msra.mxu0 0.0
  %164 = vmatpush.xpose.msra.mxu0 0.0
  %165 = vmatpush.xpose.msra.mxu0 %v150
  %166 = vmatpush.xpose.msra.mxu0 %v147
  %167 = vmatpush.xpose.msra.mxu0 %v144
  %168 = vmatmul.f32.gmra.mxu0 %v135
  %v169 = vpop.f32.mrf.mxu0
  %v170 = vadd.f32 0.0, %v169
  %171 = vmatmul.f32.gmra.mxu0 %v138
  %v172 = vpop.f32.mrf.mxu0
  %v173 = vadd.f32 0.0, %v172
  %174 = vmatmul.f32.gmra.mxu0 %v141
  %v175 = vpop.f32.mrf.mxu0
  %v176 = vadd.f32 0.0, %v175
  %177 = vdwg.mxu0
  %v179 = vsel %vm89, %v77, 0
  %v182 = vsel %vm89, %v78, 0
  %v185 = vsel %vm89, %v79, 0
  %v188 = vsel %vm89, %v17, 0
  %v191 = vsel %vm89, %v18, 0
  %v194 = vsel %vm89, %v19, 0
  %196 = vmatpush.xpose.msra.mxu0 0.0
  %197 = vmatpush.xpose.msra.mxu0 0.0
  %198 = vmatpush.xpose.msra.mxu0 0.0
  %199 = vmatpush.xpose.msra.mxu0 0.0
  %200 = vmatpush.xpose.msra.mxu0 0.0
  %201 = vmatpush.xpose.msra.mxu0 0.0
  %202 = vmatpush.xpose.msra.mxu0 0.0
  %203 = vmatpush.xpose.msra.mxu0 0.0
  %204 = vmatpush.xpose.msra.mxu0 0.0
  %205 = vmatpush.xpose.msra.mxu0 0.0
  %206 = vmatpush.xpose.msra.mxu0 0.0
  %207 = vmatpush.xpose.msra.mxu0 0.0
  %208 = vmatpush.xpose.msra.mxu0 0.0
  %209 = vmatpush.xpose.msra.mxu0 %v194
  %210 = vmatpush.xpose.msra.mxu0 %v191
  %211 = vmatpush.xpose.msra.mxu0 %v188
  %212 = vmatmul.f32.gmra.mxu0 %v179
  %v213 = vpop.f32.mrf.mxu0
  %v214 = vadd.f32 0.0, %v213
  %215 = vmatmul.f32.gmra.mxu0 %v182
  %v216 = vpop.f32.mrf.mxu0
  %v217 = vadd.f32 0.0, %v216
  %218 = vmatmul.f32.gmra.mxu0 %v185
  %v219 = vpop.f32.mrf.mxu0
  %v220 = vadd.f32 0.0, %v219
  %221 = vdwg.mxu0
  %v223 = vsel %vm89, %v80, 0
  %v226 = vsel %vm89, %v81, 0
  %v229 = vsel %vm89, %v82, 0
  %v232 = vsel %vm89, %v20, 0
  %v235 = vsel %vm89, %v21, 0
  %v238 = vsel %vm89, %v22, 0
  %240 = vmatpush.xpose.msra.mxu0 0.0
  %241 = vmatpush.xpose.msra.mxu0 0.0
  %242 = vmatpush.xpose.msra.mxu0 0.0
  %243 = vmatpush.xpose.msra.mxu0 0.0
  %244 = vmatpush.xpose.msra.mxu0 0.0
  %245 = vmatpush.xpose.msra.mxu0 0.0
  %246 = vmatpush.xpose.msra.mxu0 0.0
  %247 = vmatpush.xpose.msra.mxu0 0.0
  %248 = vmatpush.xpose.msra.mxu0 0.0
  %249 = vmatpush.xpose.msra.mxu0 0.0
  %250 = vmatpush.xpose.msra.mxu0 0.0
  %251 = vmatpush.xpose.msra.mxu0 0.0
  %252 = vmatpush.xpose.msra.mxu0 0.0
  %253 = vmatpush.xpose.msra.mxu0 %v238
  %254 = vmatpush.xpose.msra.mxu0 %v235
  %255 = vmatpush.xpose.msra.mxu0 %v232
  %256 = vmatmul.f32.gmra.mxu0 %v223
  %v257 = vpop.f32.mrf.mxu0
  %v258 = vadd.f32 0.0, %v257
  %259 = vmatmul.f32.gmra.mxu0 %v226
  %v260 = vpop.f32.mrf.mxu0
  %v261 = vadd.f32 0.0, %v260
  %262 = vmatmul.f32.gmra.mxu0 %v229
  %v263 = vpop.f32.mrf.mxu0
  %v264 = vadd.f32 0.0, %v263
  %265 = vdwg.mxu0
  %v267 = vsel %vm89, %v83, 0
  %v270 = vsel %vm89, %v84, 0
  %v273 = vsel %vm89, %v85, 0
  %v276 = vsel %vm89, %v23, 0
  %v279 = vsel %vm89, %v24, 0
  %v282 = vsel %vm89, %v25, 0
  %284 = vmatpush.xpose.msra.mxu0 0.0
  %285 = vmatpush.xpose.msra.mxu0 0.0
  %286 = vmatpush.xpose.msra.mxu0 0.0
  %287 = vmatpush.xpose.msra.mxu0 0.0
  %288 = vmatpush.xpose.msra.mxu0 0.0
  %289 = vmatpush.xpose.msra.mxu0 0.0
  %290 = vmatpush.xpose.msra.mxu0 0.0
  %291 = vmatpush.xpose.msra.mxu0 0.0
  %292 = vmatpush.xpose.msra.mxu0 0.0
  %293 = vmatpush.xpose.msra.mxu0 0.0
  %294 = vmatpush.xpose.msra.mxu0 0.0
  %295 = vmatpush.xpose.msra.mxu0 0.0
  %296 = vmatpush.xpose.msra.mxu0 0.0
  %297 = vmatpush.xpose.msra.mxu0 %v282
  %298 = vmatpush.xpose.msra.mxu0 %v279
  %299 = vmatpush.xpose.msra.mxu0 %v276
  %300 = vmatmul.f32.gmra.mxu0 %v267
  %v301 = vpop.f32.mrf.mxu0
  %v302 = vadd.f32 0.0, %v301
  %303 = vmatmul.f32.gmra.mxu0 %v270
  %v304 = vpop.f32.mrf.mxu0
  %v305 = vadd.f32 0.0, %v304
  %306 = vmatmul.f32.gmra.mxu0 %v273
  %v307 = vpop.f32.mrf.mxu0
  %v308 = vadd.f32 0.0, %v307
  %309 = vdwg.mxu0
  %v311 = vsel %vm89, %v86, 0
  %v314 = vsel %vm89, %v87, 0
  %v317 = vsel %vm89, %v88, 0
  %v320 = vsel %vm89, %v26, 0
  %v323 = vsel %vm89, %v27, 0
  %v326 = vsel %vm89, %v28, 0
  %328 = vmatpush.xpose.msra.mxu0 0.0
  %329 = vmatpush.xpose.msra.mxu0 0.0
  %330 = vmatpush.xpose.msra.mxu0 0.0
  %331 = vmatpush.xpose.msra.mxu0 0.0
  %332 = vmatpush.xpose.msra.mxu0 0.0
  %333 = vmatpush.xpose.msra.mxu0 0.0
  %334 = vmatpush.xpose.msra.mxu0 0.0
  %335 = vmatpush.xpose.msra.mxu0 0.0
  %336 = vmatpush.xpose.msra.mxu0 0.0
  %337 = vmatpush.xpose.msra.mxu0 0.0
  %338 = vmatpush.xpose.msra.mxu0 0.0
  %339 = vmatpush.xpose.msra.mxu0 0.0
  %340 = vmatpush.xpose.msra.mxu0 0.0
  %341 = vmatpush.xpose.msra.mxu0 %v326
  %342 = vmatpush.xpose.msra.mxu0 %v323
  %343 = vmatpush.xpose.msra.mxu0 %v320
  %344 = vmatmul.f32.gmra.mxu0 %v311
  %v345 = vpop.f32.mrf.mxu0
  %v346 = vadd.f32 0.0, %v345
  %347 = vmatmul.f32.gmra.mxu0 %v314
  %v348 = vpop.f32.mrf.mxu0
  %v349 = vadd.f32 0.0, %v348
  %350 = vmatmul.f32.gmra.mxu0 %v317
  %v351 = vpop.f32.mrf.mxu0
  %v352 = vadd.f32 0.0, %v351
  %353 = vdwg.mxu0
  %354 = vst.msk [vmem:[%s2] sm:$0xff] %vm89, %v126
  %355 = vst.msk [vmem:[%s2 + $0x8] sm:$0xff] %vm89, %v129
  %356 = vst.msk [vmem:[%s2 + $0x10] sm:$0xff] %vm89, %v132
  %357 = vst.msk [vmem:[%s2 + $0x18] sm:$0xff] %vm89, %v170
  %358 = vst.msk [vmem:[%s2 + $0x20] sm:$0xff] %vm89, %v173
  %359 = vst.msk [vmem:[%s2 + $0x28] sm:$0xff] %vm89, %v176
  %360 = vst.msk [vmem:[%s2 + $0x30] sm:$0xff] %vm89, %v214
  %361 = vst.msk [vmem:[%s2 + $0x38] sm:$0xff] %vm89, %v217
  %362 = vst.msk [vmem:[%s2 + $0x40] sm:$0xff] %vm89, %v220
  %363 = vst.msk [vmem:[%s2 + $0x48] sm:$0xff] %vm89, %v258
  %364 = vst.msk [vmem:[%s2 + $0x50] sm:$0xff] %vm89, %v261
  %365 = vst.msk [vmem:[%s2 + $0x58] sm:$0xff] %vm89, %v264
  %366 = vst.msk [vmem:[%s2 + $0x60] sm:$0xff] %vm89, %v302
  %367 = vst.msk [vmem:[%s2 + $0x68] sm:$0xff] %vm89, %v305
  %368 = vst.msk [vmem:[%s2 + $0x70] sm:$0xff] %vm89, %v308
  %369 = vst.msk [vmem:[%s2 + $0x78] sm:$0xff] %vm89, %v346
  %370 = vst.msk [vmem:[%s2 + $0x80] sm:$0xff] %vm89, %v349
  %371 = vst.msk [vmem:[%s2 + $0x88] sm:$0xff] %vm89, %v352
  // Predicated region
  $region10: #{tensor_cspnet_forward.4} parent=0 // pred_check
    _
  $region11: #{tensor_cspnet_forward.4} parent=0 // pred_check_branch
    %373 = sbr.rel (0) target = $region13
  $region12: #{tensor_cspnet_forward.4} parent=0 // pred_region
    _
  $region13: #{tensor_cspnet_forward.4} parent=0 // pred_fallthru
    _
  // Predicated region
  $region14: #{tensor_cspnet_forward.4} parent=0 // pred_check
    _
  $region15: #{tensor_cspnet_forward.4} parent=0 // pred_check_branch
    %375 = sbr.rel (0) target = $region17
  $region16: #{tensor_cspnet_forward.4} parent=0 // pred_region
    _
  $region17: #{tensor_cspnet_forward.4} parent=0 // pred_fallthru
    _

// kernel: tensor_cspnet_forward.5
$region0: #{tensor_cspnet_forward.5}
  #allocation0 [shape = 'u32[]', space=smem, size = 0x4, offset = 0x4, fixed_abs, tag = 'smem constant byte address 0x4 - core index']
  #allocation1 [shape = 'u32[72,128]{1,0:T(1,128)}', space=vmem, size = 0x9000, scoped, tag = 'internal scratch']
  %s0 = inlined_call_operand.vmem [shape: f32[2,1728], index: 0, kind: input, shape index: {}]
  %s1 = inlined_call_operand.vmem [shape: f32[1728,16], index: 1, kind: input, shape index: {}]
  %s2 = inlined_call_operand.vmem [shape: f32[1,16], index: 2, kind: input, shape index: {}]
  %s3 = inlined_call_operand.vmem [shape: f32[16,4], index: 3, kind: input, shape index: {}]
  %s4 = inlined_call_operand.vmem [shape: f32[1,4], index: 4, kind: input, shape index: {}]
  %s5 = inlined_call_operand.hbm [shape: f32[2,4], index: 5, kind: output, shape index: {}]
  %s6 = sld [smem:[#allocation0]]
  $region30: #{tensor_cspnet_forward.5} parent=0
    _
  %s8 = ssub.s32 1, %s6
  %s9 = scalar_select 0, %s8, %s6
  $region1: #{tensor_cspnet_forward.5} parent=0
    #allocation2 [shape = 'u8[1024]{0}', space=vmem, size = 0x400, scoped, tag = 'output window, operand 0, single buffered']
    #allocation3 [shape = 's32[1]{0}', space=sflag, size = 0x4, scoped, tag = 'scoped memory for tensor_cspnet_forward.5']
    %10 = vsyncpa [#allocation3], 0
    // Predicated region
    $region2: #{tensor_cspnet_forward.5} parent=1 // pred_check
      _
    $region3: #{tensor_cspnet_forward.5} parent=1 // pred_check_branch
      %12 = sbr.rel (0) target = $region5
    $region4: #{tensor_cspnet_forward.5} parent=1 // pred_region
      _
    $region5: #{tensor_cspnet_forward.5} parent=1 // pred_fallthru
      _
    // Predicated region
    $region6: #{tensor_cspnet_forward.5} parent=1 // pred_check
      _
    $region7: #{tensor_cspnet_forward.5} parent=1 // pred_check_branch
      %14 = sbr.rel (0) target = $region9
    $region8: #{tensor_cspnet_forward.5} parent=1 // pred_region
      _
    $region9: #{tensor_cspnet_forward.5} parent=1 // pred_fallthru
      _
    // Predicated region
    $region10: #{tensor_cspnet_forward.5} parent=1 // pred_check
      _
    $region11: #{tensor_cspnet_forward.5} parent=1 // pred_check_branch
      %16 = sbr.rel (0) target = $region13
    $region12: #{tensor_cspnet_forward.5} parent=1 // pred_region
      _
    $region13: #{tensor_cspnet_forward.5} parent=1 // pred_fallthru
      _
    // Predicated region
    $region14: #{tensor_cspnet_forward.5} parent=1 // pred_check
      _
    $region15: #{tensor_cspnet_forward.5} parent=1 // pred_check_branch
      %18 = sbr.rel (0) target = $region17
    $region16: #{tensor_cspnet_forward.5} parent=1 // pred_region
      _
    $region17: #{tensor_cspnet_forward.5} parent=1 // pred_fallthru
      _
    // Predicated region
    $region18: #{tensor_cspnet_forward.5} parent=1 // pred_check
      _
    $region19: #{tensor_cspnet_forward.5} parent=1 // pred_check_branch
      %20 = sbr.rel (0) target = $region21
    $region20: #{tensor_cspnet_forward.5} parent=1 // pred_region
      _
    $region21: #{tensor_cspnet_forward.5} parent=1 // pred_fallthru
      _
    %v21 = vld [vmem:[%s0] sm:$0xff]
    %v22 = vld [vmem:[%s0 + $0x8] sm:$0xff]
    %v23 = vld [vmem:[%s0 + $0x10] sm:$0xff]
    %v24 = vld [vmem:[%s0 + $0x18] sm:$0xf]
    %v25 = vld [vmem:[%s1] sm:$0xff]
    %v26 = vld [vmem:[%s1 + $0x8] sm:$0xff]
    %v27 = vld [vmem:[%s1 + $0x10] sm:$0xff]
    %v28 = vld [vmem:[%s1 + $0x18] sm:$0xff]
    %v29 = vld [vmem:[%s1 + $0x20] sm:$0xff]
    %v30 = vld [vmem:[%s1 + $0x28] sm:$0xff]
    %v31 = vld [vmem:[%s1 + $0x30] sm:$0xff]
    %v32 = vld [vmem:[%s1 + $0x38] sm:$0xff]
    %v33 = vld [vmem:[%s1 + $0x40] sm:$0xff]
    %v34 = vld [vmem:[%s1 + $0x48] sm:$0xff]
    %v35 = vld [vmem:[%s1 + $0x50] sm:$0xff]
    %v36 = vld [vmem:[%s1 + $0x58] sm:$0xff]
    %v37 = vld [vmem:[%s1 + $0x60] sm:$0xff]
    %v38 = vld [vmem:[%s1 + $0x68] sm:$0xff]
    %v39 = vld [vmem:[%s1 + $0x70] sm:$0xff]
    %v40 = vld [vmem:[%s1 + $0x78] sm:$0xff]
    %v41 = vld [vmem:[%s1 + $0x80] sm:$0xff]
    %v42 = vld [vmem:[%s1 + $0x88] sm:$0xff]
    %v43 = vld [vmem:[%s1 + $0x90] sm:$0xff]
    %v44 = vld [vmem:[%s1 + $0x98] sm:$0xff]
    %v45 = vld [vmem:[%s1 + $0xa0] sm:$0xff]
    %v46 = vld [vmem:[%s1 + $0xa8] sm:$0xff]
    %v47 = vld [vmem:[%s1 + $0xb0] sm:$0xff]
    %v48 = vld [vmem:[%s1 + $0xb8] sm:$0xff]
    %v49 = vld [vmem:[%s1 + $0xc0] sm:$0xff]
    %v50 = vld [vmem:[%s1 + $0xc8] sm:$0xff]
    %v51 = vld [vmem:[%s1 + $0xd0] sm:$0xff]
    %v52 = vld [vmem:[%s1 + $0xd8] sm:$0xff]
    %v53 = vld [vmem:[%s1 + $0xe0] sm:$0xff]
    %v54 = vld [vmem:[%s1 + $0xe8] sm:$0xff]
    %v55 = vld [vmem:[%s1 + $0xf0] sm:$0xff]
    %v56 = vld [vmem:[%s1 + $0xf8] sm:$0xff]
    %v57 = vld [vmem:[%s1 + $0x100] sm:$0xff]
    %v58 = vld [vmem:[%s1 + $0x108] sm:$0xff]
    %v59 = vld [vmem:[%s1 + $0x110] sm:$0xff]
    %v60 = vld [vmem:[%s1 + $0x118] sm:$0xff]
    %v61 = vld [vmem:[%s1 + $0x120] sm:$0xff]
    %v62 = vld [vmem:[%s1 + $0x128] sm:$0xff]
    %v63 = vld [vmem:[%s1 + $0x130] sm:$0xff]
    %v64 = vld [vmem:[%s1 + $0x138] sm:$0xff]
    %v65 = vld [vmem:[%s1 + $0x140] sm:$0xff]
    %v66 = vld [vmem:[%s1 + $0x148] sm:$0xff]
    %v67 = vld [vmem:[%s1 + $0x150] sm:$0xff]
    %v68 = vld [vmem:[%s1 + $0x158] sm:$0xff]
    %v69 = vld [vmem:[%s1 + $0x160] sm:$0xff]
    %v70 = vld [vmem:[%s1 + $0x168] sm:$0xff]
    %v71 = vld [vmem:[%s1 + $0x170] sm:$0xff]
    %v72 = vld [vmem:[%s1 + $0x178] sm:$0xff]
    %v73 = vld [vmem:[%s1 + $0x180] sm:$0xff]
    %v74 = vld [vmem:[%s1 + $0x188] sm:$0xff]
    %v75 = vld [vmem:[%s1 + $0x190] sm:$0xff]
    %v76 = vld [vmem:[%s1 + $0x198] sm:$0xff]
    %v77 = vld [vmem:[%s1 + $0x1a0] sm:$0xff]
    %v78 = vld [vmem:[%s1 + $0x1a8] sm:$0xff]
    %v79 = vld [vmem:[%s1 + $0x1b0] sm:$0xff]
    %v80 = vld [vmem:[%s1 + $0x1b8] sm:$0xff]
    %v81 = vld [vmem:[%s1 + $0x1c0] sm:$0xff]
    %v82 = vld [vmem:[%s1 + $0x1c8] sm:$0xff]
    %v83 = vld [vmem:[%s1 + $0x1d0] sm:$0xff]
    %v84 = vld [vmem:[%s1 + $0x1d8] sm:$0xff]
    %v85 = vld [vmem:[%s1 + $0x1e0] sm:$0xff]
    %v86 = vld [vmem:[%s1 + $0x1e8] sm:$0xff]
    %v87 = vld [vmem:[%s1 + $0x1f0] sm:$0xff]
    %v88 = vld [vmem:[%s1 + $0x1f8] sm:$0xff]
    %v89 = vld [vmem:[%s1 + $0x200] sm:$0xff]
    %v90 = vld [vmem:[%s1 + $0x208] sm:$0xff]
    %v91 = vld [vmem:[%s1 + $0x210] sm:$0xff]
    %v92 = vld [vmem:[%s1 + $0x218] sm:$0xff]
    %v93 = vld [vmem:[%s1 + $0x220] sm:$0xff]
    %v94 = vld [vmem:[%s1 + $0x228] sm:$0xff]
    %v95 = vld [vmem:[%s1 + $0x230] sm:$0xff]
    %v96 = vld [vmem:[%s1 + $0x238] sm:$0xff]
    %v97 = vld [vmem:[%s1 + $0x240] sm:$0xff]
    %v98 = vld [vmem:[%s1 + $0x248] sm:$0xff]
    %v99 = vld [vmem:[%s1 + $0x250] sm:$0xff]
    %v100 = vld [vmem:[%s1 + $0x258] sm:$0xff]
    %v101 = vld [vmem:[%s1 + $0x260] sm:$0xff]
    %v102 = vld [vmem:[%s1 + $0x268] sm:$0xff]
    %v103 = vld [vmem:[%s1 + $0x270] sm:$0xff]
    %v104 = vld [vmem:[%s1 + $0x278] sm:$0xff]
    %v105 = vld [vmem:[%s1 + $0x280] sm:$0xff]
    %v106 = vld [vmem:[%s1 + $0x288] sm:$0xff]
    %v107 = vld [vmem:[%s1 + $0x290] sm:$0xff]
    %v108 = vld [vmem:[%s1 + $0x298] sm:$0xff]
    %v109 = vld [vmem:[%s1 + $0x2a0] sm:$0xff]
    %v110 = vld [vmem:[%s1 + $0x2a8] sm:$0xff]
    %v111 = vld [vmem:[%s1 + $0x2b0] sm:$0xff]
    %v112 = vld [vmem:[%s1 + $0x2b8] sm:$0xff]
    %v113 = vld [vmem:[%s1 + $0x2c0] sm:$0xff]
    %v114 = vld [vmem:[%s1 + $0x2c8] sm:$0xff]
    %v115 = vld [vmem:[%s1 + $0x2d0] sm:$0xff]
    %v116 = vld [vmem:[%s1 + $0x2d8] sm:$0xff]
    %v117 = vld [vmem:[%s1 + $0x2e0] sm:$0xff]
    %v118 = vld [vmem:[%s1 + $0x2e8] sm:$0xff]
    %v119 = vld [vmem:[%s1 + $0x2f0] sm:$0xff]
    %v120 = vld [vmem:[%s1 + $0x2f8] sm:$0xff]
    %v121 = vld [vmem:[%s1 + $0x300] sm:$0xff]
    %v122 = vld [vmem:[%s1 + $0x308] sm:$0xff]
    %v123 = vld [vmem:[%s1 + $0x310] sm:$0xff]
    %v124 = vld [vmem:[%s1 + $0x318] sm:$0xff]
    %v125 = vld [vmem:[%s1 + $0x320] sm:$0xff]
    %v126 = vld [vmem:[%s1 + $0x328] sm:$0xff]
    %v127 = vld [vmem:[%s1 + $0x330] sm:$0xff]
    %v128 = vld [vmem:[%s1 + $0x338] sm:$0xff]
    %v129 = vld [vmem:[%s1 + $0x340] sm:$0xff]
    %v130 = vld [vmem:[%s1 + $0x348] sm:$0xff]
    %v131 = vld [vmem:[%s1 + $0x350] sm:$0xff]
    %v132 = vld [vmem:[%s1 + $0x358] sm:$0xff]
    %v133 = vld [vmem:[%s1 + $0x360] sm:$0xff]
    %v134 = vld [vmem:[%s1 + $0x368] sm:$0xff]
    %v135 = vld [vmem:[%s1 + $0x370] sm:$0xff]
    %v136 = vld [vmem:[%s1 + $0x378] sm:$0xff]
    %v137 = vld [vmem:[%s1 + $0x380] sm:$0xff]
    %v138 = vld [vmem:[%s1 + $0x388] sm:$0xff]
    %v139 = vld [vmem:[%s1 + $0x390] sm:$0xff]
    %v140 = vld [vmem:[%s1 + $0x398] sm:$0xff]
    %v141 = vld [vmem:[%s1 + $0x3a0] sm:$0xff]
    %v142 = vld [vmem:[%s1 + $0x3a8] sm:$0xff]
    %v143 = vld [vmem:[%s1 + $0x3b0] sm:$0xff]
    %v144 = vld [vmem:[%s1 + $0x3b8] sm:$0xff]
    %v145 = vld [vmem:[%s1 + $0x3c0] sm:$0xff]
    %v146 = vld [vmem:[%s1 + $0x3c8] sm:$0xff]
    %v147 = vld [vmem:[%s1 + $0x3d0] sm:$0xff]
    %v148 = vld [vmem:[%s1 + $0x3d8] sm:$0xff]
    %v149 = vld [vmem:[%s1 + $0x3e0] sm:$0xff]
    %v150 = vld [vmem:[%s1 + $0x3e8] sm:$0xff]
    %v151 = vld [vmem:[%s1 + $0x3f0] sm:$0xff]
    %v152 = vld [vmem:[%s1 + $0x3f8] sm:$0xff]
    %v153 = vld [vmem:[%s1 + $0x400] sm:$0xff]
    %v154 = vld [vmem:[%s1 + $0x408] sm:$0xff]
    %v155 = vld [vmem:[%s1 + $0x410] sm:$0xff]
    %v156 = vld [vmem:[%s1 + $0x418] sm:$0xff]
    %v157 = vld [vmem:[%s1 + $0x420] sm:$0xff]
    %v158 = vld [vmem:[%s1 + $0x428] sm:$0xff]
    %v159 = vld [vmem:[%s1 + $0x430] sm:$0xff]
    %v160 = vld [vmem:[%s1 + $0x438] sm:$0xff]
    %v161 = vld [vmem:[%s1 + $0x440] sm:$0xff]
    %v162 = vld [vmem:[%s1 + $0x448] sm:$0xff]
    %v163 = vld [vmem:[%s1 + $0x450] sm:$0xff]
    %v164 = vld [vmem:[%s1 + $0x458] sm:$0xff]
    %v165 = vld [vmem:[%s1 + $0x460] sm:$0xff]
    %v166 = vld [vmem:[%s1 + $0x468] sm:$0xff]
    %v167 = vld [vmem:[%s1 + $0x470] sm:$0xff]
    %v168 = vld [vmem:[%s1 + $0x478] sm:$0xff]
    %v169 = vld [vmem:[%s1 + $0x480] sm:$0xff]
    %v170 = vld [vmem:[%s1 + $0x488] sm:$0xff]
    %v171 = vld [vmem:[%s1 + $0x490] sm:$0xff]
    %v172 = vld [vmem:[%s1 + $0x498] sm:$0xff]
    %v173 = vld [vmem:[%s1 + $0x4a0] sm:$0xff]
    %v174 = vld [vmem:[%s1 + $0x4a8] sm:$0xff]
    %v175 = vld [vmem:[%s1 + $0x4b0] sm:$0xff]
    %v176 = vld [vmem:[%s1 + $0x4b8] sm:$0xff]
    %v177 = vld [vmem:[%s1 + $0x4c0] sm:$0xff]
    %v178 = vld [vmem:[%s1 + $0x4c8] sm:$0xff]
    %v179 = vld [vmem:[%s1 + $0x4d0] sm:$0xff]
    %v180 = vld [vmem:[%s1 + $0x4d8] sm:$0xff]
    %v181 = vld [vmem:[%s1 + $0x4e0] sm:$0xff]
    %v182 = vld [vmem:[%s1 + $0x4e8] sm:$0xff]
    %v183 = vld [vmem:[%s1 + $0x4f0] sm:$0xff]
    %v184 = vld [vmem:[%s1 + $0x4f8] sm:$0xff]
    %v185 = vld [vmem:[%s1 + $0x500] sm:$0xff]
    %v186 = vld [vmem:[%s1 + $0x508] sm:$0xff]
    %v187 = vld [vmem:[%s1 + $0x510] sm:$0xff]
    %v188 = vld [vmem:[%s1 + $0x518] sm:$0xff]
    %v189 = vld [vmem:[%s1 + $0x520] sm:$0xff]
    %v190 = vld [vmem:[%s1 + $0x528] sm:$0xff]
    %v191 = vld [vmem:[%s1 + $0x530] sm:$0xff]
    %v192 = vld [vmem:[%s1 + $0x538] sm:$0xff]
    %v193 = vld [vmem:[%s1 + $0x540] sm:$0xff]
    %v194 = vld [vmem:[%s1 + $0x548] sm:$0xff]
    %v195 = vld [vmem:[%s1 + $0x550] sm:$0xff]
    %v196 = vld [vmem:[%s1 + $0x558] sm:$0xff]
    %v197 = vld [vmem:[%s1 + $0x560] sm:$0xff]
    %v198 = vld [vmem:[%s1 + $0x568] sm:$0xff]
    %v199 = vld [vmem:[%s1 + $0x570] sm:$0xff]
    %v200 = vld [vmem:[%s1 + $0x578] sm:$0xff]
    %v201 = vld [vmem:[%s1 + $0x580] sm:$0xff]
    %v202 = vld [vmem:[%s1 + $0x588] sm:$0xff]
    %v203 = vld [vmem:[%s1 + $0x590] sm:$0xff]
    %v204 = vld [vmem:[%s1 + $0x598] sm:$0xff]
    %v205 = vld [vmem:[%s1 + $0x5a0] sm:$0xff]
    %v206 = vld [vmem:[%s1 + $0x5a8] sm:$0xff]
    %v207 = vld [vmem:[%s1 + $0x5b0] sm:$0xff]
    %v208 = vld [vmem:[%s1 + $0x5b8] sm:$0xff]
    %v209 = vld [vmem:[%s1 + $0x5c0] sm:$0xff]
    %v210 = vld [vmem:[%s1 + $0x5c8] sm:$0xff]
    %v211 = vld [vmem:[%s1 + $0x5d0] sm:$0xff]
    %v212 = vld [vmem:[%s1 + $0x5d8] sm:$0xff]
    %v213 = vld [vmem:[%s1 + $0x5e0] sm:$0xff]
    %v214 = vld [vmem:[%s1 + $0x5e8] sm:$0xff]
    %v215 = vld [vmem:[%s1 + $0x5f0] sm:$0xff]
    %v216 = vld [vmem:[%s1 + $0x5f8] sm:$0xff]
    %v217 = vld [vmem:[%s1 + $0x600] sm:$0xff]
    %v218 = vld [vmem:[%s1 + $0x608] sm:$0xff]
    %v219 = vld [vmem:[%s1 + $0x610] sm:$0xff]
    %v220 = vld [vmem:[%s1 + $0x618] sm:$0xff]
    %v221 = vld [vmem:[%s1 + $0x620] sm:$0xff]
    %v222 = vld [vmem:[%s1 + $0x628] sm:$0xff]
    %v223 = vld [vmem:[%s1 + $0x630] sm:$0xff]
    %v224 = vld [vmem:[%s1 + $0x638] sm:$0xff]
    %v225 = vld [vmem:[%s1 + $0x640] sm:$0xff]
    %v226 = vld [vmem:[%s1 + $0x648] sm:$0xff]
    %v227 = vld [vmem:[%s1 + $0x650] sm:$0xff]
    %v228 = vld [vmem:[%s1 + $0x658] sm:$0xff]
    %v229 = vld [vmem:[%s1 + $0x660] sm:$0xff]
    %v230 = vld [vmem:[%s1 + $0x668] sm:$0xff]
    %v231 = vld [vmem:[%s1 + $0x670] sm:$0xff]
    %v232 = vld [vmem:[%s1 + $0x678] sm:$0xff]
    %v233 = vld [vmem:[%s1 + $0x680] sm:$0xff]
    %v234 = vld [vmem:[%s1 + $0x688] sm:$0xff]
    %v235 = vld [vmem:[%s1 + $0x690] sm:$0xff]
    %v236 = vld [vmem:[%s1 + $0x698] sm:$0xff]
    %v237 = vld [vmem:[%s1 + $0x6a0] sm:$0xff]
    %v238 = vld [vmem:[%s1 + $0x6a8] sm:$0xff]
    %v239 = vld [vmem:[%s1 + $0x6b0] sm:$0xff]
    %v240 = vld [vmem:[%s1 + $0x6b8] sm:$0xff]
    %v241 = vld [vmem:[%s2] sm:$0x1]
    %v243 = vperm.slane %v241, 0
    %249 = vst [vmem:[#allocation1] ss:$4 sm:$0xff] %v21
    %s250 = scalar_lea.vmem [#allocation1], 32
    %251 = vst [vmem:[%s250] ss:$4 sm:$0xff] %v22
    %v252 = vld.sshfl [vmem:[#allocation1] sm:$0xff pattern:$0x73625140]
    %v253 = vld.sshfl [vmem:[#allocation1 + $0x8] sm:$0xff pattern:$0x73625140]
    %v254 = vld.sshfl [vmem:[#allocation1 + $0x10] sm:$0xff pattern:$0x73625140]
    %v255 = vld.sshfl [vmem:[#allocation1 + $0x18] sm:$0xff pattern:$0x73625140]
    %v256 = vld.sshfl [vmem:[#allocation1 + $0x20] sm:$0xff pattern:$0x73625140]
    %v257 = vld.sshfl [vmem:[#allocation1 + $0x28] sm:$0xff pattern:$0x73625140]
    %v258 = vld.sshfl [vmem:[#allocation1 + $0x30] sm:$0xff pattern:$0x73625140]
    %v259 = vld.sshfl [vmem:[#allocation1 + $0x38] sm:$0xff pattern:$0x73625140]
    %260 = vst [vmem:[#allocation1] ss:$4 sm:$0xff] %v23
    %261 = vst [vmem:[%s250] ss:$4 sm:$0xff] %v24
    %v262 = vld.sshfl [vmem:[#allocation1] sm:$0xff pattern:$0x73625140]
    %v263 = vld.sshfl [vmem:[#allocation1 + $0x8] sm:$0xff pattern:$0x73625140]
    %v264 = vld.sshfl [vmem:[#allocation1 + $0x10] sm:$0xff pattern:$0x73625140]
    %v265 = vld.sshfl [vmem:[#allocation1 + $0x18] sm:$0xff pattern:$0x73625140]
    %v266 = vld.sshfl [vmem:[#allocation1 + $0x20] sm:$0xff pattern:$0x73625140]
    %v267 = vld.sshfl [vmem:[#allocation1 + $0x28] sm:$0xff pattern:$0x73625140]
    %vm281 = vcmask 523264
    %v282 = vsel %vm281, %v267, 0
    %284 = vmatpush.msra.mxu0 %v40
    %285 = vmatpush.msra.mxu0 %v39
    %286 = vmatpush.msra.mxu0 %v38
    %287 = vmatpush.msra.mxu0 %v37
    %288 = vmatpush.msra.mxu0 %v36
    %289 = vmatpush.msra.mxu0 %v35
    %290 = vmatpush.msra.mxu0 %v34
    %291 = vmatpush.msra.mxu0 %v33
    %292 = vmatpush.msra.mxu0 %v32
    %293 = vmatpush.msra.mxu0 %v31
    %294 = vmatpush.msra.mxu0 %v30
    %295 = vmatpush.msra.mxu0 %v29
    %296 = vmatpush.msra.mxu0 %v28
    %297 = vmatpush.msra.mxu0 %v27
    %298 = vmatpush.msra.mxu0 %v26
    %299 = vmatpush.msra.mxu0 %v25
    %300 = vmatmul.f32.gmra.mxu0 %v252
    %v301 = vpop.f32.mrf.mxu0
    %v302 = vadd.f32 %v243, %v301
    %303 = vdwg.mxu0
    %304 = vmatpush.msra.mxu0 %v56
    %305 = vmatpush.msra.mxu0 %v55
    %306 = vmatpush.msra.mxu0 %v54
    %307 = vmatpush.msra.mxu0 %v53
    %308 = vmatpush.msra.mxu0 %v52
    %309 = vmatpush.msra.mxu0 %v51
    %310 = vmatpush.msra.mxu0 %v50
    %311 = vmatpush.msra.mxu0 %v49
    %312 = vmatpush.msra.mxu0 %v48
    %313 = vmatpush.msra.mxu0 %v47
    %314 = vmatpush.msra.mxu0 %v46
    %315 = vmatpush.msra.mxu0 %v45
    %316 = vmatpush.msra.mxu0 %v44
    %317 = vmatpush.msra.mxu0 %v43
    %318 = vmatpush.msra.mxu0 %v42
    %319 = vmatpush.msra.mxu0 %v41
    %320 = vmatmul.f32.gmra.mxu0 %v253
    %v321 = vpop.f32.mrf.mxu0
    %v322 = vadd.f32 %v302, %v321
    %323 = vdwg.mxu0
    %324 = vmatpush.msra.mxu0 %v72
    %325 = vmatpush.msra.mxu0 %v71
    %326 = vmatpush.msra.mxu0 %v70
    %327 = vmatpush.msra.mxu0 %v69
    %328 = vmatpush.msra.mxu0 %v68
    %329 = vmatpush.msra.mxu0 %v67
    %330 = vmatpush.msra.mxu0 %v66
    %331 = vmatpush.msra.mxu0 %v65
    %332 = vmatpush.msra.mxu0 %v64
    %333 = vmatpush.msra.mxu0 %v63
    %334 = vmatpush.msra.mxu0 %v62
    %335 = vmatpush.msra.mxu0 %v61
    %336 = vmatpush.msra.mxu0 %v60
    %337 = vmatpush.msra.mxu0 %v59
    %338 = vmatpush.msra.mxu0 %v58
    %339 = vmatpush.msra.mxu0 %v57
    %340 = vmatmul.f32.gmra.mxu0 %v254
    %v341 = vpop.f32.mrf.mxu0
    %v342 = vadd.f32 %v322, %v341
    %343 = vdwg.mxu0
    %344 = vmatpush.msra.mxu0 %v88
    %345 = vmatpush.msra.mxu0 %v87
    %346 = vmatpush.msra.mxu0 %v86
    %347 = vmatpush.msra.mxu0 %v85
    %348 = vmatpush.msra.mxu0 %v84
    %349 = vmatpush.msra.mxu0 %v83
    %350 = vmatpush.msra.mxu0 %v82
    %351 = vmatpush.msra.mxu0 %v81
    %352 = vmatpush.msra.mxu0 %v80
    %353 = vmatpush.msra.mxu0 %v79
    %354 = vmatpush.msra.mxu0 %v78
    %355 = vmatpush.msra.mxu0 %v77
    %356 = vmatpush.msra.mxu0 %v76
    %357 = vmatpush.msra.mxu0 %v75
    %358 = vmatpush.msra.mxu0 %v74
    %359 = vmatpush.msra.mxu0 %v73
    %360 = vmatmul.f32.gmra.mxu0 %v255
    %v361 = vpop.f32.mrf.mxu0
    %v362 = vadd.f32 %v342, %v361
    %363 = vdwg.mxu0
    %364 = vmatpush.msra.mxu0 %v104
    %365 = vmatpush.msra.mxu0 %v103
    %366 = vmatpush.msra.mxu0 %v102
    %367 = vmatpush.msra.mxu0 %v101
    %368 = vmatpush.msra.mxu0 %v100
    %369 = vmatpush.msra.mxu0 %v99
    %370 = vmatpush.msra.mxu0 %v98
    %371 = vmatpush.msra.mxu0 %v97
    %372 = vmatpush.msra.mxu0 %v96
    %373 = vmatpush.msra.mxu0 %v95
    %374 = vmatpush.msra.mxu0 %v94
    %375 = vmatpush.msra.mxu0 %v93
    %376 = vmatpush.msra.mxu0 %v92
    %377 = vmatpush.msra.mxu0 %v91
    %378 = vmatpush.msra.mxu0 %v90
    %379 = vmatpush.msra.mxu0 %v89
    %380 = vmatmul.f32.gmra.mxu0 %v256
    %v381 = vpop.f32.mrf.mxu0
    %v382 = vadd.f32 %v362, %v381
    %383 = vdwg.mxu0
    %384 = vmatpush.msra.mxu0 %v120
    %385 = vmatpush.msra.mxu0 %v119
    %386 = vmatpush.msra.mxu0 %v118
    %387 = vmatpush.msra.mxu0 %v117
    %388 = vmatpush.msra.mxu0 %v116
    %389 = vmatpush.msra.mxu0 %v115
    %390 = vmatpush.msra.mxu0 %v114
    %391 = vmatpush.msra.mxu0 %v113
    %392 = vmatpush.msra.mxu0 %v112
    %393 = vmatpush.msra.mxu0 %v111
    %394 = vmatpush.msra.mxu0 %v110
    %395 = vmatpush.msra.mxu0 %v109
    %396 = vmatpush.msra.mxu0 %v108
    %397 = vmatpush.msra.mxu0 %v107
    %398 = vmatpush.msra.mxu0 %v106
    %399 = vmatpush.msra.mxu0 %v105
    %400 = vmatmul.f32.gmra.mxu0 %v257
    %v401 = vpop.f32.mrf.mxu0
    %v402 = vadd.f32 %v382, %v401
    %403 = vdwg.mxu0
    %404 = vmatpush.msra.mxu0 %v136
    %405 = vmatpush.msra.mxu0 %v135
    %406 = vmatpush.msra.mxu0 %v134
    %407 = vmatpush.msra.mxu0 %v133
    %408 = vmatpush.msra.mxu0 %v132
    %409 = vmatpush.msra.mxu0 %v131
    %410 = vmatpush.msra.mxu0 %v130
    %411 = vmatpush.msra.mxu0 %v129
    %412 = vmatpush.msra.mxu0 %v128
    %413 = vmatpush.msra.mxu0 %v127
    %414 = vmatpush.msra.mxu0 %v126
    %415 = vmatpush.msra.mxu0 %v125
    %416 = vmatpush.msra.mxu0 %v124
    %417 = vmatpush.msra.mxu0 %v123
    %418 = vmatpush.msra.mxu0 %v122
    %419 = vmatpush.msra.mxu0 %v121
    %420 = vmatmul.f32.gmra.mxu0 %v258
    %v421 = vpop.f32.mrf.mxu0
    %v422 = vadd.f32 %v402, %v421
    %423 = vdwg.mxu0
    %424 = vmatpush.msra.mxu0 %v152
    %425 = vmatpush.msra.mxu0 %v151
    %426 = vmatpush.msra.mxu0 %v150
    %427 = vmatpush.msra.mxu0 %v149
    %428 = vmatpush.msra.mxu0 %v148
    %429 = vmatpush.msra.mxu0 %v147
    %430 = vmatpush.msra.mxu0 %v146
    %431 = vmatpush.msra.mxu0 %v145
    %432 = vmatpush.msra.mxu0 %v144
    %433 = vmatpush.msra.mxu0 %v143
    %434 = vmatpush.msra.mxu0 %v142
    %435 = vmatpush.msra.mxu0 %v141
    %436 = vmatpush.msra.mxu0 %v140
    %437 = vmatpush.msra.mxu0 %v139
    %438 = vmatpush.msra.mxu0 %v138
    %439 = vmatpush.msra.mxu0 %v137
    %440 = vmatmul.f32.gmra.mxu0 %v259
    %v441 = vpop.f32.mrf.mxu0
    %v442 = vadd.f32 %v422, %v441
    %443 = vdwg.mxu0
    %444 = vmatpush.msra.mxu0 %v168
    %445 = vmatpush.msra.mxu0 %v167
    %446 = vmatpush.msra.mxu0 %v166
    %447 = vmatpush.msra.mxu0 %v165
    %448 = vmatpush.msra.mxu0 %v164
    %449 = vmatpush.msra.mxu0 %v163
    %450 = vmatpush.msra.mxu0 %v162
    %451 = vmatpush.msra.mxu0 %v161
    %452 = vmatpush.msra.mxu0 %v160
    %453 = vmatpush.msra.mxu0 %v159
    %454 = vmatpush.msra.mxu0 %v158
    %455 = vmatpush.msra.mxu0 %v157
    %456 = vmatpush.msra.mxu0 %v156
    %457 = vmatpush.msra.mxu0 %v155
    %458 = vmatpush.msra.mxu0 %v154
    %459 = vmatpush.msra.mxu0 %v153
    %460 = vmatmul.f32.gmra.mxu0 %v262
    %v461 = vpop.f32.mrf.mxu0
    %v462 = vadd.f32 %v442, %v461
    %463 = vdwg.mxu0
    %464 = vmatpush.msra.mxu0 %v184
    %465 = vmatpush.msra.mxu0 %v183
    %466 = vmatpush.msra.mxu0 %v182
    %467 = vmatpush.msra.mxu0 %v181
    %468 = vmatpush.msra.mxu0 %v180
    %469 = vmatpush.msra.mxu0 %v179
    %470 = vmatpush.msra.mxu0 %v178
    %471 = vmatpush.msra.mxu0 %v177
    %472 = vmatpush.msra.mxu0 %v176
    %473 = vmatpush.msra.mxu0 %v175
    %474 = vmatpush.msra.mxu0 %v174
    %475 = vmatpush.msra.mxu0 %v173
    %476 = vmatpush.msra.mxu0 %v172
    %477 = vmatpush.msra.mxu0 %v171
    %478 = vmatpush.msra.mxu0 %v170
    %479 = vmatpush.msra.mxu0 %v169
    %480 = vmatmul.f32.gmra.mxu0 %v263
    %v481 = vpop.f32.mrf.mxu0
    %v482 = vadd.f32 %v462, %v481
    %483 = vdwg.mxu0
    %484 = vmatpush.msra.mxu0 %v200
    %485 = vmatpush.msra.mxu0 %v199
    %486 = vmatpush.msra.mxu0 %v198
    %487 = vmatpush.msra.mxu0 %v197
    %488 = vmatpush.msra.mxu0 %v196
    %489 = vmatpush.msra.mxu0 %v195
    %490 = vmatpush.msra.mxu0 %v194
    %491 = vmatpush.msra.mxu0 %v193
    %492 = vmatpush.msra.mxu0 %v192
    %493 = vmatpush.msra.mxu0 %v191
    %494 = vmatpush.msra.mxu0 %v190
    %495 = vmatpush.msra.mxu0 %v189
    %496 = vmatpush.msra.mxu0 %v188
    %497 = vmatpush.msra.mxu0 %v187
    %498 = vmatpush.msra.mxu0 %v186
    %499 = vmatpush.msra.mxu0 %v185
    %500 = vmatmul.f32.gmra.mxu0 %v264
    %v501 = vpop.f32.mrf.mxu0
    %v502 = vadd.f32 %v482, %v501
    %503 = vdwg.mxu0
    %504 = vmatpush.msra.mxu0 %v216
    %505 = vmatpush.msra.mxu0 %v215
    %506 = vmatpush.msra.mxu0 %v214
    %507 = vmatpush.msra.mxu0 %v213
    %508 = vmatpush.msra.mxu0 %v212
    %509 = vmatpush.msra.mxu0 %v211
    %510 = vmatpush.msra.mxu0 %v210
    %511 = vmatpush.msra.mxu0 %v209
    %512 = vmatpush.msra.mxu0 %v208
    %513 = vmatpush.msra.mxu0 %v207
    %514 = vmatpush.msra.mxu0 %v206
    %515 = vmatpush.msra.mxu0 %v205
    %516 = vmatpush.msra.mxu0 %v204
    %517 = vmatpush.msra.mxu0 %v203
    %518 = vmatpush.msra.mxu0 %v202
    %519 = vmatpush.msra.mxu0 %v201
    %520 = vmatmul.f32.gmra.mxu0 %v265
    %v521 = vpop.f32.mrf.mxu0
    %v522 = vadd.f32 %v502, %v521
    %523 = vdwg.mxu0
    %524 = vmatpush.msra.mxu0 %v232
    %525 = vmatpush.msra.mxu0 %v231
    %526 = vmatpush.msra.mxu0 %v230
    %527 = vmatpush.msra.mxu0 %v229
    %528 = vmatpush.msra.mxu0 %v228
    %529 = vmatpush.msra.mxu0 %v227
    %530 = vmatpush.msra.mxu0 %v226
    %531 = vmatpush.msra.mxu0 %v225
    %532 = vmatpush.msra.mxu0 %v224
    %533 = vmatpush.msra.mxu0 %v223
    %534 = vmatpush.msra.mxu0 %v222
    %535 = vmatpush.msra.mxu0 %v221
    %536 = vmatpush.msra.mxu0 %v220
    %537 = vmatpush.msra.mxu0 %v219
    %538 = vmatpush.msra.mxu0 %v218
    %539 = vmatpush.msra.mxu0 %v217
    %540 = vmatmul.f32.gmra.mxu0 %v266
    %v541 = vpop.f32.mrf.mxu0
    %v542 = vadd.f32 %v522, %v541
    %543 = vdwg.mxu0
    %544 = vmatpush.msra.mxu0 0.0
    %545 = vmatpush.msra.mxu0 0.0
    %546 = vmatpush.msra.mxu0 0.0
    %547 = vmatpush.msra.mxu0 0.0
    %548 = vmatpush.msra.mxu0 0.0
    %549 = vmatpush.msra.mxu0 0.0
    %550 = vmatpush.msra.mxu0 0.0
    %551 = vmatpush.msra.mxu0 0.0
    %552 = vmatpush.msra.mxu0 %v240
    %553 = vmatpush.msra.mxu0 %v239
    %554 = vmatpush.msra.mxu0 %v238
    %555 = vmatpush.msra.mxu0 %v237
    %556 = vmatpush.msra.mxu0 %v236
    %557 = vmatpush.msra.mxu0 %v235
    %558 = vmatpush.msra.mxu0 %v234
    %559 = vmatpush.msra.mxu0 %v233
    %560 = vmatmul.f32.gmra.mxu0 %v282
    %v561 = vpop.f32.mrf.mxu0
    %v562 = vadd.f32 %v542, %v561
    %563 = vdwg.mxu0
    %v564 = vld [vmem:[%s3] sm:$0xff]
    %v565 = vld [vmem:[%s3 + $0x8] sm:$0xff]
    %v566 = vld [vmem:[%s4] sm:$0x1]
    %v568 = vperm.slane %v566, 0
    %vm570 = vcmask 130048
    %v572 = vsel %vm570, %v562, 0
    %574 = vmatpush.msra.mxu0 0.0
    %575 = vmatpush.msra.mxu0 0.0
    %576 = vmatpush.msra.mxu0 0.0
    %577 = vmatpush.msra.mxu0 0.0
    %578 = vmatpush.msra.mxu0 0.0
    %579 = vmatpush.msra.mxu0 0.0
    %580 = vmatpush.msra.mxu0 0.0
    %581 = vmatpush.msra.mxu0 0.0
    %582 = vmatpush.msra.mxu0 0.0
    %583 = vmatpush.msra.mxu0 0.0
    %584 = vmatpush.msra.mxu0 0.0
    %585 = vmatpush.msra.mxu0 0.0
    %586 = vmatpush.msra.mxu0 0.0
    %587 = vmatpush.msra.mxu0 0.0
    %588 = vmatpush.msra.mxu0 %v565
    %589 = vmatpush.msra.mxu0 %v564
    %590 = vmatmul.f32.gmra.mxu0 %v572
    %v591 = vpop.f32.mrf.mxu0
    %v592 = vadd.f32 %v568, %v591
    %593 = vdwg.mxu0
    %vm594 = vcmask 25600
    %595 = vst.msk [vmem:[#allocation2] sm:$0x3] %vm594, %v592
    // Predicated region
    $region22: #{tensor_cspnet_forward.5} parent=1 // pred_check
      _
    $region23: #{tensor_cspnet_forward.5} parent=1 // pred_check_branch
      %597 = sbr.rel (0) target = $region25
    $region24: #{tensor_cspnet_forward.5} parent=1 // pred_region
      %599 = vsyncadd [#allocation3], 0
      %s601 = sshll.u32 [#allocation2], 4
      %s602 = int_to_ptr.vmem [resolvable:$true] %s601
      %s603 = sshll.u32 %s5, 4
      %s604 = int_to_ptr.hbm [resolvable:$true] %s603
      %606 = dma.vmem_to_hbm [thread:$0]  %s602, 32, %s604, [#allocation3]
    $region25: #{tensor_cspnet_forward.5} parent=1 // pred_fallthru
      _
    // Predicated region
    $region26: #{tensor_cspnet_forward.5} parent=1 // pred_check
      _
    $region27: #{tensor_cspnet_forward.5} parent=1 // pred_check_branch
      %608 = sbr.rel (0) target = $region29
    $region28: #{tensor_cspnet_forward.5} parent=1 // pred_region
      %610 = dma.done [#allocation3], 32
    $region29: #{tensor_cspnet_forward.5} parent=1 // pred_fallthru
      _
    %611 = vsyncpa [#allocation3], 1

</llo_original>
